<compile_context>
chip_gen: v7x
topology: tpu7x:2x2x1
jax: 0.10.0
libtpu: 0.0.40
codegen_flags: <defaults>
</compile_context>

<pallas_src>
import math
import numpy as np
import jax
import jax.numpy as jnp
from jax import lax
from jax.experimental import pallas as pl
from jax.experimental.pallas import tpu as pltpu  # noqa: F401  (kept for TPU-specific tweaks)

# ---------------- model hyperparameters (small, consistent with module) ----------------
B = 2          # batch
NQ = 8         # num_queries
NK = 16        # sequence_length (keys)
D = 32         # d_model
H = 4          # n_heads
HD = D // H    # head_dim
LN_EPS = 1e-5


def _layer_norm(x, gamma, beta):
    mu = jnp.mean(x, axis=-1, keepdims=True)
    var = jnp.mean((x - mu) ** 2, axis=-1, keepdims=True)
    return (x - mu) * lax.rsqrt(var + LN_EPS) * gamma + beta


def domain_attention_kernel(q_ref, src_ref, pos_ref, mask_ref,
                            w_qkv_ref, b_qkv_ref, w_wide_ref, vec_ref, out_ref):
    # q_ref: (B, NQ, D); src/pos: (B, NK, D); mask: (B, NK) (1.0 = padded key)
    # w_qkv_ref: (3*H, D, HD)  per-head, pre-transposed [WqT_h (pre-scaled) | WkT_h | WvT_h]
    # b_qkv_ref: (3*H, HD)     per-head biases           [bq_h (pre-scaled) | bk_h  | bv_h ]
    # w_wide_ref: (2, D, D)    [Wout^T, Wlin^T]
    # vec_ref:   (6, D)        [bout, ln1_g, ln1_b, blin, ln2_g, ln2_b]
    q_in = q_ref[...].reshape(B * NQ, D)
    key_in = (src_ref[...] + pos_ref[...]).reshape(B * NK, D)   # with_pos_embed + GRL (identity fwd)
    val_in = src_ref[...].reshape(B * NK, D)

    b_qkv = b_qkv_ref[...]                                      # (3*H, HD)
    vecs = vec_ref[...]                                         # (6, D)
    bo, g1, b1 = vecs[0:1], vecs[1:2], vecs[2:3]
    bl, g2, b2 = vecs[3:4], vecs[4:5], vecs[5:6]

    # ---- per-head Q/K/V projections (head split done on the host: no lane slicing here) ----
    q_h, k_h, v_h = [], [], []
    for h in range(H):
        q_h.append(jnp.dot(q_in, w_qkv_ref[h], preferred_element_type=jnp.float32)
                   + b_qkv[h:h + 1])                            # (B*NQ, HD), already scaled
        k_h.append(jnp.dot(key_in, w_qkv_ref[H + h], preferred_element_type=jnp.float32)
                   + b_qkv[H + h:H + h + 1])                    # (B*NK, HD)
        v_h.append(jnp.dot(val_in, w_qkv_ref[2 * H + h], preferred_element_type=jnp.float32)
                   + b_qkv[2 * H + h:2 * H + h + 1])            # (B*NK, HD)

    # ---- additive key-padding bias (finite, avoids NaN for fully-padded rows) ----
    neg_bias = mask_ref[...] * (-1e30)                          # (B, NK)

    # ---- scores for every (batch, head) group → ONE fused, numerically-stable softmax ----
    s_blocks = []
    for b in range(B):
        for h in range(H):
            s = jnp.einsum('qd,kd->qk',
                           q_h[h][b * NQ:(b + 1) * NQ],         # (NQ, HD) aligned sublane slice
                           k_h[h][b * NK:(b + 1) * NK],         # (NK, HD) aligned sublane slice
                           preferred_element_type=jnp.float32)  # (NQ, NK)
            s_blocks.append(s + neg_bias[b:b + 1, :])
    s_all = jnp.concatenate(s_blocks, axis=0)                   # (B*H*NQ, NK)

    m = jnp.max(s_all, axis=-1, keepdims=True)
    e = jnp.exp(s_all - m)
    p_all = e * pl.reciprocal(jnp.sum(e, axis=-1, keepdims=True), approx=True)

    # ---- value matmuls + head merge folded into per-head output-projection blocks ----
    wo_t = w_wide_ref[0]                                        # (D, D) = Wout^T
    attn = None
    for h in range(H):
        o_b = []
        for b in range(B):
            g = b * H + h
            o_b.append(jnp.dot(p_all[g * NQ:(g + 1) * NQ],      # (NQ, NK)
                               v_h[h][b * NK:(b + 1) * NK],     # (NK, HD)
                               preferred_element_type=jnp.float32))
        o_h = jnp.concatenate(o_b, axis=0)                      # (B*NQ, HD), aligned concat
        contrib = jnp.dot(o_h, wo_t[h * HD:(h + 1) * HD, :],    # (HD, D) aligned sublane slice
                          preferred_element_type=jnp.float32)
        attn = contrib if attn is None else attn + contrib
    attn = attn + bo                                            # (B*NQ, D)

    # ---- residual + LayerNorm1 ----
    x = _layer_norm(q_in + attn, g1, b1)
    # ---- linear + residual + LayerNorm2 ----
    y = jnp.dot(x, w_wide_ref[1], preferred_element_type=jnp.float32) + bl
    x = _layer_norm(x + y, g2, b2)

    out_ref[...] = x.reshape(B, NQ, D).astype(out_ref.dtype)


def _pack_params(params):
    """One-time host-side weight preprocessing (head split, transpose, scale fold)."""
    (wq, wk, wv, bq, bk, bv, wo, bo, g1, b1, wl, bl, g2, b2) = params
    scale = 1.0 / math.sqrt(HD)

    def head_split_t(w):            # (D, D) -> (H, D, HD): per-head column blocks of W^T
        return w.T.reshape(D, H, HD).transpose(1, 0, 2)

    w_qkv = jnp.concatenate([head_split_t(wq * scale),
                             head_split_t(wk),
                             head_split_t(wv)], axis=0)                      # (3*H, D, HD)
    b_qkv = jnp.concatenate([(bq * scale).reshape(H, HD),
                             bk.reshape(H, HD),
                             bv.reshape(H, HD)], axis=0)                     # (3*H, HD)
    w_wide = jnp.stack([wo.T, wl.T], axis=0)                                 # (2, D, D)
    vec = jnp.concatenate([bo, g1, b1, bl, g2, b2], axis=0)                  # (6, D)
    return w_qkv, b_qkv, w_wide, vec


@jax.jit
def domain_attention(query, src, pos, padding_mask, params):
    w_qkv, b_qkv, w_wide, vec = _pack_params(params)
    # Single invocation; all operands resident in VMEM (total footprint a few KB).
    return pl.pallas_call(
        domain_attention_kernel,
        out_shape=jax.ShapeDtypeStruct((B, NQ, D), jnp.float32),
    )(query, src, pos, padding_mask, w_qkv, b_qkv, w_wide, vec)


# ---------------- pure-JAX reference for validation ----------------
def reference(query, src, pos, padding_mask, params):
    (wq, wk, wv, bq, bk, bv, wo, bo, g1, b1, wl, bl, g2, b2) = params
    key_in = src + pos
    q = query @ wq.T + bq
    k = key_in @ wk.T + bk
    v = src @ wv.T + bv
    qh = q.reshape(B, NQ, H, HD).transpose(0, 2, 1, 3)
    kh = k.reshape(B, NK, H, HD).transpose(0, 2, 1, 3)
    vh = v.reshape(B, NK, H, HD).transpose(0, 2, 1, 3)
    s = jnp.einsum("bhqd,bhkd->bhqk", qh, kh) / math.sqrt(HD)
    s = jnp.where(padding_mask[:, None, None, :] > 0.5, -jnp.inf, s)
    p = jax.nn.softmax(s, axis=-1)
    o = jnp.einsum("bhqk,bhkd->bhqd", p, vh).transpose(0, 2, 1, 3).reshape(B, NQ, D)
    o = o @ wo.T + bo
    x = query + o
    x = (x - x.mean(-1, keepdims=True)) / jnp.sqrt(x.var(-1, keepdims=True) + LN_EPS) * g1 + b1
    x = x + (x @ wl.T + bl)
    x = (x - x.mean(-1, keepdims=True)) / jnp.sqrt(x.var(-1, keepdims=True) + LN_EPS) * g2 + b2
    return x


if __name__ == "__main__":
    key = jax.random.PRNGKey(0)
    ks = jax.random.split(key, 16)

    query = jax.random.normal(ks[0], (B, NQ, D), jnp.float32)
    src = jax.random.normal(ks[1], (B, NK, D), jnp.float32)
    pos = jax.random.normal(ks[2], (B, NK, D), jnp.float32)
    # key padding mask: pad the last 3 keys of batch 1, nothing in batch 0 (1.0 = padded)
    padding_mask = jnp.zeros((B, NK), jnp.float32).at[1, NK - 3:].set(1.0)

    # deterministic parameter init (shapes from nn.MultiheadAttention / Linear / LayerNorm)
    sc = 0.1
    wq = sc * jax.random.normal(ks[3], (D, D), jnp.float32)
    wk = sc * jax.random.normal(ks[4], (D, D), jnp.float32)
    wv = sc * jax.random.normal(ks[5], (D, D), jnp.float32)
    bq = sc * jax.random.normal(ks[6], (1, D), jnp.float32)
    bk = sc * jax.random.normal(ks[7], (1, D), jnp.float32)
    bv = sc * jax.random.normal(ks[8], (1, D), jnp.float32)
    wo = sc * jax.random.normal(ks[9], (D, D), jnp.float32)
    bo = sc * jax.random.normal(ks[10], (1, D), jnp.float32)
    g1 = jnp.ones((1, D), jnp.float32)
    b1 = jnp.zeros((1, D), jnp.float32)
    wl = sc * jax.random.normal(ks[11], (D, D), jnp.float32)
    bl = sc * jax.random.normal(ks[12], (1, D), jnp.float32)
    g2 = jnp.ones((1, D), jnp.float32)
    b2 = jnp.zeros((1, D), jnp.float32)
    params = (wq, wk, wv, bq, bk, bv, wo, bo, g1, b1, wl, bl, g2, b2)

    out = domain_attention(query, src, pos, padding_mask, params)
    out = jax.block_until_ready(out)

    ref = jax.block_until_ready(reference(query, src, pos, padding_mask, params))
    # tolerance slightly relaxed vs. 1e-4 because the kernel uses the EUP approximate
    # reciprocal for the softmax denominator; math is otherwise exact f32.
    np.testing.assert_allclose(np.asarray(out), np.asarray(ref), rtol=2e-3, atol=2e-3)

    print("KERNEL_OK")
</pallas_src>

<mosaic_0001>
module attributes {stable_mosaic.version = 11 : i64} {
  func.func @domain_attention_kernel(%arg0: memref<2x8x32xf32, #tpu.memory_space<vmem>>, %arg1: memref<2x16x32xf32, #tpu.memory_space<vmem>>, %arg2: memref<2x16x32xf32, #tpu.memory_space<vmem>>, %arg3: memref<2x16xf32, #tpu.memory_space<vmem>>, %arg4: memref<12x32x8xf32, #tpu.memory_space<vmem>>, %arg5: memref<12x8xf32, #tpu.memory_space<vmem>>, %arg6: memref<2x32x32xf32, #tpu.memory_space<vmem>>, %arg7: memref<6x32xf32, #tpu.memory_space<vmem>>, %arg8: memref<2x8x32xf32, #tpu.memory_space<vmem>>) attributes {dimension_semantics = [], scalar_prefetch = 0 : i64, scratch_operands = 0 : i64, tpu.core_type = #tpu.core_type<tc>} {
    %c0 = arith.constant 0 : index
    %c0_0 = arith.constant 0 : index
    %c0_1 = arith.constant 0 : index
    %0 = vector.load %arg0[%c0, %c0_0, %c0_1] : memref<2x8x32xf32, #tpu.memory_space<vmem>>, vector<2x8x32xf32>
    %1 = vector.shape_cast %0 : vector<2x8x32xf32> to vector<16x32xf32>
    %c0_2 = arith.constant 0 : index
    %c0_3 = arith.constant 0 : index
    %c0_4 = arith.constant 0 : index
    %2 = vector.load %arg1[%c0_2, %c0_3, %c0_4] : memref<2x16x32xf32, #tpu.memory_space<vmem>>, vector<2x16x32xf32>
    %c0_5 = arith.constant 0 : index
    %c0_6 = arith.constant 0 : index
    %c0_7 = arith.constant 0 : index
    %3 = vector.load %arg2[%c0_5, %c0_6, %c0_7] : memref<2x16x32xf32, #tpu.memory_space<vmem>>, vector<2x16x32xf32>
    %4 = arith.addf %2, %3 : vector<2x16x32xf32>
    %5 = vector.shape_cast %4 : vector<2x16x32xf32> to vector<32x32xf32>
    %c0_8 = arith.constant 0 : index
    %c0_9 = arith.constant 0 : index
    %c0_10 = arith.constant 0 : index
    %6 = vector.load %arg1[%c0_8, %c0_9, %c0_10] : memref<2x16x32xf32, #tpu.memory_space<vmem>>, vector<2x16x32xf32>
    %7 = vector.shape_cast %6 : vector<2x16x32xf32> to vector<32x32xf32>
    %c0_11 = arith.constant 0 : index
    %c0_12 = arith.constant 0 : index
    %8 = vector.load %arg5[%c0_11, %c0_12] : memref<12x8xf32, #tpu.memory_space<vmem>>, vector<12x8xf32>
    %c0_13 = arith.constant 0 : index
    %c0_14 = arith.constant 0 : index
    %9 = vector.load %arg7[%c0_13, %c0_14] : memref<6x32xf32, #tpu.memory_space<vmem>>, vector<6x32xf32>
    %10 = vector.extract_strided_slice %9 {offsets = [0, 0], sizes = [1, 32], strides = [1, 1]} : vector<6x32xf32> to vector<1x32xf32>
    %11 = vector.extract_strided_slice %9 {offsets = [1, 0], sizes = [1, 32], strides = [1, 1]} : vector<6x32xf32> to vector<1x32xf32>
    %12 = vector.extract_strided_slice %9 {offsets = [2, 0], sizes = [1, 32], strides = [1, 1]} : vector<6x32xf32> to vector<1x32xf32>
    %13 = vector.extract_strided_slice %9 {offsets = [3, 0], sizes = [1, 32], strides = [1, 1]} : vector<6x32xf32> to vector<1x32xf32>
    %14 = vector.extract_strided_slice %9 {offsets = [4, 0], sizes = [1, 32], strides = [1, 1]} : vector<6x32xf32> to vector<1x32xf32>
    %15 = vector.extract_strided_slice %9 {offsets = [5, 0], sizes = [1, 32], strides = [1, 1]} : vector<6x32xf32> to vector<1x32xf32>
    %c0_15 = arith.constant 0 : index
    %c0_16 = arith.constant 0 : index
    %c0_17 = arith.constant 0 : index
    %16 = vector.load %arg4[%c0_15, %c0_16, %c0_17] : memref<12x32x8xf32, #tpu.memory_space<vmem>>, vector<1x32x8xf32>
    %17 = vector.shape_cast %16 : vector<1x32x8xf32> to vector<32x8xf32>
    %cst = arith.constant dense<0.000000e+00> : vector<16x8xf32>
    %18 = tpu.matmul %1, %17, %cst {dimension_numbers = #tpu.dot_dimension_numbers<[1], [0], [0], [1], [0, 0, 1, 1], [], []>} : vector<16x32xf32>, vector<32x8xf32>, vector<16x8xf32> -> vector<16x8xf32>
    %19 = vector.extract_strided_slice %8 {offsets = [0, 0], sizes = [1, 8], strides = [1, 1]} : vector<12x8xf32> to vector<1x8xf32>
    %20 = vector.broadcast %19 : vector<1x8xf32> to vector<16x8xf32>
    %21 = arith.addf %18, %20 : vector<16x8xf32>
    %c4 = arith.constant 4 : index
    %c0_18 = arith.constant 0 : index
    %c0_19 = arith.constant 0 : index
    %22 = vector.load %arg4[%c4, %c0_18, %c0_19] : memref<12x32x8xf32, #tpu.memory_space<vmem>>, vector<1x32x8xf32>
    %23 = vector.shape_cast %22 : vector<1x32x8xf32> to vector<32x8xf32>
    %cst_20 = arith.constant dense<0.000000e+00> : vector<32x8xf32>
    %24 = tpu.matmul %5, %23, %cst_20 {dimension_numbers = #tpu.dot_dimension_numbers<[1], [0], [0], [1], [0, 0, 1, 1], [], []>} : vector<32x32xf32>, vector<32x8xf32>, vector<32x8xf32> -> vector<32x8xf32>
    %25 = vector.extract_strided_slice %8 {offsets = [4, 0], sizes = [1, 8], strides = [1, 1]} : vector<12x8xf32> to vector<1x8xf32>
    %26 = vector.broadcast %25 : vector<1x8xf32> to vector<32x8xf32>
    %27 = arith.addf %24, %26 : vector<32x8xf32>
    %c8 = arith.constant 8 : index
    %c0_21 = arith.constant 0 : index
    %c0_22 = arith.constant 0 : index
    %28 = vector.load %arg4[%c8, %c0_21, %c0_22] : memref<12x32x8xf32, #tpu.memory_space<vmem>>, vector<1x32x8xf32>
    %29 = vector.shape_cast %28 : vector<1x32x8xf32> to vector<32x8xf32>
    %cst_23 = arith.constant dense<0.000000e+00> : vector<32x8xf32>
    %30 = tpu.matmul %7, %29, %cst_23 {dimension_numbers = #tpu.dot_dimension_numbers<[1], [0], [0], [1], [0, 0, 1, 1], [], []>} : vector<32x32xf32>, vector<32x8xf32>, vector<32x8xf32> -> vector<32x8xf32>
    %31 = vector.extract_strided_slice %8 {offsets = [8, 0], sizes = [1, 8], strides = [1, 1]} : vector<12x8xf32> to vector<1x8xf32>
    %32 = vector.broadcast %31 : vector<1x8xf32> to vector<32x8xf32>
    %33 = arith.addf %30, %32 : vector<32x8xf32>
    %c1 = arith.constant 1 : index
    %c0_24 = arith.constant 0 : index
    %c0_25 = arith.constant 0 : index
    %34 = vector.load %arg4[%c1, %c0_24, %c0_25] : memref<12x32x8xf32, #tpu.memory_space<vmem>>, vector<1x32x8xf32>
    %35 = vector.shape_cast %34 : vector<1x32x8xf32> to vector<32x8xf32>
    %cst_26 = arith.constant dense<0.000000e+00> : vector<16x8xf32>
    %36 = tpu.matmul %1, %35, %cst_26 {dimension_numbers = #tpu.dot_dimension_numbers<[1], [0], [0], [1], [0, 0, 1, 1], [], []>} : vector<16x32xf32>, vector<32x8xf32>, vector<16x8xf32> -> vector<16x8xf32>
    %37 = vector.extract_strided_slice %8 {offsets = [1, 0], sizes = [1, 8], strides = [1, 1]} : vector<12x8xf32> to vector<1x8xf32>
    %38 = vector.broadcast %37 : vector<1x8xf32> to vector<16x8xf32>
    %39 = arith.addf %36, %38 : vector<16x8xf32>
    %c5 = arith.constant 5 : index
    %c0_27 = arith.constant 0 : index
    %c0_28 = arith.constant 0 : index
    %40 = vector.load %arg4[%c5, %c0_27, %c0_28] : memref<12x32x8xf32, #tpu.memory_space<vmem>>, vector<1x32x8xf32>
    %41 = vector.shape_cast %40 : vector<1x32x8xf32> to vector<32x8xf32>
    %cst_29 = arith.constant dense<0.000000e+00> : vector<32x8xf32>
    %42 = tpu.matmul %5, %41, %cst_29 {dimension_numbers = #tpu.dot_dimension_numbers<[1], [0], [0], [1], [0, 0, 1, 1], [], []>} : vector<32x32xf32>, vector<32x8xf32>, vector<32x8xf32> -> vector<32x8xf32>
    %43 = vector.extract_strided_slice %8 {offsets = [5, 0], sizes = [1, 8], strides = [1, 1]} : vector<12x8xf32> to vector<1x8xf32>
    %44 = vector.broadcast %43 : vector<1x8xf32> to vector<32x8xf32>
    %45 = arith.addf %42, %44 : vector<32x8xf32>
    %c9 = arith.constant 9 : index
    %c0_30 = arith.constant 0 : index
    %c0_31 = arith.constant 0 : index
    %46 = vector.load %arg4[%c9, %c0_30, %c0_31] : memref<12x32x8xf32, #tpu.memory_space<vmem>>, vector<1x32x8xf32>
    %47 = vector.shape_cast %46 : vector<1x32x8xf32> to vector<32x8xf32>
    %cst_32 = arith.constant dense<0.000000e+00> : vector<32x8xf32>
    %48 = tpu.matmul %7, %47, %cst_32 {dimension_numbers = #tpu.dot_dimension_numbers<[1], [0], [0], [1], [0, 0, 1, 1], [], []>} : vector<32x32xf32>, vector<32x8xf32>, vector<32x8xf32> -> vector<32x8xf32>
    %49 = vector.extract_strided_slice %8 {offsets = [9, 0], sizes = [1, 8], strides = [1, 1]} : vector<12x8xf32> to vector<1x8xf32>
    %50 = vector.broadcast %49 : vector<1x8xf32> to vector<32x8xf32>
    %51 = arith.addf %48, %50 : vector<32x8xf32>
    %c2 = arith.constant 2 : index
    %c0_33 = arith.constant 0 : index
    %c0_34 = arith.constant 0 : index
    %52 = vector.load %arg4[%c2, %c0_33, %c0_34] : memref<12x32x8xf32, #tpu.memory_space<vmem>>, vector<1x32x8xf32>
    %53 = vector.shape_cast %52 : vector<1x32x8xf32> to vector<32x8xf32>
    %cst_35 = arith.constant dense<0.000000e+00> : vector<16x8xf32>
    %54 = tpu.matmul %1, %53, %cst_35 {dimension_numbers = #tpu.dot_dimension_numbers<[1], [0], [0], [1], [0, 0, 1, 1], [], []>} : vector<16x32xf32>, vector<32x8xf32>, vector<16x8xf32> -> vector<16x8xf32>
    %55 = vector.extract_strided_slice %8 {offsets = [2, 0], sizes = [1, 8], strides = [1, 1]} : vector<12x8xf32> to vector<1x8xf32>
    %56 = vector.broadcast %55 : vector<1x8xf32> to vector<16x8xf32>
    %57 = arith.addf %54, %56 : vector<16x8xf32>
    %c6 = arith.constant 6 : index
    %c0_36 = arith.constant 0 : index
    %c0_37 = arith.constant 0 : index
    %58 = vector.load %arg4[%c6, %c0_36, %c0_37] : memref<12x32x8xf32, #tpu.memory_space<vmem>>, vector<1x32x8xf32>
    %59 = vector.shape_cast %58 : vector<1x32x8xf32> to vector<32x8xf32>
    %cst_38 = arith.constant dense<0.000000e+00> : vector<32x8xf32>
    %60 = tpu.matmul %5, %59, %cst_38 {dimension_numbers = #tpu.dot_dimension_numbers<[1], [0], [0], [1], [0, 0, 1, 1], [], []>} : vector<32x32xf32>, vector<32x8xf32>, vector<32x8xf32> -> vector<32x8xf32>
    %61 = vector.extract_strided_slice %8 {offsets = [6, 0], sizes = [1, 8], strides = [1, 1]} : vector<12x8xf32> to vector<1x8xf32>
    %62 = vector.broadcast %61 : vector<1x8xf32> to vector<32x8xf32>
    %63 = arith.addf %60, %62 : vector<32x8xf32>
    %c10 = arith.constant 10 : index
    %c0_39 = arith.constant 0 : index
    %c0_40 = arith.constant 0 : index
    %64 = vector.load %arg4[%c10, %c0_39, %c0_40] : memref<12x32x8xf32, #tpu.memory_space<vmem>>, vector<1x32x8xf32>
    %65 = vector.shape_cast %64 : vector<1x32x8xf32> to vector<32x8xf32>
    %cst_41 = arith.constant dense<0.000000e+00> : vector<32x8xf32>
    %66 = tpu.matmul %7, %65, %cst_41 {dimension_numbers = #tpu.dot_dimension_numbers<[1], [0], [0], [1], [0, 0, 1, 1], [], []>} : vector<32x32xf32>, vector<32x8xf32>, vector<32x8xf32> -> vector<32x8xf32>
    %67 = vector.extract_strided_slice %8 {offsets = [10, 0], sizes = [1, 8], strides = [1, 1]} : vector<12x8xf32> to vector<1x8xf32>
    %68 = vector.broadcast %67 : vector<1x8xf32> to vector<32x8xf32>
    %69 = arith.addf %66, %68 : vector<32x8xf32>
    %c3 = arith.constant 3 : index
    %c0_42 = arith.constant 0 : index
    %c0_43 = arith.constant 0 : index
    %70 = vector.load %arg4[%c3, %c0_42, %c0_43] : memref<12x32x8xf32, #tpu.memory_space<vmem>>, vector<1x32x8xf32>
    %71 = vector.shape_cast %70 : vector<1x32x8xf32> to vector<32x8xf32>
    %cst_44 = arith.constant dense<0.000000e+00> : vector<16x8xf32>
    %72 = tpu.matmul %1, %71, %cst_44 {dimension_numbers = #tpu.dot_dimension_numbers<[1], [0], [0], [1], [0, 0, 1, 1], [], []>} : vector<16x32xf32>, vector<32x8xf32>, vector<16x8xf32> -> vector<16x8xf32>
    %73 = vector.extract_strided_slice %8 {offsets = [3, 0], sizes = [1, 8], strides = [1, 1]} : vector<12x8xf32> to vector<1x8xf32>
    %74 = vector.broadcast %73 : vector<1x8xf32> to vector<16x8xf32>
    %75 = arith.addf %72, %74 : vector<16x8xf32>
    %c7 = arith.constant 7 : index
    %c0_45 = arith.constant 0 : index
    %c0_46 = arith.constant 0 : index
    %76 = vector.load %arg4[%c7, %c0_45, %c0_46] : memref<12x32x8xf32, #tpu.memory_space<vmem>>, vector<1x32x8xf32>
    %77 = vector.shape_cast %76 : vector<1x32x8xf32> to vector<32x8xf32>
    %cst_47 = arith.constant dense<0.000000e+00> : vector<32x8xf32>
    %78 = tpu.matmul %5, %77, %cst_47 {dimension_numbers = #tpu.dot_dimension_numbers<[1], [0], [0], [1], [0, 0, 1, 1], [], []>} : vector<32x32xf32>, vector<32x8xf32>, vector<32x8xf32> -> vector<32x8xf32>
    %79 = vector.extract_strided_slice %8 {offsets = [7, 0], sizes = [1, 8], strides = [1, 1]} : vector<12x8xf32> to vector<1x8xf32>
    %80 = vector.broadcast %79 : vector<1x8xf32> to vector<32x8xf32>
    %81 = arith.addf %78, %80 : vector<32x8xf32>
    %c11 = arith.constant 11 : index
    %c0_48 = arith.constant 0 : index
    %c0_49 = arith.constant 0 : index
    %82 = vector.load %arg4[%c11, %c0_48, %c0_49] : memref<12x32x8xf32, #tpu.memory_space<vmem>>, vector<1x32x8xf32>
    %83 = vector.shape_cast %82 : vector<1x32x8xf32> to vector<32x8xf32>
    %cst_50 = arith.constant dense<0.000000e+00> : vector<32x8xf32>
    %84 = tpu.matmul %7, %83, %cst_50 {dimension_numbers = #tpu.dot_dimension_numbers<[1], [0], [0], [1], [0, 0, 1, 1], [], []>} : vector<32x32xf32>, vector<32x8xf32>, vector<32x8xf32> -> vector<32x8xf32>
    %85 = vector.extract_strided_slice %8 {offsets = [11, 0], sizes = [1, 8], strides = [1, 1]} : vector<12x8xf32> to vector<1x8xf32>
    %86 = vector.broadcast %85 : vector<1x8xf32> to vector<32x8xf32>
    %87 = arith.addf %84, %86 : vector<32x8xf32>
    %c0_51 = arith.constant 0 : index
    %c0_52 = arith.constant 0 : index
    %88 = vector.load %arg3[%c0_51, %c0_52] : memref<2x16xf32, #tpu.memory_space<vmem>>, vector<2x16xf32>
    %cst_53 = arith.constant -1.000000e+30 : f32
    %89 = vector.broadcast %cst_53 : f32 to vector<2x16xf32>
    %90 = arith.mulf %88, %89 : vector<2x16xf32>
    %91 = vector.extract_strided_slice %21 {offsets = [0, 0], sizes = [8, 8], strides = [1, 1]} : vector<16x8xf32> to vector<8x8xf32>
    %92 = vector.extract_strided_slice %27 {offsets = [0, 0], sizes = [16, 8], strides = [1, 1]} : vector<32x8xf32> to vector<16x8xf32>
    "tpu.trace_start"() <{level = 10 : i32, message = "qd,kd->qk"}> : () -> ()
    %cst_54 = arith.constant dense<0.000000e+00> : vector<8x16xf32>
    %93 = tpu.matmul %91, %92, %cst_54 {dimension_numbers = #tpu.dot_dimension_numbers<[1], [1], [0], [0], [0, 0, 1, 0], [], []>} : vector<8x8xf32>, vector<16x8xf32>, vector<8x16xf32> -> vector<8x16xf32>
    "tpu.trace_stop"() : () -> ()
    %94 = vector.extract_strided_slice %90 {offsets = [0, 0], sizes = [1, 16], strides = [1, 1]} : vector<2x16xf32> to vector<1x16xf32>
    %95 = vector.broadcast %94 : vector<1x16xf32> to vector<8x16xf32>
    %96 = arith.addf %93, %95 : vector<8x16xf32>
    %97 = vector.extract_strided_slice %39 {offsets = [0, 0], sizes = [8, 8], strides = [1, 1]} : vector<16x8xf32> to vector<8x8xf32>
    %98 = vector.extract_strided_slice %45 {offsets = [0, 0], sizes = [16, 8], strides = [1, 1]} : vector<32x8xf32> to vector<16x8xf32>
    "tpu.trace_start"() <{level = 10 : i32, message = "qd,kd->qk"}> : () -> ()
    %cst_55 = arith.constant dense<0.000000e+00> : vector<8x16xf32>
    %99 = tpu.matmul %97, %98, %cst_55 {dimension_numbers = #tpu.dot_dimension_numbers<[1], [1], [0], [0], [0, 0, 1, 0], [], []>} : vector<8x8xf32>, vector<16x8xf32>, vector<8x16xf32> -> vector<8x16xf32>
    "tpu.trace_stop"() : () -> ()
    %100 = vector.extract_strided_slice %90 {offsets = [0, 0], sizes = [1, 16], strides = [1, 1]} : vector<2x16xf32> to vector<1x16xf32>
    %101 = vector.broadcast %100 : vector<1x16xf32> to vector<8x16xf32>
    %102 = arith.addf %99, %101 : vector<8x16xf32>
    %103 = vector.extract_strided_slice %57 {offsets = [0, 0], sizes = [8, 8], strides = [1, 1]} : vector<16x8xf32> to vector<8x8xf32>
    %104 = vector.extract_strided_slice %63 {offsets = [0, 0], sizes = [16, 8], strides = [1, 1]} : vector<32x8xf32> to vector<16x8xf32>
    "tpu.trace_start"() <{level = 10 : i32, message = "qd,kd->qk"}> : () -> ()
    %cst_56 = arith.constant dense<0.000000e+00> : vector<8x16xf32>
    %105 = tpu.matmul %103, %104, %cst_56 {dimension_numbers = #tpu.dot_dimension_numbers<[1], [1], [0], [0], [0, 0, 1, 0], [], []>} : vector<8x8xf32>, vector<16x8xf32>, vector<8x16xf32> -> vector<8x16xf32>
    "tpu.trace_stop"() : () -> ()
    %106 = vector.extract_strided_slice %90 {offsets = [0, 0], sizes = [1, 16], strides = [1, 1]} : vector<2x16xf32> to vector<1x16xf32>
    %107 = vector.broadcast %106 : vector<1x16xf32> to vector<8x16xf32>
    %108 = arith.addf %105, %107 : vector<8x16xf32>
    %109 = vector.extract_strided_slice %75 {offsets = [0, 0], sizes = [8, 8], strides = [1, 1]} : vector<16x8xf32> to vector<8x8xf32>
    %110 = vector.extract_strided_slice %81 {offsets = [0, 0], sizes = [16, 8], strides = [1, 1]} : vector<32x8xf32> to vector<16x8xf32>
    "tpu.trace_start"() <{level = 10 : i32, message = "qd,kd->qk"}> : () -> ()
    %cst_57 = arith.constant dense<0.000000e+00> : vector<8x16xf32>
    %111 = tpu.matmul %109, %110, %cst_57 {dimension_numbers = #tpu.dot_dimension_numbers<[1], [1], [0], [0], [0, 0, 1, 0], [], []>} : vector<8x8xf32>, vector<16x8xf32>, vector<8x16xf32> -> vector<8x16xf32>
    "tpu.trace_stop"() : () -> ()
    %112 = vector.extract_strided_slice %90 {offsets = [0, 0], sizes = [1, 16], strides = [1, 1]} : vector<2x16xf32> to vector<1x16xf32>
    %113 = vector.broadcast %112 : vector<1x16xf32> to vector<8x16xf32>
    %114 = arith.addf %111, %113 : vector<8x16xf32>
    %115 = vector.extract_strided_slice %21 {offsets = [8, 0], sizes = [8, 8], strides = [1, 1]} : vector<16x8xf32> to vector<8x8xf32>
    %116 = vector.extract_strided_slice %27 {offsets = [16, 0], sizes = [16, 8], strides = [1, 1]} : vector<32x8xf32> to vector<16x8xf32>
    "tpu.trace_start"() <{level = 10 : i32, message = "qd,kd->qk"}> : () -> ()
    %cst_58 = arith.constant dense<0.000000e+00> : vector<8x16xf32>
    %117 = tpu.matmul %115, %116, %cst_58 {dimension_numbers = #tpu.dot_dimension_numbers<[1], [1], [0], [0], [0, 0, 1, 0], [], []>} : vector<8x8xf32>, vector<16x8xf32>, vector<8x16xf32> -> vector<8x16xf32>
    "tpu.trace_stop"() : () -> ()
    %118 = vector.extract_strided_slice %90 {offsets = [1, 0], sizes = [1, 16], strides = [1, 1]} : vector<2x16xf32> to vector<1x16xf32>
    %119 = vector.broadcast %118 : vector<1x16xf32> to vector<8x16xf32>
    %120 = arith.addf %117, %119 : vector<8x16xf32>
    %121 = vector.extract_strided_slice %39 {offsets = [8, 0], sizes = [8, 8], strides = [1, 1]} : vector<16x8xf32> to vector<8x8xf32>
    %122 = vector.extract_strided_slice %45 {offsets = [16, 0], sizes = [16, 8], strides = [1, 1]} : vector<32x8xf32> to vector<16x8xf32>
    "tpu.trace_start"() <{level = 10 : i32, message = "qd,kd->qk"}> : () -> ()
    %cst_59 = arith.constant dense<0.000000e+00> : vector<8x16xf32>
    %123 = tpu.matmul %121, %122, %cst_59 {dimension_numbers = #tpu.dot_dimension_numbers<[1], [1], [0], [0], [0, 0, 1, 0], [], []>} : vector<8x8xf32>, vector<16x8xf32>, vector<8x16xf32> -> vector<8x16xf32>
    "tpu.trace_stop"() : () -> ()
    %124 = vector.extract_strided_slice %90 {offsets = [1, 0], sizes = [1, 16], strides = [1, 1]} : vector<2x16xf32> to vector<1x16xf32>
    %125 = vector.broadcast %124 : vector<1x16xf32> to vector<8x16xf32>
    %126 = arith.addf %123, %125 : vector<8x16xf32>
    %127 = vector.extract_strided_slice %57 {offsets = [8, 0], sizes = [8, 8], strides = [1, 1]} : vector<16x8xf32> to vector<8x8xf32>
    %128 = vector.extract_strided_slice %63 {offsets = [16, 0], sizes = [16, 8], strides = [1, 1]} : vector<32x8xf32> to vector<16x8xf32>
    "tpu.trace_start"() <{level = 10 : i32, message = "qd,kd->qk"}> : () -> ()
    %cst_60 = arith.constant dense<0.000000e+00> : vector<8x16xf32>
    %129 = tpu.matmul %127, %128, %cst_60 {dimension_numbers = #tpu.dot_dimension_numbers<[1], [1], [0], [0], [0, 0, 1, 0], [], []>} : vector<8x8xf32>, vector<16x8xf32>, vector<8x16xf32> -> vector<8x16xf32>
    "tpu.trace_stop"() : () -> ()
    %130 = vector.extract_strided_slice %90 {offsets = [1, 0], sizes = [1, 16], strides = [1, 1]} : vector<2x16xf32> to vector<1x16xf32>
    %131 = vector.broadcast %130 : vector<1x16xf32> to vector<8x16xf32>
    %132 = arith.addf %129, %131 : vector<8x16xf32>
    %133 = vector.extract_strided_slice %75 {offsets = [8, 0], sizes = [8, 8], strides = [1, 1]} : vector<16x8xf32> to vector<8x8xf32>
    %134 = vector.extract_strided_slice %81 {offsets = [16, 0], sizes = [16, 8], strides = [1, 1]} : vector<32x8xf32> to vector<16x8xf32>
    "tpu.trace_start"() <{level = 10 : i32, message = "qd,kd->qk"}> : () -> ()
    %cst_61 = arith.constant dense<0.000000e+00> : vector<8x16xf32>
    %135 = tpu.matmul %133, %134, %cst_61 {dimension_numbers = #tpu.dot_dimension_numbers<[1], [1], [0], [0], [0, 0, 1, 0], [], []>} : vector<8x8xf32>, vector<16x8xf32>, vector<8x16xf32> -> vector<8x16xf32>
    "tpu.trace_stop"() : () -> ()
    %136 = vector.extract_strided_slice %90 {offsets = [1, 0], sizes = [1, 16], strides = [1, 1]} : vector<2x16xf32> to vector<1x16xf32>
    %137 = vector.broadcast %136 : vector<1x16xf32> to vector<8x16xf32>
    %138 = arith.addf %135, %137 : vector<8x16xf32>
    %139 = tpu.concatenate %96, %102, %108, %114, %120, %126, %132, %138 in 0 : vector<8x16xf32>, vector<8x16xf32>, vector<8x16xf32>, vector<8x16xf32>, vector<8x16xf32>, vector<8x16xf32>, vector<8x16xf32>, vector<8x16xf32> -> vector<64x16xf32>
    %cst_62 = arith.constant dense<0xFF800000> : vector<64xf32>
    %140 = vector.multi_reduction <maximumf>, %139, %cst_62 [1] : vector<64x16xf32> to vector<64xf32>
    %141 = vector.shape_cast %140 : vector<64xf32> to vector<64x1xf32>
    %142 = vector.broadcast %141 : vector<64x1xf32> to vector<64x16xf32>
    %143 = arith.subf %139, %142 : vector<64x16xf32>
    %144 = math.exp %143 : vector<64x16xf32>
    %cst_63 = arith.constant dense<0.000000e+00> : vector<64xf32>
    %145 = vector.multi_reduction <add>, %144, %cst_63 [1] : vector<64x16xf32> to vector<64xf32>
    %146 = vector.shape_cast %145 : vector<64xf32> to vector<64x1xf32>
    %147 = tpu.reciprocal %146 {approx = true} : vector<64x1xf32> -> vector<64x1xf32>
    %148 = vector.broadcast %147 : vector<64x1xf32> to vector<64x16xf32>
    %149 = arith.mulf %144, %148 : vector<64x16xf32>
    %c0_64 = arith.constant 0 : index
    %c0_65 = arith.constant 0 : index
    %c0_66 = arith.constant 0 : index
    %150 = vector.load %arg6[%c0_64, %c0_65, %c0_66] : memref<2x32x32xf32, #tpu.memory_space<vmem>>, vector<1x32x32xf32>
    %151 = vector.shape_cast %150 : vector<1x32x32xf32> to vector<32x32xf32>
    %152 = vector.extract_strided_slice %149 {offsets = [0, 0], sizes = [8, 16], strides = [1, 1]} : vector<64x16xf32> to vector<8x16xf32>
    %153 = vector.extract_strided_slice %33 {offsets = [0, 0], sizes = [16, 8], strides = [1, 1]} : vector<32x8xf32> to vector<16x8xf32>
    %cst_67 = arith.constant dense<0.000000e+00> : vector<8x8xf32>
    %154 = tpu.matmul %152, %153, %cst_67 {dimension_numbers = #tpu.dot_dimension_numbers<[1], [0], [0], [1], [0, 0, 1, 1], [], []>} : vector<8x16xf32>, vector<16x8xf32>, vector<8x8xf32> -> vector<8x8xf32>
    %155 = vector.extract_strided_slice %149 {offsets = [32, 0], sizes = [8, 16], strides = [1, 1]} : vector<64x16xf32> to vector<8x16xf32>
    %156 = vector.extract_strided_slice %33 {offsets = [16, 0], sizes = [16, 8], strides = [1, 1]} : vector<32x8xf32> to vector<16x8xf32>
    %cst_68 = arith.constant dense<0.000000e+00> : vector<8x8xf32>
    %157 = tpu.matmul %155, %156, %cst_68 {dimension_numbers = #tpu.dot_dimension_numbers<[1], [0], [0], [1], [0, 0, 1, 1], [], []>} : vector<8x16xf32>, vector<16x8xf32>, vector<8x8xf32> -> vector<8x8xf32>
    %158 = tpu.concatenate %154, %157 in 0 : vector<8x8xf32>, vector<8x8xf32> -> vector<16x8xf32>
    %159 = vector.extract_strided_slice %151 {offsets = [0, 0], sizes = [8, 32], strides = [1, 1]} : vector<32x32xf32> to vector<8x32xf32>
    %cst_69 = arith.constant dense<0.000000e+00> : vector<16x32xf32>
    %160 = tpu.matmul %158, %159, %cst_69 {dimension_numbers = #tpu.dot_dimension_numbers<[1], [0], [0], [1], [0, 0, 1, 1], [], []>} : vector<16x8xf32>, vector<8x32xf32>, vector<16x32xf32> -> vector<16x32xf32>
    %161 = vector.extract_strided_slice %149 {offsets = [8, 0], sizes = [8, 16], strides = [1, 1]} : vector<64x16xf32> to vector<8x16xf32>
    %162 = vector.extract_strided_slice %51 {offsets = [0, 0], sizes = [16, 8], strides = [1, 1]} : vector<32x8xf32> to vector<16x8xf32>
    %cst_70 = arith.constant dense<0.000000e+00> : vector<8x8xf32>
    %163 = tpu.matmul %161, %162, %cst_70 {dimension_numbers = #tpu.dot_dimension_numbers<[1], [0], [0], [1], [0, 0, 1, 1], [], []>} : vector<8x16xf32>, vector<16x8xf32>, vector<8x8xf32> -> vector<8x8xf32>
    %164 = vector.extract_strided_slice %149 {offsets = [40, 0], sizes = [8, 16], strides = [1, 1]} : vector<64x16xf32> to vector<8x16xf32>
    %165 = vector.extract_strided_slice %51 {offsets = [16, 0], sizes = [16, 8], strides = [1, 1]} : vector<32x8xf32> to vector<16x8xf32>
    %cst_71 = arith.constant dense<0.000000e+00> : vector<8x8xf32>
    %166 = tpu.matmul %164, %165, %cst_71 {dimension_numbers = #tpu.dot_dimension_numbers<[1], [0], [0], [1], [0, 0, 1, 1], [], []>} : vector<8x16xf32>, vector<16x8xf32>, vector<8x8xf32> -> vector<8x8xf32>
    %167 = tpu.concatenate %163, %166 in 0 : vector<8x8xf32>, vector<8x8xf32> -> vector<16x8xf32>
    %168 = vector.extract_strided_slice %151 {offsets = [8, 0], sizes = [8, 32], strides = [1, 1]} : vector<32x32xf32> to vector<8x32xf32>
    %cst_72 = arith.constant dense<0.000000e+00> : vector<16x32xf32>
    %169 = tpu.matmul %167, %168, %cst_72 {dimension_numbers = #tpu.dot_dimension_numbers<[1], [0], [0], [1], [0, 0, 1, 1], [], []>} : vector<16x8xf32>, vector<8x32xf32>, vector<16x32xf32> -> vector<16x32xf32>
    %170 = arith.addf %160, %169 : vector<16x32xf32>
    %171 = vector.extract_strided_slice %149 {offsets = [16, 0], sizes = [8, 16], strides = [1, 1]} : vector<64x16xf32> to vector<8x16xf32>
    %172 = vector.extract_strided_slice %69 {offsets = [0, 0], sizes = [16, 8], strides = [1, 1]} : vector<32x8xf32> to vector<16x8xf32>
    %cst_73 = arith.constant dense<0.000000e+00> : vector<8x8xf32>
    %173 = tpu.matmul %171, %172, %cst_73 {dimension_numbers = #tpu.dot_dimension_numbers<[1], [0], [0], [1], [0, 0, 1, 1], [], []>} : vector<8x16xf32>, vector<16x8xf32>, vector<8x8xf32> -> vector<8x8xf32>
    %174 = vector.extract_strided_slice %149 {offsets = [48, 0], sizes = [8, 16], strides = [1, 1]} : vector<64x16xf32> to vector<8x16xf32>
    %175 = vector.extract_strided_slice %69 {offsets = [16, 0], sizes = [16, 8], strides = [1, 1]} : vector<32x8xf32> to vector<16x8xf32>
    %cst_74 = arith.constant dense<0.000000e+00> : vector<8x8xf32>
    %176 = tpu.matmul %174, %175, %cst_74 {dimension_numbers = #tpu.dot_dimension_numbers<[1], [0], [0], [1], [0, 0, 1, 1], [], []>} : vector<8x16xf32>, vector<16x8xf32>, vector<8x8xf32> -> vector<8x8xf32>
    %177 = tpu.concatenate %173, %176 in 0 : vector<8x8xf32>, vector<8x8xf32> -> vector<16x8xf32>
    %178 = vector.extract_strided_slice %151 {offsets = [16, 0], sizes = [8, 32], strides = [1, 1]} : vector<32x32xf32> to vector<8x32xf32>
    %cst_75 = arith.constant dense<0.000000e+00> : vector<16x32xf32>
    %179 = tpu.matmul %177, %178, %cst_75 {dimension_numbers = #tpu.dot_dimension_numbers<[1], [0], [0], [1], [0, 0, 1, 1], [], []>} : vector<16x8xf32>, vector<8x32xf32>, vector<16x32xf32> -> vector<16x32xf32>
    %180 = arith.addf %170, %179 : vector<16x32xf32>
    %181 = vector.extract_strided_slice %149 {offsets = [24, 0], sizes = [8, 16], strides = [1, 1]} : vector<64x16xf32> to vector<8x16xf32>
    %182 = vector.extract_strided_slice %87 {offsets = [0, 0], sizes = [16, 8], strides = [1, 1]} : vector<32x8xf32> to vector<16x8xf32>
    %cst_76 = arith.constant dense<0.000000e+00> : vector<8x8xf32>
    %183 = tpu.matmul %181, %182, %cst_76 {dimension_numbers = #tpu.dot_dimension_numbers<[1], [0], [0], [1], [0, 0, 1, 1], [], []>} : vector<8x16xf32>, vector<16x8xf32>, vector<8x8xf32> -> vector<8x8xf32>
    %184 = vector.extract_strided_slice %149 {offsets = [56, 0], sizes = [8, 16], strides = [1, 1]} : vector<64x16xf32> to vector<8x16xf32>
    %185 = vector.extract_strided_slice %87 {offsets = [16, 0], sizes = [16, 8], strides = [1, 1]} : vector<32x8xf32> to vector<16x8xf32>
    %cst_77 = arith.constant dense<0.000000e+00> : vector<8x8xf32>
    %186 = tpu.matmul %184, %185, %cst_77 {dimension_numbers = #tpu.dot_dimension_numbers<[1], [0], [0], [1], [0, 0, 1, 1], [], []>} : vector<8x16xf32>, vector<16x8xf32>, vector<8x8xf32> -> vector<8x8xf32>
    %187 = tpu.concatenate %183, %186 in 0 : vector<8x8xf32>, vector<8x8xf32> -> vector<16x8xf32>
    %188 = vector.extract_strided_slice %151 {offsets = [24, 0], sizes = [8, 32], strides = [1, 1]} : vector<32x32xf32> to vector<8x32xf32>
    %cst_78 = arith.constant dense<0.000000e+00> : vector<16x32xf32>
    %189 = tpu.matmul %187, %188, %cst_78 {dimension_numbers = #tpu.dot_dimension_numbers<[1], [0], [0], [1], [0, 0, 1, 1], [], []>} : vector<16x8xf32>, vector<8x32xf32>, vector<16x32xf32> -> vector<16x32xf32>
    %190 = arith.addf %180, %189 : vector<16x32xf32>
    %191 = vector.broadcast %10 : vector<1x32xf32> to vector<16x32xf32>
    %192 = arith.addf %190, %191 : vector<16x32xf32>
    %193 = arith.addf %1, %192 : vector<16x32xf32>
    %cst_79 = arith.constant dense<0.000000e+00> : vector<16xf32>
    %194 = vector.multi_reduction <add>, %193, %cst_79 [1] : vector<16x32xf32> to vector<16xf32>
    %195 = vector.shape_cast %194 : vector<16xf32> to vector<16x1xf32>
    %cst_80 = arith.constant 3.200000e+01 : f32
    %196 = vector.broadcast %cst_80 : f32 to vector<16x1xf32>
    %197 = arith.divf %195, %196 : vector<16x1xf32>
    %198 = vector.broadcast %197 : vector<16x1xf32> to vector<16x32xf32>
    %199 = arith.subf %193, %198 : vector<16x32xf32>
    %200 = arith.mulf %199, %199 : vector<16x32xf32>
    %cst_81 = arith.constant dense<0.000000e+00> : vector<16xf32>
    %201 = vector.multi_reduction <add>, %200, %cst_81 [1] : vector<16x32xf32> to vector<16xf32>
    %202 = vector.shape_cast %201 : vector<16xf32> to vector<16x1xf32>
    %cst_82 = arith.constant 3.200000e+01 : f32
    %203 = vector.broadcast %cst_82 : f32 to vector<16x1xf32>
    %204 = arith.divf %202, %203 : vector<16x1xf32>
    %205 = vector.broadcast %197 : vector<16x1xf32> to vector<16x32xf32>
    %206 = arith.subf %193, %205 : vector<16x32xf32>
    %cst_83 = arith.constant 9.99999974E-6 : f32
    %207 = vector.broadcast %cst_83 : f32 to vector<16x1xf32>
    %208 = arith.addf %204, %207 : vector<16x1xf32>
    %209 = math.rsqrt %208 : vector<16x1xf32>
    %210 = vector.broadcast %209 : vector<16x1xf32> to vector<16x32xf32>
    %211 = arith.mulf %206, %210 : vector<16x32xf32>
    %212 = vector.broadcast %11 : vector<1x32xf32> to vector<16x32xf32>
    %213 = arith.mulf %211, %212 : vector<16x32xf32>
    %214 = vector.broadcast %12 : vector<1x32xf32> to vector<16x32xf32>
    %215 = arith.addf %213, %214 : vector<16x32xf32>
    %c1_84 = arith.constant 1 : index
    %c0_85 = arith.constant 0 : index
    %c0_86 = arith.constant 0 : index
    %216 = vector.load %arg6[%c1_84, %c0_85, %c0_86] : memref<2x32x32xf32, #tpu.memory_space<vmem>>, vector<1x32x32xf32>
    %217 = vector.shape_cast %216 : vector<1x32x32xf32> to vector<32x32xf32>
    %cst_87 = arith.constant dense<0.000000e+00> : vector<16x32xf32>
    %218 = tpu.matmul %215, %217, %cst_87 {dimension_numbers = #tpu.dot_dimension_numbers<[1], [0], [0], [1], [0, 0, 1, 1], [], []>} : vector<16x32xf32>, vector<32x32xf32>, vector<16x32xf32> -> vector<16x32xf32>
    %219 = vector.broadcast %13 : vector<1x32xf32> to vector<16x32xf32>
    %220 = arith.addf %218, %219 : vector<16x32xf32>
    %221 = arith.addf %215, %220 : vector<16x32xf32>
    %cst_88 = arith.constant dense<0.000000e+00> : vector<16xf32>
    %222 = vector.multi_reduction <add>, %221, %cst_88 [1] : vector<16x32xf32> to vector<16xf32>
    %223 = vector.shape_cast %222 : vector<16xf32> to vector<16x1xf32>
    %cst_89 = arith.constant 3.200000e+01 : f32
    %224 = vector.broadcast %cst_89 : f32 to vector<16x1xf32>
    %225 = arith.divf %223, %224 : vector<16x1xf32>
    %226 = vector.broadcast %225 : vector<16x1xf32> to vector<16x32xf32>
    %227 = arith.subf %221, %226 : vector<16x32xf32>
    %228 = arith.mulf %227, %227 : vector<16x32xf32>
    %cst_90 = arith.constant dense<0.000000e+00> : vector<16xf32>
    %229 = vector.multi_reduction <add>, %228, %cst_90 [1] : vector<16x32xf32> to vector<16xf32>
    %230 = vector.shape_cast %229 : vector<16xf32> to vector<16x1xf32>
    %cst_91 = arith.constant 3.200000e+01 : f32
    %231 = vector.broadcast %cst_91 : f32 to vector<16x1xf32>
    %232 = arith.divf %230, %231 : vector<16x1xf32>
    %233 = vector.broadcast %225 : vector<16x1xf32> to vector<16x32xf32>
    %234 = arith.subf %221, %233 : vector<16x32xf32>
    %cst_92 = arith.constant 9.99999974E-6 : f32
    %235 = vector.broadcast %cst_92 : f32 to vector<16x1xf32>
    %236 = arith.addf %232, %235 : vector<16x1xf32>
    %237 = math.rsqrt %236 : vector<16x1xf32>
    %238 = vector.broadcast %237 : vector<16x1xf32> to vector<16x32xf32>
    %239 = arith.mulf %234, %238 : vector<16x32xf32>
    %240 = vector.broadcast %14 : vector<1x32xf32> to vector<16x32xf32>
    %241 = arith.mulf %239, %240 : vector<16x32xf32>
    %242 = vector.broadcast %15 : vector<1x32xf32> to vector<16x32xf32>
    %243 = arith.addf %241, %242 : vector<16x32xf32>
    %244 = vector.shape_cast %243 : vector<16x32xf32> to vector<2x8x32xf32>
    %c0_93 = arith.constant 0 : index
    %c0_94 = arith.constant 0 : index
    %c0_95 = arith.constant 0 : index
    %245 = vector.load %arg8[%c0_93, %c0_94, %c0_95] : memref<2x8x32xf32, #tpu.memory_space<vmem>>, vector<2x8x32xf32>
    tpu.vector_store %arg8[%c0_93, %c0_94, %c0_95], %244 {strides = array<i32>} : memref<2x8x32xf32, #tpu.memory_space<vmem>>, vector<2x8x32xf32>,
    return
  }
}

</mosaic_0001>

<llo_original>
// kernel: domain_attention.1
$region0: #{domain_attention.1}
  #allocation0 [shape = 'u32[]', space=smem, size = 0x4, offset = 0x4, fixed_abs, tag = 'smem constant byte address 0x4 - core index']
  #allocation1 [shape = 'u32[144,128]{1,0:T(1,128)}', space=vmem, size = 0x12000, scoped, tag = 'internal scratch']
  %s0 = inlined_call_operand.vmem [shape: f32[2,8,32], index: 0, kind: input, shape index: {}]
  %s1 = inlined_call_operand.vmem [shape: f32[2,16,32], index: 1, kind: input, shape index: {}]
  %s2 = inlined_call_operand.vmem [shape: f32[2,16,32], index: 2, kind: input, shape index: {}]
  %s3 = inlined_call_operand.vmem [shape: f32[2,16], index: 3, kind: input, shape index: {}]
  %s4 = inlined_call_operand.vmem [shape: f32[12,32,8], index: 4, kind: input, shape index: {}]
  %s5 = inlined_call_operand.vmem [shape: f32[12,8], index: 5, kind: input, shape index: {}]
  %s6 = inlined_call_operand.vmem [shape: f32[2,32,32], index: 6, kind: input, shape index: {}]
  %s7 = inlined_call_operand.vmem [shape: f32[6,32], index: 7, kind: input, shape index: {}]
  %s8 = inlined_call_operand.hbm [shape: f32[2,8,32], index: 8, kind: output, shape index: {}]
  %s9 = sld [smem:[#allocation0]]
  $region42: #{domain_attention.1} parent=0
    _
  %s11 = ssub.s32 1, %s9
  %s12 = scalar_select 0, %s11, %s9
  $region1: #{domain_attention.1} parent=0
    #allocation2 [shape = 'u8[8192]{0}', space=vmem, size = 0x2000, scoped, tag = 'output window, operand 0, single buffered']
    #allocation3 [shape = 's32[1]{0}', space=sflag, size = 0x4, scoped, tag = 'scoped memory for domain_attention.1']
    %13 = vsyncpa [#allocation3], 0
    // Predicated region
    $region2: #{domain_attention.1} parent=1 // pred_check
      _
    $region3: #{domain_attention.1} parent=1 // pred_check_branch
      %15 = sbr.rel (0) target = $region5
    $region4: #{domain_attention.1} parent=1 // pred_region
      _
    $region5: #{domain_attention.1} parent=1 // pred_fallthru
      _
    // Predicated region
    $region6: #{domain_attention.1} parent=1 // pred_check
      _
    $region7: #{domain_attention.1} parent=1 // pred_check_branch
      %17 = sbr.rel (0) target = $region9
    $region8: #{domain_attention.1} parent=1 // pred_region
      _
    $region9: #{domain_attention.1} parent=1 // pred_fallthru
      _
    // Predicated region
    $region10: #{domain_attention.1} parent=1 // pred_check
      _
    $region11: #{domain_attention.1} parent=1 // pred_check_branch
      %19 = sbr.rel (0) target = $region13
    $region12: #{domain_attention.1} parent=1 // pred_region
      _
    $region13: #{domain_attention.1} parent=1 // pred_fallthru
      _
    // Predicated region
    $region14: #{domain_attention.1} parent=1 // pred_check
      _
    $region15: #{domain_attention.1} parent=1 // pred_check_branch
      %21 = sbr.rel (0) target = $region17
    $region16: #{domain_attention.1} parent=1 // pred_region
      _
    $region17: #{domain_attention.1} parent=1 // pred_fallthru
      _
    // Predicated region
    $region18: #{domain_attention.1} parent=1 // pred_check
      _
    $region19: #{domain_attention.1} parent=1 // pred_check_branch
      %23 = sbr.rel (0) target = $region21
    $region20: #{domain_attention.1} parent=1 // pred_region
      _
    $region21: #{domain_attention.1} parent=1 // pred_fallthru
      _
    // Predicated region
    $region22: #{domain_attention.1} parent=1 // pred_check
      _
    $region23: #{domain_attention.1} parent=1 // pred_check_branch
      %25 = sbr.rel (0) target = $region25
    $region24: #{domain_attention.1} parent=1 // pred_region
      _
    $region25: #{domain_attention.1} parent=1 // pred_fallthru
      _
    // Predicated region
    $region26: #{domain_attention.1} parent=1 // pred_check
      _
    $region27: #{domain_attention.1} parent=1 // pred_check_branch
      %27 = sbr.rel (0) target = $region29
    $region28: #{domain_attention.1} parent=1 // pred_region
      _
    $region29: #{domain_attention.1} parent=1 // pred_fallthru
      _
    // Predicated region
    $region30: #{domain_attention.1} parent=1 // pred_check
      _
    $region31: #{domain_attention.1} parent=1 // pred_check_branch
      %29 = sbr.rel (0) target = $region33
    $region32: #{domain_attention.1} parent=1 // pred_region
      _
    $region33: #{domain_attention.1} parent=1 // pred_fallthru
      _
    %v30 = vld [vmem:[%s0] sm:$0xff]
    %v31 = vld [vmem:[%s0 + $0x8] sm:$0xff]
    %v32 = vld [vmem:[%s1] sm:$0xff]
    %v33 = vld [vmem:[%s1 + $0x8] sm:$0xff]
    %v34 = vld [vmem:[%s1 + $0x10] sm:$0xff]
    %v35 = vld [vmem:[%s1 + $0x18] sm:$0xff]
    %v36 = vld [vmem:[%s2] sm:$0xff]
    %v37 = vld [vmem:[%s2 + $0x8] sm:$0xff]
    %v38 = vld [vmem:[%s2 + $0x10] sm:$0xff]
    %v39 = vld [vmem:[%s2 + $0x18] sm:$0xff]
    %v40 = vadd.f32 %v32, %v36
    %v41 = vadd.f32 %v33, %v37
    %v42 = vadd.f32 %v34, %v38
    %v43 = vadd.f32 %v35, %v39
    %v44 = vld [vmem:[%s5] sm:$0xff]
    %v45 = vld [vmem:[%s5 + $0x8] sm:$0xf]
    %v46 = vld [vmem:[%s7] sm:$0x3f]
    %v47 = vld [vmem:[%s4] sm:$0xff]
    %v48 = vld [vmem:[%s4 + $0x8] sm:$0xff]
    %v49 = vld [vmem:[%s4 + $0x10] sm:$0xff]
    %v50 = vld [vmem:[%s4 + $0x18] sm:$0xff]
    %v51 = vlaneseq
    %v52 = vshrl.u32 %v51, 7
    %v53 = vsub.s32 0, %v52
    %v54 = vrot.slane %v44, %v53
    %vm55 = vcmask 261120
    %v57 = vsel %vm55, %v30, 0
    %v60 = vsel %vm55, %v31, 0
    %62 = vmatprep.subr.mxu0 0.0
    %63 = vmatpush1.msra.mxu0 %v47
    %64 = vmatprep.subr.mxu0 0.0
    %65 = vmatpush1.msra.mxu0 %v48
    %66 = vmatprep.subr.mxu0 0.0
    %67 = vmatpush1.msra.mxu0 %v49
    %68 = vmatprep.subr.mxu0 0.0
    %69 = vmatpush1.msra.mxu0 %v50
    %70 = vmatprep.subr.mxu0 0.0
    %71 = vmatpush1.msra.mxu0 0.0
    %72 = vmatprep.subr.mxu0 0.0
    %73 = vmatpush1.msra.mxu0 0.0
    %74 = vmatprep.subr.mxu0 0.0
    %75 = vmatpush1.msra.mxu0 0.0
    %76 = vmatprep.subr.mxu0 0.0
    %77 = vmatpush1.msra.mxu0 0.0
    %78 = vmatprep.subr.mxu0 0.0
    %79 = vmatpush1.msra.mxu0 0.0
    %80 = vmatprep.subr.mxu0 0.0
    %81 = vmatpush1.msra.mxu0 0.0
    %82 = vmatprep.subr.mxu0 0.0
    %83 = vmatpush1.msra.mxu0 0.0
    %84 = vmatprep.subr.mxu0 0.0
    %85 = vmatpush1.msra.mxu0 0.0
    %86 = vmatprep.subr.mxu0 0.0
    %87 = vmatpush1.msra.mxu0 0.0
    %88 = vmatprep.subr.mxu0 0.0
    %89 = vmatpush1.msra.mxu0 0.0
    %90 = vmatprep.subr.mxu0 0.0
    %91 = vmatpush1.msra.mxu0 0.0
    %92 = vmatprep.subr.mxu0 0.0
    %93 = vmatpush1.msra.mxu0 0.0
    %94 = vmatprep.subr.mxu0 0.0
    %95 = vmatpush1.msra.mxu0 0.0
    %96 = vmatprep.subr.mxu0 0.0
    %97 = vmatpush1.msra.mxu0 0.0
    %98 = vmatprep.subr.mxu0 0.0
    %99 = vmatpush1.msra.mxu0 0.0
    %100 = vmatprep.subr.mxu0 0.0
    %101 = vmatpush1.msra.mxu0 0.0
    %102 = vmatprep.subr.mxu0 0.0
    %103 = vmatpush1.msra.mxu0 0.0
    %104 = vmatprep.subr.mxu0 0.0
    %105 = vmatpush1.msra.mxu0 0.0
    %106 = vmatprep.subr.mxu0 0.0
    %107 = vmatpush1.msra.mxu0 0.0
    %108 = vmatprep.subr.mxu0 0.0
    %109 = vmatpush1.msra.mxu0 0.0
    %110 = vmatprep.subr.mxu0 0.0
    %111 = vmatpush1.msra.mxu0 0.0
    %112 = vmatprep.subr.mxu0 0.0
    %113 = vmatpush1.msra.mxu0 0.0
    %114 = vmatprep.subr.mxu0 0.0
    %115 = vmatpush1.msra.mxu0 0.0
    %116 = vmatprep.subr.mxu0 0.0
    %117 = vmatpush1.msra.mxu0 0.0
    %118 = vmatprep.subr.mxu0 0.0
    %119 = vmatpush1.msra.mxu0 0.0
    %120 = vmatprep.subr.mxu0 0.0
    %121 = vmatpush1.msra.mxu0 0.0
    %122 = vmatprep.subr.mxu0 0.0
    %123 = vmatpush1.msra.mxu0 0.0
    %124 = vmatprep.subr.mxu0 0.0
    %125 = vmatpush1.msra.mxu0 0.0
    %126 = vmatprep.mubr.f32.mxu0 0.0
    %127 = vmatmul.mubr.f32.gmra.mrb[0].mxu0 %v57
    %v128 = vpop.f32.mrb[0].mxu0
    %v129 = vadd.f32 %v54, %v128
    %v130 = vpop.f32.mrb[0].mxu0
    %131 = vmatprep.mubr.f32.mxu0 0.0
    %132 = vmatmul.mubr.f32.gmra.mrb[0].mxu0 %v60
    %v133 = vpop.f32.mrb[0].mxu0
    %v134 = vadd.f32 %v54, %v133
    %v135 = vpop.f32.mrb[0].mxu0
    %136 = vdwg.mxu0
    %s137 = scalar_lea.vmem %s4, 128
    %v138 = vld [vmem:[%s137] sm:$0xff]
    %v139 = vld [vmem:[%s137 + $0x8] sm:$0xff]
    %v140 = vld [vmem:[%s137 + $0x10] sm:$0xff]
    %v141 = vld [vmem:[%s137 + $0x18] sm:$0xff]
    %v142 = vlaneseq
    %v143 = vshrl.u32 %v142, 7
    %v144 = vsub.s32 4, %v143
    %v145 = vrot.slane %v44, %v144
    %v147 = vsel %vm55, %v40, 0
    %v150 = vsel %vm55, %v41, 0
    %v153 = vsel %vm55, %v42, 0
    %v156 = vsel %vm55, %v43, 0
    %158 = vmatprep.subr.mxu0 0.0
    %159 = vmatpush1.msra.mxu0 %v138
    %160 = vmatprep.subr.mxu0 0.0
    %161 = vmatpush1.msra.mxu0 %v139
    %162 = vmatprep.subr.mxu0 0.0
    %163 = vmatpush1.msra.mxu0 %v140
    %164 = vmatprep.subr.mxu0 0.0
    %165 = vmatpush1.msra.mxu0 %v141
    %166 = vmatprep.subr.mxu0 0.0
    %167 = vmatpush1.msra.mxu0 0.0
    %168 = vmatprep.subr.mxu0 0.0
    %169 = vmatpush1.msra.mxu0 0.0
    %170 = vmatprep.subr.mxu0 0.0
    %171 = vmatpush1.msra.mxu0 0.0
    %172 = vmatprep.subr.mxu0 0.0
    %173 = vmatpush1.msra.mxu0 0.0
    %174 = vmatprep.subr.mxu0 0.0
    %175 = vmatpush1.msra.mxu0 0.0
    %176 = vmatprep.subr.mxu0 0.0
    %177 = vmatpush1.msra.mxu0 0.0
    %178 = vmatprep.subr.mxu0 0.0
    %179 = vmatpush1.msra.mxu0 0.0
    %180 = vmatprep.subr.mxu0 0.0
    %181 = vmatpush1.msra.mxu0 0.0
    %182 = vmatprep.subr.mxu0 0.0
    %183 = vmatpush1.msra.mxu0 0.0
    %184 = vmatprep.subr.mxu0 0.0
    %185 = vmatpush1.msra.mxu0 0.0
    %186 = vmatprep.subr.mxu0 0.0
    %187 = vmatpush1.msra.mxu0 0.0
    %188 = vmatprep.subr.mxu0 0.0
    %189 = vmatpush1.msra.mxu0 0.0
    %190 = vmatprep.subr.mxu0 0.0
    %191 = vmatpush1.msra.mxu0 0.0
    %192 = vmatprep.subr.mxu0 0.0
    %193 = vmatpush1.msra.mxu0 0.0
    %194 = vmatprep.subr.mxu0 0.0
    %195 = vmatpush1.msra.mxu0 0.0
    %196 = vmatprep.subr.mxu0 0.0
    %197 = vmatpush1.msra.mxu0 0.0
    %198 = vmatprep.subr.mxu0 0.0
    %199 = vmatpush1.msra.mxu0 0.0
    %200 = vmatprep.subr.mxu0 0.0
    %201 = vmatpush1.msra.mxu0 0.0
    %202 = vmatprep.subr.mxu0 0.0
    %203 = vmatpush1.msra.mxu0 0.0
    %204 = vmatprep.subr.mxu0 0.0
    %205 = vmatpush1.msra.mxu0 0.0
    %206 = vmatprep.subr.mxu0 0.0
    %207 = vmatpush1.msra.mxu0 0.0
    %208 = vmatprep.subr.mxu0 0.0
    %209 = vmatpush1.msra.mxu0 0.0
    %210 = vmatprep.subr.mxu0 0.0
    %211 = vmatpush1.msra.mxu0 0.0
    %212 = vmatprep.subr.mxu0 0.0
    %213 = vmatpush1.msra.mxu0 0.0
    %214 = vmatprep.subr.mxu0 0.0
    %215 = vmatpush1.msra.mxu0 0.0
    %216 = vmatprep.subr.mxu0 0.0
    %217 = vmatpush1.msra.mxu0 0.0
    %218 = vmatprep.subr.mxu0 0.0
    %219 = vmatpush1.msra.mxu0 0.0
    %220 = vmatprep.subr.mxu0 0.0
    %221 = vmatpush1.msra.mxu0 0.0
    %222 = vmatprep.mubr.f32.mxu0 0.0
    %223 = vmatmul.mubr.f32.gmra.mrb[0].mxu0 %v147
    %v224 = vpop.f32.mrb[0].mxu0
    %v225 = vadd.f32 %v145, %v224
    %v226 = vpop.f32.mrb[0].mxu0
    %227 = vmatprep.mubr.f32.mxu0 0.0
    %228 = vmatmul.mubr.f32.gmra.mrb[0].mxu0 %v150
    %v229 = vpop.f32.mrb[0].mxu0
    %v230 = vadd.f32 %v145, %v229
    %v231 = vpop.f32.mrb[0].mxu0
    %232 = vmatprep.mubr.f32.mxu0 0.0
    %233 = vmatmul.mubr.f32.gmra.mrb[0].mxu0 %v153
    %v234 = vpop.f32.mrb[0].mxu0
    %v235 = vadd.f32 %v145, %v234
    %v236 = vpop.f32.mrb[0].mxu0
    %237 = vmatprep.mubr.f32.mxu0 0.0
    %238 = vmatmul.mubr.f32.gmra.mrb[0].mxu0 %v156
    %v239 = vpop.f32.mrb[0].mxu0
    %v240 = vadd.f32 %v145, %v239
    %v241 = vpop.f32.mrb[0].mxu0
    %242 = vdwg.mxu0
    %s243 = scalar_lea.vmem %s4, 256
    %v244 = vld [vmem:[%s243] sm:$0xff]
    %v245 = vld [vmem:[%s243 + $0x8] sm:$0xff]
    %v246 = vld [vmem:[%s243 + $0x10] sm:$0xff]
    %v247 = vld [vmem:[%s243 + $0x18] sm:$0xff]
    %v248 = vlaneseq
    %v249 = vshrl.u32 %v248, 7
    %v250 = vsub.s32 0, %v249
    %v251 = vrot.slane %v45, %v250
    %v253 = vsel %vm55, %v32, 0
    %v256 = vsel %vm55, %v33, 0
    %v259 = vsel %vm55, %v34, 0
    %v262 = vsel %vm55, %v35, 0
    %264 = vmatprep.subr.mxu0 0.0
    %265 = vmatpush1.msra.mxu0 %v244
    %266 = vmatprep.subr.mxu0 0.0
    %267 = vmatpush1.msra.mxu0 %v245
    %268 = vmatprep.subr.mxu0 0.0
    %269 = vmatpush1.msra.mxu0 %v246
    %270 = vmatprep.subr.mxu0 0.0
    %271 = vmatpush1.msra.mxu0 %v247
    %272 = vmatprep.subr.mxu0 0.0
    %273 = vmatpush1.msra.mxu0 0.0
    %274 = vmatprep.subr.mxu0 0.0
    %275 = vmatpush1.msra.mxu0 0.0
    %276 = vmatprep.subr.mxu0 0.0
    %277 = vmatpush1.msra.mxu0 0.0
    %278 = vmatprep.subr.mxu0 0.0
    %279 = vmatpush1.msra.mxu0 0.0
    %280 = vmatprep.subr.mxu0 0.0
    %281 = vmatpush1.msra.mxu0 0.0
    %282 = vmatprep.subr.mxu0 0.0
    %283 = vmatpush1.msra.mxu0 0.0
    %284 = vmatprep.subr.mxu0 0.0
    %285 = vmatpush1.msra.mxu0 0.0
    %286 = vmatprep.subr.mxu0 0.0
    %287 = vmatpush1.msra.mxu0 0.0
    %288 = vmatprep.subr.mxu0 0.0
    %289 = vmatpush1.msra.mxu0 0.0
    %290 = vmatprep.subr.mxu0 0.0
    %291 = vmatpush1.msra.mxu0 0.0
    %292 = vmatprep.subr.mxu0 0.0
    %293 = vmatpush1.msra.mxu0 0.0
    %294 = vmatprep.subr.mxu0 0.0
    %295 = vmatpush1.msra.mxu0 0.0
    %296 = vmatprep.subr.mxu0 0.0
    %297 = vmatpush1.msra.mxu0 0.0
    %298 = vmatprep.subr.mxu0 0.0
    %299 = vmatpush1.msra.mxu0 0.0
    %300 = vmatprep.subr.mxu0 0.0
    %301 = vmatpush1.msra.mxu0 0.0
    %302 = vmatprep.subr.mxu0 0.0
    %303 = vmatpush1.msra.mxu0 0.0
    %304 = vmatprep.subr.mxu0 0.0
    %305 = vmatpush1.msra.mxu0 0.0
    %306 = vmatprep.subr.mxu0 0.0
    %307 = vmatpush1.msra.mxu0 0.0
    %308 = vmatprep.subr.mxu0 0.0
    %309 = vmatpush1.msra.mxu0 0.0
    %310 = vmatprep.subr.mxu0 0.0
    %311 = vmatpush1.msra.mxu0 0.0
    %312 = vmatprep.subr.mxu0 0.0
    %313 = vmatpush1.msra.mxu0 0.0
    %314 = vmatprep.subr.mxu0 0.0
    %315 = vmatpush1.msra.mxu0 0.0
    %316 = vmatprep.subr.mxu0 0.0
    %317 = vmatpush1.msra.mxu0 0.0
    %318 = vmatprep.subr.mxu0 0.0
    %319 = vmatpush1.msra.mxu0 0.0
    %320 = vmatprep.subr.mxu0 0.0
    %321 = vmatpush1.msra.mxu0 0.0
    %322 = vmatprep.subr.mxu0 0.0
    %323 = vmatpush1.msra.mxu0 0.0
    %324 = vmatprep.subr.mxu0 0.0
    %325 = vmatpush1.msra.mxu0 0.0
    %326 = vmatprep.subr.mxu0 0.0
    %327 = vmatpush1.msra.mxu0 0.0
    %328 = vmatprep.mubr.f32.mxu0 0.0
    %329 = vmatmul.mubr.f32.gmra.mrb[0].mxu0 %v253
    %v330 = vpop.f32.mrb[0].mxu0
    %v331 = vadd.f32 %v251, %v330
    %v332 = vpop.f32.mrb[0].mxu0
    %333 = vmatprep.mubr.f32.mxu0 0.0
    %334 = vmatmul.mubr.f32.gmra.mrb[0].mxu0 %v256
    %v335 = vpop.f32.mrb[0].mxu0
    %v336 = vadd.f32 %v251, %v335
    %v337 = vpop.f32.mrb[0].mxu0
    %338 = vmatprep.mubr.f32.mxu0 0.0
    %339 = vmatmul.mubr.f32.gmra.mrb[0].mxu0 %v259
    %v340 = vpop.f32.mrb[0].mxu0
    %v341 = vadd.f32 %v251, %v340
    %v342 = vpop.f32.mrb[0].mxu0
    %343 = vmatprep.mubr.f32.mxu0 0.0
    %344 = vmatmul.mubr.f32.gmra.mrb[0].mxu0 %v262
    %v345 = vpop.f32.mrb[0].mxu0
    %v346 = vadd.f32 %v251, %v345
    %v347 = vpop.f32.mrb[0].mxu0
    %348 = vdwg.mxu0
    %s349 = scalar_lea.vmem %s4, 32
    %v350 = vld [vmem:[%s349] sm:$0xff]
    %v351 = vld [vmem:[%s349 + $0x8] sm:$0xff]
    %v352 = vld [vmem:[%s349 + $0x10] sm:$0xff]
    %v353 = vld [vmem:[%s349 + $0x18] sm:$0xff]
    %v354 = vlaneseq
    %v355 = vshrl.u32 %v354, 7
    %v356 = vsub.s32 1, %v355
    %v357 = vrot.slane %v44, %v356
    %358 = vmatprep.subr.mxu0 0.0
    %359 = vmatpush1.msra.mxu0 %v350
    %360 = vmatprep.subr.mxu0 0.0
    %361 = vmatpush1.msra.mxu0 %v351
    %362 = vmatprep.subr.mxu0 0.0
    %363 = vmatpush1.msra.mxu0 %v352
    %364 = vmatprep.subr.mxu0 0.0
    %365 = vmatpush1.msra.mxu0 %v353
    %366 = vmatprep.subr.mxu0 0.0
    %367 = vmatpush1.msra.mxu0 0.0
    %368 = vmatprep.subr.mxu0 0.0
    %369 = vmatpush1.msra.mxu0 0.0
    %370 = vmatprep.subr.mxu0 0.0
    %371 = vmatpush1.msra.mxu0 0.0
    %372 = vmatprep.subr.mxu0 0.0
    %373 = vmatpush1.msra.mxu0 0.0
    %374 = vmatprep.subr.mxu0 0.0
    %375 = vmatpush1.msra.mxu0 0.0
    %376 = vmatprep.subr.mxu0 0.0
    %377 = vmatpush1.msra.mxu0 0.0
    %378 = vmatprep.subr.mxu0 0.0
    %379 = vmatpush1.msra.mxu0 0.0
    %380 = vmatprep.subr.mxu0 0.0
    %381 = vmatpush1.msra.mxu0 0.0
    %382 = vmatprep.subr.mxu0 0.0
    %383 = vmatpush1.msra.mxu0 0.0
    %384 = vmatprep.subr.mxu0 0.0
    %385 = vmatpush1.msra.mxu0 0.0
    %386 = vmatprep.subr.mxu0 0.0
    %387 = vmatpush1.msra.mxu0 0.0
    %388 = vmatprep.subr.mxu0 0.0
    %389 = vmatpush1.msra.mxu0 0.0
    %390 = vmatprep.subr.mxu0 0.0
    %391 = vmatpush1.msra.mxu0 0.0
    %392 = vmatprep.subr.mxu0 0.0
    %393 = vmatpush1.msra.mxu0 0.0
    %394 = vmatprep.subr.mxu0 0.0
    %395 = vmatpush1.msra.mxu0 0.0
    %396 = vmatprep.subr.mxu0 0.0
    %397 = vmatpush1.msra.mxu0 0.0
    %398 = vmatprep.subr.mxu0 0.0
    %399 = vmatpush1.msra.mxu0 0.0
    %400 = vmatprep.subr.mxu0 0.0
    %401 = vmatpush1.msra.mxu0 0.0
    %402 = vmatprep.subr.mxu0 0.0
    %403 = vmatpush1.msra.mxu0 0.0
    %404 = vmatprep.subr.mxu0 0.0
    %405 = vmatpush1.msra.mxu0 0.0
    %406 = vmatprep.subr.mxu0 0.0
    %407 = vmatpush1.msra.mxu0 0.0
    %408 = vmatprep.subr.mxu0 0.0
    %409 = vmatpush1.msra.mxu0 0.0
    %410 = vmatprep.subr.mxu0 0.0
    %411 = vmatpush1.msra.mxu0 0.0
    %412 = vmatprep.subr.mxu0 0.0
    %413 = vmatpush1.msra.mxu0 0.0
    %414 = vmatprep.subr.mxu0 0.0
    %415 = vmatpush1.msra.mxu0 0.0
    %416 = vmatprep.subr.mxu0 0.0
    %417 = vmatpush1.msra.mxu0 0.0
    %418 = vmatprep.subr.mxu0 0.0
    %419 = vmatpush1.msra.mxu0 0.0
    %420 = vmatprep.subr.mxu0 0.0
    %421 = vmatpush1.msra.mxu0 0.0
    %422 = vmatprep.mubr.f32.mxu0 0.0
    %423 = vmatmul.mubr.f32.gmra.mrb[0].mxu0 %v57
    %v424 = vpop.f32.mrb[0].mxu0
    %v425 = vadd.f32 %v357, %v424
    %v426 = vpop.f32.mrb[0].mxu0
    %427 = vmatprep.mubr.f32.mxu0 0.0
    %428 = vmatmul.mubr.f32.gmra.mrb[0].mxu0 %v60
    %v429 = vpop.f32.mrb[0].mxu0
    %v430 = vadd.f32 %v357, %v429
    %v431 = vpop.f32.mrb[0].mxu0
    %432 = vdwg.mxu0
    %s433 = scalar_lea.vmem %s4, 160
    %v434 = vld [vmem:[%s433] sm:$0xff]
    %v435 = vld [vmem:[%s433 + $0x8] sm:$0xff]
    %v436 = vld [vmem:[%s433 + $0x10] sm:$0xff]
    %v437 = vld [vmem:[%s433 + $0x18] sm:$0xff]
    %v438 = vlaneseq
    %v439 = vshrl.u32 %v438, 7
    %v440 = vsub.s32 5, %v439
    %v441 = vrot.slane %v44, %v440
    %442 = vmatprep.subr.mxu0 0.0
    %443 = vmatpush1.msra.mxu0 %v434
    %444 = vmatprep.subr.mxu0 0.0
    %445 = vmatpush1.msra.mxu0 %v435
    %446 = vmatprep.subr.mxu0 0.0
    %447 = vmatpush1.msra.mxu0 %v436
    %448 = vmatprep.subr.mxu0 0.0
    %449 = vmatpush1.msra.mxu0 %v437
    %450 = vmatprep.subr.mxu0 0.0
    %451 = vmatpush1.msra.mxu0 0.0
    %452 = vmatprep.subr.mxu0 0.0
    %453 = vmatpush1.msra.mxu0 0.0
    %454 = vmatprep.subr.mxu0 0.0
    %455 = vmatpush1.msra.mxu0 0.0
    %456 = vmatprep.subr.mxu0 0.0
    %457 = vmatpush1.msra.mxu0 0.0
    %458 = vmatprep.subr.mxu0 0.0
    %459 = vmatpush1.msra.mxu0 0.0
    %460 = vmatprep.subr.mxu0 0.0
    %461 = vmatpush1.msra.mxu0 0.0
    %462 = vmatprep.subr.mxu0 0.0
    %463 = vmatpush1.msra.mxu0 0.0
    %464 = vmatprep.subr.mxu0 0.0
    %465 = vmatpush1.msra.mxu0 0.0
    %466 = vmatprep.subr.mxu0 0.0
    %467 = vmatpush1.msra.mxu0 0.0
    %468 = vmatprep.subr.mxu0 0.0
    %469 = vmatpush1.msra.mxu0 0.0
    %470 = vmatprep.subr.mxu0 0.0
    %471 = vmatpush1.msra.mxu0 0.0
    %472 = vmatprep.subr.mxu0 0.0
    %473 = vmatpush1.msra.mxu0 0.0
    %474 = vmatprep.subr.mxu0 0.0
    %475 = vmatpush1.msra.mxu0 0.0
    %476 = vmatprep.subr.mxu0 0.0
    %477 = vmatpush1.msra.mxu0 0.0
    %478 = vmatprep.subr.mxu0 0.0
    %479 = vmatpush1.msra.mxu0 0.0
    %480 = vmatprep.subr.mxu0 0.0
    %481 = vmatpush1.msra.mxu0 0.0
    %482 = vmatprep.subr.mxu0 0.0
    %483 = vmatpush1.msra.mxu0 0.0
    %484 = vmatprep.subr.mxu0 0.0
    %485 = vmatpush1.msra.mxu0 0.0
    %486 = vmatprep.subr.mxu0 0.0
    %487 = vmatpush1.msra.mxu0 0.0
    %488 = vmatprep.subr.mxu0 0.0
    %489 = vmatpush1.msra.mxu0 0.0
    %490 = vmatprep.subr.mxu0 0.0
    %491 = vmatpush1.msra.mxu0 0.0
    %492 = vmatprep.subr.mxu0 0.0
    %493 = vmatpush1.msra.mxu0 0.0
    %494 = vmatprep.subr.mxu0 0.0
    %495 = vmatpush1.msra.mxu0 0.0
    %496 = vmatprep.subr.mxu0 0.0
    %497 = vmatpush1.msra.mxu0 0.0
    %498 = vmatprep.subr.mxu0 0.0
    %499 = vmatpush1.msra.mxu0 0.0
    %500 = vmatprep.subr.mxu0 0.0
    %501 = vmatpush1.msra.mxu0 0.0
    %502 = vmatprep.subr.mxu0 0.0
    %503 = vmatpush1.msra.mxu0 0.0
    %504 = vmatprep.subr.mxu0 0.0
    %505 = vmatpush1.msra.mxu0 0.0
    %506 = vmatprep.mubr.f32.mxu0 0.0
    %507 = vmatmul.mubr.f32.gmra.mrb[0].mxu0 %v147
    %v508 = vpop.f32.mrb[0].mxu0
    %v509 = vadd.f32 %v441, %v508
    %v510 = vpop.f32.mrb[0].mxu0
    %511 = vmatprep.mubr.f32.mxu0 0.0
    %512 = vmatmul.mubr.f32.gmra.mrb[0].mxu0 %v150
    %v513 = vpop.f32.mrb[0].mxu0
    %v514 = vadd.f32 %v441, %v513
    %v515 = vpop.f32.mrb[0].mxu0
    %516 = vmatprep.mubr.f32.mxu0 0.0
    %517 = vmatmul.mubr.f32.gmra.mrb[0].mxu0 %v153
    %v518 = vpop.f32.mrb[0].mxu0
    %v519 = vadd.f32 %v441, %v518
    %v520 = vpop.f32.mrb[0].mxu0
    %521 = vmatprep.mubr.f32.mxu0 0.0
    %522 = vmatmul.mubr.f32.gmra.mrb[0].mxu0 %v156
    %v523 = vpop.f32.mrb[0].mxu0
    %v524 = vadd.f32 %v441, %v523
    %v525 = vpop.f32.mrb[0].mxu0
    %526 = vdwg.mxu0
    %s527 = scalar_lea.vmem %s4, 288
    %v528 = vld [vmem:[%s527] sm:$0xff]
    %v529 = vld [vmem:[%s527 + $0x8] sm:$0xff]
    %v530 = vld [vmem:[%s527 + $0x10] sm:$0xff]
    %v531 = vld [vmem:[%s527 + $0x18] sm:$0xff]
    %v532 = vlaneseq
    %v533 = vshrl.u32 %v532, 7
    %v534 = vsub.s32 1, %v533
    %v535 = vrot.slane %v45, %v534
    %536 = vmatprep.subr.mxu0 0.0
    %537 = vmatpush1.msra.mxu0 %v528
    %538 = vmatprep.subr.mxu0 0.0
    %539 = vmatpush1.msra.mxu0 %v529
    %540 = vmatprep.subr.mxu0 0.0
    %541 = vmatpush1.msra.mxu0 %v530
    %542 = vmatprep.subr.mxu0 0.0
    %543 = vmatpush1.msra.mxu0 %v531
    %544 = vmatprep.subr.mxu0 0.0
    %545 = vmatpush1.msra.mxu0 0.0
    %546 = vmatprep.subr.mxu0 0.0
    %547 = vmatpush1.msra.mxu0 0.0
    %548 = vmatprep.subr.mxu0 0.0
    %549 = vmatpush1.msra.mxu0 0.0
    %550 = vmatprep.subr.mxu0 0.0
    %551 = vmatpush1.msra.mxu0 0.0
    %552 = vmatprep.subr.mxu0 0.0
    %553 = vmatpush1.msra.mxu0 0.0
    %554 = vmatprep.subr.mxu0 0.0
    %555 = vmatpush1.msra.mxu0 0.0
    %556 = vmatprep.subr.mxu0 0.0
    %557 = vmatpush1.msra.mxu0 0.0
    %558 = vmatprep.subr.mxu0 0.0
    %559 = vmatpush1.msra.mxu0 0.0
    %560 = vmatprep.subr.mxu0 0.0
    %561 = vmatpush1.msra.mxu0 0.0
    %562 = vmatprep.subr.mxu0 0.0
    %563 = vmatpush1.msra.mxu0 0.0
    %564 = vmatprep.subr.mxu0 0.0
    %565 = vmatpush1.msra.mxu0 0.0
    %566 = vmatprep.subr.mxu0 0.0
    %567 = vmatpush1.msra.mxu0 0.0
    %568 = vmatprep.subr.mxu0 0.0
    %569 = vmatpush1.msra.mxu0 0.0
    %570 = vmatprep.subr.mxu0 0.0
    %571 = vmatpush1.msra.mxu0 0.0
    %572 = vmatprep.subr.mxu0 0.0
    %573 = vmatpush1.msra.mxu0 0.0
    %574 = vmatprep.subr.mxu0 0.0
    %575 = vmatpush1.msra.mxu0 0.0
    %576 = vmatprep.subr.mxu0 0.0
    %577 = vmatpush1.msra.mxu0 0.0
    %578 = vmatprep.subr.mxu0 0.0
    %579 = vmatpush1.msra.mxu0 0.0
    %580 = vmatprep.subr.mxu0 0.0
    %581 = vmatpush1.msra.mxu0 0.0
    %582 = vmatprep.subr.mxu0 0.0
    %583 = vmatpush1.msra.mxu0 0.0
    %584 = vmatprep.subr.mxu0 0.0
    %585 = vmatpush1.msra.mxu0 0.0
    %586 = vmatprep.subr.mxu0 0.0
    %587 = vmatpush1.msra.mxu0 0.0
    %588 = vmatprep.subr.mxu0 0.0
    %589 = vmatpush1.msra.mxu0 0.0
    %590 = vmatprep.subr.mxu0 0.0
    %591 = vmatpush1.msra.mxu0 0.0
    %592 = vmatprep.subr.mxu0 0.0
    %593 = vmatpush1.msra.mxu0 0.0
    %594 = vmatprep.subr.mxu0 0.0
    %595 = vmatpush1.msra.mxu0 0.0
    %596 = vmatprep.subr.mxu0 0.0
    %597 = vmatpush1.msra.mxu0 0.0
    %598 = vmatprep.subr.mxu0 0.0
    %599 = vmatpush1.msra.mxu0 0.0
    %600 = vmatprep.mubr.f32.mxu0 0.0
    %601 = vmatmul.mubr.f32.gmra.mrb[0].mxu0 %v253
    %v602 = vpop.f32.mrb[0].mxu0
    %v603 = vadd.f32 %v535, %v602
    %v604 = vpop.f32.mrb[0].mxu0
    %605 = vmatprep.mubr.f32.mxu0 0.0
    %606 = vmatmul.mubr.f32.gmra.mrb[0].mxu0 %v256
    %v607 = vpop.f32.mrb[0].mxu0
    %v608 = vadd.f32 %v535, %v607
    %v609 = vpop.f32.mrb[0].mxu0
    %610 = vmatprep.mubr.f32.mxu0 0.0
    %611 = vmatmul.mubr.f32.gmra.mrb[0].mxu0 %v259
    %v612 = vpop.f32.mrb[0].mxu0
    %v613 = vadd.f32 %v535, %v612
    %v614 = vpop.f32.mrb[0].mxu0
    %615 = vmatprep.mubr.f32.mxu0 0.0
    %616 = vmatmul.mubr.f32.gmra.mrb[0].mxu0 %v262
    %v617 = vpop.f32.mrb[0].mxu0
    %v618 = vadd.f32 %v535, %v617
    %v619 = vpop.f32.mrb[0].mxu0
    %620 = vdwg.mxu0
    %s621 = scalar_lea.vmem %s4, 64
    %v622 = vld [vmem:[%s621] sm:$0xff]
    %v623 = vld [vmem:[%s621 + $0x8] sm:$0xff]
    %v624 = vld [vmem:[%s621 + $0x10] sm:$0xff]
    %v625 = vld [vmem:[%s621 + $0x18] sm:$0xff]
    %v626 = vlaneseq
    %v627 = vshrl.u32 %v626, 7
    %v628 = vsub.s32 2, %v627
    %v629 = vrot.slane %v44, %v628
    %630 = vmatprep.subr.mxu0 0.0
    %631 = vmatpush1.msra.mxu0 %v622
    %632 = vmatprep.subr.mxu0 0.0
    %633 = vmatpush1.msra.mxu0 %v623
    %634 = vmatprep.subr.mxu0 0.0
    %635 = vmatpush1.msra.mxu0 %v624
    %636 = vmatprep.subr.mxu0 0.0
    %637 = vmatpush1.msra.mxu0 %v625
    %638 = vmatprep.subr.mxu0 0.0
    %639 = vmatpush1.msra.mxu0 0.0
    %640 = vmatprep.subr.mxu0 0.0
    %641 = vmatpush1.msra.mxu0 0.0
    %642 = vmatprep.subr.mxu0 0.0
    %643 = vmatpush1.msra.mxu0 0.0
    %644 = vmatprep.subr.mxu0 0.0
    %645 = vmatpush1.msra.mxu0 0.0
    %646 = vmatprep.subr.mxu0 0.0
    %647 = vmatpush1.msra.mxu0 0.0
    %648 = vmatprep.subr.mxu0 0.0
    %649 = vmatpush1.msra.mxu0 0.0
    %650 = vmatprep.subr.mxu0 0.0
    %651 = vmatpush1.msra.mxu0 0.0
    %652 = vmatprep.subr.mxu0 0.0
    %653 = vmatpush1.msra.mxu0 0.0
    %654 = vmatprep.subr.mxu0 0.0
    %655 = vmatpush1.msra.mxu0 0.0
    %656 = vmatprep.subr.mxu0 0.0
    %657 = vmatpush1.msra.mxu0 0.0
    %658 = vmatprep.subr.mxu0 0.0
    %659 = vmatpush1.msra.mxu0 0.0
    %660 = vmatprep.subr.mxu0 0.0
    %661 = vmatpush1.msra.mxu0 0.0
    %662 = vmatprep.subr.mxu0 0.0
    %663 = vmatpush1.msra.mxu0 0.0
    %664 = vmatprep.subr.mxu0 0.0
    %665 = vmatpush1.msra.mxu0 0.0
    %666 = vmatprep.subr.mxu0 0.0
    %667 = vmatpush1.msra.mxu0 0.0
    %668 = vmatprep.subr.mxu0 0.0
    %669 = vmatpush1.msra.mxu0 0.0
    %670 = vmatprep.subr.mxu0 0.0
    %671 = vmatpush1.msra.mxu0 0.0
    %672 = vmatprep.subr.mxu0 0.0
    %673 = vmatpush1.msra.mxu0 0.0
    %674 = vmatprep.subr.mxu0 0.0
    %675 = vmatpush1.msra.mxu0 0.0
    %676 = vmatprep.subr.mxu0 0.0
    %677 = vmatpush1.msra.mxu0 0.0
    %678 = vmatprep.subr.mxu0 0.0
    %679 = vmatpush1.msra.mxu0 0.0
    %680 = vmatprep.subr.mxu0 0.0
    %681 = vmatpush1.msra.mxu0 0.0
    %682 = vmatprep.subr.mxu0 0.0
    %683 = vmatpush1.msra.mxu0 0.0
    %684 = vmatprep.subr.mxu0 0.0
    %685 = vmatpush1.msra.mxu0 0.0
    %686 = vmatprep.subr.mxu0 0.0
    %687 = vmatpush1.msra.mxu0 0.0
    %688 = vmatprep.subr.mxu0 0.0
    %689 = vmatpush1.msra.mxu0 0.0
    %690 = vmatprep.subr.mxu0 0.0
    %691 = vmatpush1.msra.mxu0 0.0
    %692 = vmatprep.subr.mxu0 0.0
    %693 = vmatpush1.msra.mxu0 0.0
    %694 = vmatprep.mubr.f32.mxu0 0.0
    %695 = vmatmul.mubr.f32.gmra.mrb[0].mxu0 %v57
    %v696 = vpop.f32.mrb[0].mxu0
    %v697 = vadd.f32 %v629, %v696
    %v698 = vpop.f32.mrb[0].mxu0
    %699 = vmatprep.mubr.f32.mxu0 0.0
    %700 = vmatmul.mubr.f32.gmra.mrb[0].mxu0 %v60
    %v701 = vpop.f32.mrb[0].mxu0
    %v702 = vadd.f32 %v629, %v701
    %v703 = vpop.f32.mrb[0].mxu0
    %704 = vdwg.mxu0
    %s705 = scalar_lea.vmem %s4, 192
    %v706 = vld [vmem:[%s705] sm:$0xff]
    %v707 = vld [vmem:[%s705 + $0x8] sm:$0xff]
    %v708 = vld [vmem:[%s705 + $0x10] sm:$0xff]
    %v709 = vld [vmem:[%s705 + $0x18] sm:$0xff]
    %v710 = vlaneseq
    %v711 = vshrl.u32 %v710, 7
    %v712 = vsub.s32 6, %v711
    %v713 = vrot.slane %v44, %v712
    %714 = vmatprep.subr.mxu0 0.0
    %715 = vmatpush1.msra.mxu0 %v706
    %716 = vmatprep.subr.mxu0 0.0
    %717 = vmatpush1.msra.mxu0 %v707
    %718 = vmatprep.subr.mxu0 0.0
    %719 = vmatpush1.msra.mxu0 %v708
    %720 = vmatprep.subr.mxu0 0.0
    %721 = vmatpush1.msra.mxu0 %v709
    %722 = vmatprep.subr.mxu0 0.0
    %723 = vmatpush1.msra.mxu0 0.0
    %724 = vmatprep.subr.mxu0 0.0
    %725 = vmatpush1.msra.mxu0 0.0
    %726 = vmatprep.subr.mxu0 0.0
    %727 = vmatpush1.msra.mxu0 0.0
    %728 = vmatprep.subr.mxu0 0.0
    %729 = vmatpush1.msra.mxu0 0.0
    %730 = vmatprep.subr.mxu0 0.0
    %731 = vmatpush1.msra.mxu0 0.0
    %732 = vmatprep.subr.mxu0 0.0
    %733 = vmatpush1.msra.mxu0 0.0
    %734 = vmatprep.subr.mxu0 0.0
    %735 = vmatpush1.msra.mxu0 0.0
    %736 = vmatprep.subr.mxu0 0.0
    %737 = vmatpush1.msra.mxu0 0.0
    %738 = vmatprep.subr.mxu0 0.0
    %739 = vmatpush1.msra.mxu0 0.0
    %740 = vmatprep.subr.mxu0 0.0
    %741 = vmatpush1.msra.mxu0 0.0
    %742 = vmatprep.subr.mxu0 0.0
    %743 = vmatpush1.msra.mxu0 0.0
    %744 = vmatprep.subr.mxu0 0.0
    %745 = vmatpush1.msra.mxu0 0.0
    %746 = vmatprep.subr.mxu0 0.0
    %747 = vmatpush1.msra.mxu0 0.0
    %748 = vmatprep.subr.mxu0 0.0
    %749 = vmatpush1.msra.mxu0 0.0
    %750 = vmatprep.subr.mxu0 0.0
    %751 = vmatpush1.msra.mxu0 0.0
    %752 = vmatprep.subr.mxu0 0.0
    %753 = vmatpush1.msra.mxu0 0.0
    %754 = vmatprep.subr.mxu0 0.0
    %755 = vmatpush1.msra.mxu0 0.0
    %756 = vmatprep.subr.mxu0 0.0
    %757 = vmatpush1.msra.mxu0 0.0
    %758 = vmatprep.subr.mxu0 0.0
    %759 = vmatpush1.msra.mxu0 0.0
    %760 = vmatprep.subr.mxu0 0.0
    %761 = vmatpush1.msra.mxu0 0.0
    %762 = vmatprep.subr.mxu0 0.0
    %763 = vmatpush1.msra.mxu0 0.0
    %764 = vmatprep.subr.mxu0 0.0
    %765 = vmatpush1.msra.mxu0 0.0
    %766 = vmatprep.subr.mxu0 0.0
    %767 = vmatpush1.msra.mxu0 0.0
    %768 = vmatprep.subr.mxu0 0.0
    %769 = vmatpush1.msra.mxu0 0.0
    %770 = vmatprep.subr.mxu0 0.0
    %771 = vmatpush1.msra.mxu0 0.0
    %772 = vmatprep.subr.mxu0 0.0
    %773 = vmatpush1.msra.mxu0 0.0
    %774 = vmatprep.subr.mxu0 0.0
    %775 = vmatpush1.msra.mxu0 0.0
    %776 = vmatprep.subr.mxu0 0.0
    %777 = vmatpush1.msra.mxu0 0.0
    %778 = vmatprep.mubr.f32.mxu0 0.0
    %779 = vmatmul.mubr.f32.gmra.mrb[0].mxu0 %v147
    %v780 = vpop.f32.mrb[0].mxu0
    %v781 = vadd.f32 %v713, %v780
    %v782 = vpop.f32.mrb[0].mxu0
    %783 = vmatprep.mubr.f32.mxu0 0.0
    %784 = vmatmul.mubr.f32.gmra.mrb[0].mxu0 %v150
    %v785 = vpop.f32.mrb[0].mxu0
    %v786 = vadd.f32 %v713, %v785
    %v787 = vpop.f32.mrb[0].mxu0
    %788 = vmatprep.mubr.f32.mxu0 0.0
    %789 = vmatmul.mubr.f32.gmra.mrb[0].mxu0 %v153
    %v790 = vpop.f32.mrb[0].mxu0
    %v791 = vadd.f32 %v713, %v790
    %v792 = vpop.f32.mrb[0].mxu0
    %793 = vmatprep.mubr.f32.mxu0 0.0
    %794 = vmatmul.mubr.f32.gmra.mrb[0].mxu0 %v156
    %v795 = vpop.f32.mrb[0].mxu0
    %v796 = vadd.f32 %v713, %v795
    %v797 = vpop.f32.mrb[0].mxu0
    %798 = vdwg.mxu0
    %s799 = scalar_lea.vmem %s4, 320
    %v800 = vld [vmem:[%s799] sm:$0xff]
    %v801 = vld [vmem:[%s799 + $0x8] sm:$0xff]
    %v802 = vld [vmem:[%s799 + $0x10] sm:$0xff]
    %v803 = vld [vmem:[%s799 + $0x18] sm:$0xff]
    %v804 = vlaneseq
    %v805 = vshrl.u32 %v804, 7
    %v806 = vsub.s32 2, %v805
    %v807 = vrot.slane %v45, %v806
    %808 = vmatprep.subr.mxu0 0.0
    %809 = vmatpush1.msra.mxu0 %v800
    %810 = vmatprep.subr.mxu0 0.0
    %811 = vmatpush1.msra.mxu0 %v801
    %812 = vmatprep.subr.mxu0 0.0
    %813 = vmatpush1.msra.mxu0 %v802
    %814 = vmatprep.subr.mxu0 0.0
    %815 = vmatpush1.msra.mxu0 %v803
    %816 = vmatprep.subr.mxu0 0.0
    %817 = vmatpush1.msra.mxu0 0.0
    %818 = vmatprep.subr.mxu0 0.0
    %819 = vmatpush1.msra.mxu0 0.0
    %820 = vmatprep.subr.mxu0 0.0
    %821 = vmatpush1.msra.mxu0 0.0
    %822 = vmatprep.subr.mxu0 0.0
    %823 = vmatpush1.msra.mxu0 0.0
    %824 = vmatprep.subr.mxu0 0.0
    %825 = vmatpush1.msra.mxu0 0.0
    %826 = vmatprep.subr.mxu0 0.0
    %827 = vmatpush1.msra.mxu0 0.0
    %828 = vmatprep.subr.mxu0 0.0
    %829 = vmatpush1.msra.mxu0 0.0
    %830 = vmatprep.subr.mxu0 0.0
    %831 = vmatpush1.msra.mxu0 0.0
    %832 = vmatprep.subr.mxu0 0.0
    %833 = vmatpush1.msra.mxu0 0.0
    %834 = vmatprep.subr.mxu0 0.0
    %835 = vmatpush1.msra.mxu0 0.0
    %836 = vmatprep.subr.mxu0 0.0
    %837 = vmatpush1.msra.mxu0 0.0
    %838 = vmatprep.subr.mxu0 0.0
    %839 = vmatpush1.msra.mxu0 0.0
    %840 = vmatprep.subr.mxu0 0.0
    %841 = vmatpush1.msra.mxu0 0.0
    %842 = vmatprep.subr.mxu0 0.0
    %843 = vmatpush1.msra.mxu0 0.0
    %844 = vmatprep.subr.mxu0 0.0
    %845 = vmatpush1.msra.mxu0 0.0
    %846 = vmatprep.subr.mxu0 0.0
    %847 = vmatpush1.msra.mxu0 0.0
    %848 = vmatprep.subr.mxu0 0.0
    %849 = vmatpush1.msra.mxu0 0.0
    %850 = vmatprep.subr.mxu0 0.0
    %851 = vmatpush1.msra.mxu0 0.0
    %852 = vmatprep.subr.mxu0 0.0
    %853 = vmatpush1.msra.mxu0 0.0
    %854 = vmatprep.subr.mxu0 0.0
    %855 = vmatpush1.msra.mxu0 0.0
    %856 = vmatprep.subr.mxu0 0.0
    %857 = vmatpush1.msra.mxu0 0.0
    %858 = vmatprep.subr.mxu0 0.0
    %859 = vmatpush1.msra.mxu0 0.0
    %860 = vmatprep.subr.mxu0 0.0
    %861 = vmatpush1.msra.mxu0 0.0
    %862 = vmatprep.subr.mxu0 0.0
    %863 = vmatpush1.msra.mxu0 0.0
    %864 = vmatprep.subr.mxu0 0.0
    %865 = vmatpush1.msra.mxu0 0.0
    %866 = vmatprep.subr.mxu0 0.0
    %867 = vmatpush1.msra.mxu0 0.0
    %868 = vmatprep.subr.mxu0 0.0
    %869 = vmatpush1.msra.mxu0 0.0
    %870 = vmatprep.subr.mxu0 0.0
    %871 = vmatpush1.msra.mxu0 0.0
    %872 = vmatprep.mubr.f32.mxu0 0.0
    %873 = vmatmul.mubr.f32.gmra.mrb[0].mxu0 %v253
    %v874 = vpop.f32.mrb[0].mxu0
    %v875 = vadd.f32 %v807, %v874
    %v876 = vpop.f32.mrb[0].mxu0
    %877 = vmatprep.mubr.f32.mxu0 0.0
    %878 = vmatmul.mubr.f32.gmra.mrb[0].mxu0 %v256
    %v879 = vpop.f32.mrb[0].mxu0
    %v880 = vadd.f32 %v807, %v879
    %v881 = vpop.f32.mrb[0].mxu0
    %882 = vmatprep.mubr.f32.mxu0 0.0
    %883 = vmatmul.mubr.f32.gmra.mrb[0].mxu0 %v259
    %v884 = vpop.f32.mrb[0].mxu0
    %v885 = vadd.f32 %v807, %v884
    %v886 = vpop.f32.mrb[0].mxu0
    %887 = vmatprep.mubr.f32.mxu0 0.0
    %888 = vmatmul.mubr.f32.gmra.mrb[0].mxu0 %v262
    %v889 = vpop.f32.mrb[0].mxu0
    %v890 = vadd.f32 %v807, %v889
    %v891 = vpop.f32.mrb[0].mxu0
    %892 = vdwg.mxu0
    %s893 = scalar_lea.vmem %s4, 96
    %v894 = vld [vmem:[%s893] sm:$0xff]
    %v895 = vld [vmem:[%s893 + $0x8] sm:$0xff]
    %v896 = vld [vmem:[%s893 + $0x10] sm:$0xff]
    %v897 = vld [vmem:[%s893 + $0x18] sm:$0xff]
    %v898 = vlaneseq
    %v899 = vshrl.u32 %v898, 7
    %v900 = vsub.s32 3, %v899
    %v901 = vrot.slane %v44, %v900
    %902 = vmatprep.subr.mxu0 0.0
    %903 = vmatpush1.msra.mxu0 %v894
    %904 = vmatprep.subr.mxu0 0.0
    %905 = vmatpush1.msra.mxu0 %v895
    %906 = vmatprep.subr.mxu0 0.0
    %907 = vmatpush1.msra.mxu0 %v896
    %908 = vmatprep.subr.mxu0 0.0
    %909 = vmatpush1.msra.mxu0 %v897
    %910 = vmatprep.subr.mxu0 0.0
    %911 = vmatpush1.msra.mxu0 0.0
    %912 = vmatprep.subr.mxu0 0.0
    %913 = vmatpush1.msra.mxu0 0.0
    %914 = vmatprep.subr.mxu0 0.0
    %915 = vmatpush1.msra.mxu0 0.0
    %916 = vmatprep.subr.mxu0 0.0
    %917 = vmatpush1.msra.mxu0 0.0
    %918 = vmatprep.subr.mxu0 0.0
    %919 = vmatpush1.msra.mxu0 0.0
    %920 = vmatprep.subr.mxu0 0.0
    %921 = vmatpush1.msra.mxu0 0.0
    %922 = vmatprep.subr.mxu0 0.0
    %923 = vmatpush1.msra.mxu0 0.0
    %924 = vmatprep.subr.mxu0 0.0
    %925 = vmatpush1.msra.mxu0 0.0
    %926 = vmatprep.subr.mxu0 0.0
    %927 = vmatpush1.msra.mxu0 0.0
    %928 = vmatprep.subr.mxu0 0.0
    %929 = vmatpush1.msra.mxu0 0.0
    %930 = vmatprep.subr.mxu0 0.0
    %931 = vmatpush1.msra.mxu0 0.0
    %932 = vmatprep.subr.mxu0 0.0
    %933 = vmatpush1.msra.mxu0 0.0
    %934 = vmatprep.subr.mxu0 0.0
    %935 = vmatpush1.msra.mxu0 0.0
    %936 = vmatprep.subr.mxu0 0.0
    %937 = vmatpush1.msra.mxu0 0.0
    %938 = vmatprep.subr.mxu0 0.0
    %939 = vmatpush1.msra.mxu0 0.0
    %940 = vmatprep.subr.mxu0 0.0
    %941 = vmatpush1.msra.mxu0 0.0
    %942 = vmatprep.subr.mxu0 0.0
    %943 = vmatpush1.msra.mxu0 0.0
    %944 = vmatprep.subr.mxu0 0.0
    %945 = vmatpush1.msra.mxu0 0.0
    %946 = vmatprep.subr.mxu0 0.0
    %947 = vmatpush1.msra.mxu0 0.0
    %948 = vmatprep.subr.mxu0 0.0
    %949 = vmatpush1.msra.mxu0 0.0
    %950 = vmatprep.subr.mxu0 0.0
    %951 = vmatpush1.msra.mxu0 0.0
    %952 = vmatprep.subr.mxu0 0.0
    %953 = vmatpush1.msra.mxu0 0.0
    %954 = vmatprep.subr.mxu0 0.0
    %955 = vmatpush1.msra.mxu0 0.0
    %956 = vmatprep.subr.mxu0 0.0
    %957 = vmatpush1.msra.mxu0 0.0
    %958 = vmatprep.subr.mxu0 0.0
    %959 = vmatpush1.msra.mxu0 0.0
    %960 = vmatprep.subr.mxu0 0.0
    %961 = vmatpush1.msra.mxu0 0.0
    %962 = vmatprep.subr.mxu0 0.0
    %963 = vmatpush1.msra.mxu0 0.0
    %964 = vmatprep.subr.mxu0 0.0
    %965 = vmatpush1.msra.mxu0 0.0
    %966 = vmatprep.mubr.f32.mxu0 0.0
    %967 = vmatmul.mubr.f32.gmra.mrb[0].mxu0 %v57
    %v968 = vpop.f32.mrb[0].mxu0
    %v969 = vadd.f32 %v901, %v968
    %v970 = vpop.f32.mrb[0].mxu0
    %971 = vmatprep.mubr.f32.mxu0 0.0
    %972 = vmatmul.mubr.f32.gmra.mrb[0].mxu0 %v60
    %v973 = vpop.f32.mrb[0].mxu0
    %v974 = vadd.f32 %v901, %v973
    %v975 = vpop.f32.mrb[0].mxu0
    %976 = vdwg.mxu0
    %s977 = scalar_lea.vmem %s4, 224
    %v978 = vld [vmem:[%s977] sm:$0xff]
    %v979 = vld [vmem:[%s977 + $0x8] sm:$0xff]
    %v980 = vld [vmem:[%s977 + $0x10] sm:$0xff]
    %v981 = vld [vmem:[%s977 + $0x18] sm:$0xff]
    %v982 = vlaneseq
    %v983 = vshrl.u32 %v982, 7
    %v984 = vsub.s32 7, %v983
    %v985 = vrot.slane %v44, %v984
    %986 = vmatprep.subr.mxu0 0.0
    %987 = vmatpush1.msra.mxu0 %v978
    %988 = vmatprep.subr.mxu0 0.0
    %989 = vmatpush1.msra.mxu0 %v979
    %990 = vmatprep.subr.mxu0 0.0
    %991 = vmatpush1.msra.mxu0 %v980
    %992 = vmatprep.subr.mxu0 0.0
    %993 = vmatpush1.msra.mxu0 %v981
    %994 = vmatprep.subr.mxu0 0.0
    %995 = vmatpush1.msra.mxu0 0.0
    %996 = vmatprep.subr.mxu0 0.0
    %997 = vmatpush1.msra.mxu0 0.0
    %998 = vmatprep.subr.mxu0 0.0
    %999 = vmatpush1.msra.mxu0 0.0
    %1000 = vmatprep.subr.mxu0 0.0
    %1001 = vmatpush1.msra.mxu0 0.0
    %1002 = vmatprep.subr.mxu0 0.0
    %1003 = vmatpush1.msra.mxu0 0.0
    %1004 = vmatprep.subr.mxu0 0.0
    %1005 = vmatpush1.msra.mxu0 0.0
    %1006 = vmatprep.subr.mxu0 0.0
    %1007 = vmatpush1.msra.mxu0 0.0
    %1008 = vmatprep.subr.mxu0 0.0
    %1009 = vmatpush1.msra.mxu0 0.0
    %1010 = vmatprep.subr.mxu0 0.0
    %1011 = vmatpush1.msra.mxu0 0.0
    %1012 = vmatprep.subr.mxu0 0.0
    %1013 = vmatpush1.msra.mxu0 0.0
    %1014 = vmatprep.subr.mxu0 0.0
    %1015 = vmatpush1.msra.mxu0 0.0
    %1016 = vmatprep.subr.mxu0 0.0
    %1017 = vmatpush1.msra.mxu0 0.0
    %1018 = vmatprep.subr.mxu0 0.0
    %1019 = vmatpush1.msra.mxu0 0.0
    %1020 = vmatprep.subr.mxu0 0.0
    %1021 = vmatpush1.msra.mxu0 0.0
    %1022 = vmatprep.subr.mxu0 0.0
    %1023 = vmatpush1.msra.mxu0 0.0
    %1024 = vmatprep.subr.mxu0 0.0
    %1025 = vmatpush1.msra.mxu0 0.0
    %1026 = vmatprep.subr.mxu0 0.0
    %1027 = vmatpush1.msra.mxu0 0.0
    %1028 = vmatprep.subr.mxu0 0.0
    %1029 = vmatpush1.msra.mxu0 0.0
    %1030 = vmatprep.subr.mxu0 0.0
    %1031 = vmatpush1.msra.mxu0 0.0
    %1032 = vmatprep.subr.mxu0 0.0
    %1033 = vmatpush1.msra.mxu0 0.0
    %1034 = vmatprep.subr.mxu0 0.0
    %1035 = vmatpush1.msra.mxu0 0.0
    %1036 = vmatprep.subr.mxu0 0.0
    %1037 = vmatpush1.msra.mxu0 0.0
    %1038 = vmatprep.subr.mxu0 0.0
    %1039 = vmatpush1.msra.mxu0 0.0
    %1040 = vmatprep.subr.mxu0 0.0
    %1041 = vmatpush1.msra.mxu0 0.0
    %1042 = vmatprep.subr.mxu0 0.0
    %1043 = vmatpush1.msra.mxu0 0.0
    %1044 = vmatprep.subr.mxu0 0.0
    %1045 = vmatpush1.msra.mxu0 0.0
    %1046 = vmatprep.subr.mxu0 0.0
    %1047 = vmatpush1.msra.mxu0 0.0
    %1048 = vmatprep.subr.mxu0 0.0
    %1049 = vmatpush1.msra.mxu0 0.0
    %1050 = vmatprep.mubr.f32.mxu0 0.0
    %1051 = vmatmul.mubr.f32.gmra.mrb[0].mxu0 %v147
    %v1052 = vpop.f32.mrb[0].mxu0
    %v1053 = vadd.f32 %v985, %v1052
    %v1054 = vpop.f32.mrb[0].mxu0
    %1055 = vmatprep.mubr.f32.mxu0 0.0
    %1056 = vmatmul.mubr.f32.gmra.mrb[0].mxu0 %v150
    %v1057 = vpop.f32.mrb[0].mxu0
    %v1058 = vadd.f32 %v985, %v1057
    %v1059 = vpop.f32.mrb[0].mxu0
    %1060 = vmatprep.mubr.f32.mxu0 0.0
    %1061 = vmatmul.mubr.f32.gmra.mrb[0].mxu0 %v153
    %v1062 = vpop.f32.mrb[0].mxu0
    %v1063 = vadd.f32 %v985, %v1062
    %v1064 = vpop.f32.mrb[0].mxu0
    %1065 = vmatprep.mubr.f32.mxu0 0.0
    %1066 = vmatmul.mubr.f32.gmra.mrb[0].mxu0 %v156
    %v1067 = vpop.f32.mrb[0].mxu0
    %v1068 = vadd.f32 %v985, %v1067
    %v1069 = vpop.f32.mrb[0].mxu0
    %1070 = vdwg.mxu0
    %s1071 = scalar_lea.vmem %s4, 352
    %v1072 = vld [vmem:[%s1071] sm:$0xff]
    %v1073 = vld [vmem:[%s1071 + $0x8] sm:$0xff]
    %v1074 = vld [vmem:[%s1071 + $0x10] sm:$0xff]
    %v1075 = vld [vmem:[%s1071 + $0x18] sm:$0xff]
    %v1076 = vlaneseq
    %v1077 = vshrl.u32 %v1076, 7
    %v1078 = vsub.s32 3, %v1077
    %v1079 = vrot.slane %v45, %v1078
    %1080 = vmatprep.subr.mxu0 0.0
    %1081 = vmatpush1.msra.mxu0 %v1072
    %1082 = vmatprep.subr.mxu0 0.0
    %1083 = vmatpush1.msra.mxu0 %v1073
    %1084 = vmatprep.subr.mxu0 0.0
    %1085 = vmatpush1.msra.mxu0 %v1074
    %1086 = vmatprep.subr.mxu0 0.0
    %1087 = vmatpush1.msra.mxu0 %v1075
    %1088 = vmatprep.subr.mxu0 0.0
    %1089 = vmatpush1.msra.mxu0 0.0
    %1090 = vmatprep.subr.mxu0 0.0
    %1091 = vmatpush1.msra.mxu0 0.0
    %1092 = vmatprep.subr.mxu0 0.0
    %1093 = vmatpush1.msra.mxu0 0.0
    %1094 = vmatprep.subr.mxu0 0.0
    %1095 = vmatpush1.msra.mxu0 0.0
    %1096 = vmatprep.subr.mxu0 0.0
    %1097 = vmatpush1.msra.mxu0 0.0
    %1098 = vmatprep.subr.mxu0 0.0
    %1099 = vmatpush1.msra.mxu0 0.0
    %1100 = vmatprep.subr.mxu0 0.0
    %1101 = vmatpush1.msra.mxu0 0.0
    %1102 = vmatprep.subr.mxu0 0.0
    %1103 = vmatpush1.msra.mxu0 0.0
    %1104 = vmatprep.subr.mxu0 0.0
    %1105 = vmatpush1.msra.mxu0 0.0
    %1106 = vmatprep.subr.mxu0 0.0
    %1107 = vmatpush1.msra.mxu0 0.0
    %1108 = vmatprep.subr.mxu0 0.0
    %1109 = vmatpush1.msra.mxu0 0.0
    %1110 = vmatprep.subr.mxu0 0.0
    %1111 = vmatpush1.msra.mxu0 0.0
    %1112 = vmatprep.subr.mxu0 0.0
    %1113 = vmatpush1.msra.mxu0 0.0
    %1114 = vmatprep.subr.mxu0 0.0
    %1115 = vmatpush1.msra.mxu0 0.0
    %1116 = vmatprep.subr.mxu0 0.0
    %1117 = vmatpush1.msra.mxu0 0.0
    %1118 = vmatprep.subr.mxu0 0.0
    %1119 = vmatpush1.msra.mxu0 0.0
    %1120 = vmatprep.subr.mxu0 0.0
    %1121 = vmatpush1.msra.mxu0 0.0
    %1122 = vmatprep.subr.mxu0 0.0
    %1123 = vmatpush1.msra.mxu0 0.0
    %1124 = vmatprep.subr.mxu0 0.0
    %1125 = vmatpush1.msra.mxu0 0.0
    %1126 = vmatprep.subr.mxu0 0.0
    %1127 = vmatpush1.msra.mxu0 0.0
    %1128 = vmatprep.subr.mxu0 0.0
    %1129 = vmatpush1.msra.mxu0 0.0
    %1130 = vmatprep.subr.mxu0 0.0
    %1131 = vmatpush1.msra.mxu0 0.0
    %1132 = vmatprep.subr.mxu0 0.0
    %1133 = vmatpush1.msra.mxu0 0.0
    %1134 = vmatprep.subr.mxu0 0.0
    %1135 = vmatpush1.msra.mxu0 0.0
    %1136 = vmatprep.subr.mxu0 0.0
    %1137 = vmatpush1.msra.mxu0 0.0
    %1138 = vmatprep.subr.mxu0 0.0
    %1139 = vmatpush1.msra.mxu0 0.0
    %1140 = vmatprep.subr.mxu0 0.0
    %1141 = vmatpush1.msra.mxu0 0.0
    %1142 = vmatprep.subr.mxu0 0.0
    %1143 = vmatpush1.msra.mxu0 0.0
    %1144 = vmatprep.mubr.f32.mxu0 0.0
    %1145 = vmatmul.mubr.f32.gmra.mrb[0].mxu0 %v253
    %v1146 = vpop.f32.mrb[0].mxu0
    %v1147 = vadd.f32 %v1079, %v1146
    %v1148 = vpop.f32.mrb[0].mxu0
    %1149 = vmatprep.mubr.f32.mxu0 0.0
    %1150 = vmatmul.mubr.f32.gmra.mrb[0].mxu0 %v256
    %v1151 = vpop.f32.mrb[0].mxu0
    %v1152 = vadd.f32 %v1079, %v1151
    %v1153 = vpop.f32.mrb[0].mxu0
    %1154 = vmatprep.mubr.f32.mxu0 0.0
    %1155 = vmatmul.mubr.f32.gmra.mrb[0].mxu0 %v259
    %v1156 = vpop.f32.mrb[0].mxu0
    %v1157 = vadd.f32 %v1079, %v1156
    %v1158 = vpop.f32.mrb[0].mxu0
    %1159 = vmatprep.mubr.f32.mxu0 0.0
    %1160 = vmatmul.mubr.f32.gmra.mrb[0].mxu0 %v262
    %v1161 = vpop.f32.mrb[0].mxu0
    %v1162 = vadd.f32 %v1079, %v1161
    %v1163 = vpop.f32.mrb[0].mxu0
    %1164 = vdwg.mxu0
    %v1165 = vld [vmem:[%s3] sm:$0x3]
    %v1166 = vmul.f32 %v1165, -1e+30
    %v1167 = vlaneseq
    %v1168 = vshrl.u32 %v1167, 7
    %v1169 = vsub.s32 0, %v1168
    %v1170 = vrot.slane %v1166, %v1169
    %vm1171 = vcmask 64512
    %v1173 = vsel %vm1171, %v129, 0
    %v1176 = vsel %vm1171, %v225, 0
    %v1179 = vsel %vm1171, %v230, 0
    %1181 = vmatprep.subr.mxu0 0.0
    %1182 = vmatpush1.xpose.msra.mxu0 %v1176
    %1183 = vmatprep.subr.mxu0 0.0
    %1184 = vmatpush1.xpose.msra.mxu0 %v1179
    %1185 = vmatprep.subr.mxu0 0.0
    %1186 = vmatpush1.xpose.msra.mxu0 0.0
    %1187 = vmatprep.subr.mxu0 0.0
    %1188 = vmatpush1.xpose.msra.mxu0 0.0
    %1189 = vmatprep.subr.mxu0 0.0
    %1190 = vmatpush1.xpose.msra.mxu0 0.0
    %1191 = vmatprep.subr.mxu0 0.0
    %1192 = vmatpush1.xpose.msra.mxu0 0.0
    %1193 = vmatprep.subr.mxu0 0.0
    %1194 = vmatpush1.xpose.msra.mxu0 0.0
    %1195 = vmatprep.subr.mxu0 0.0
    %1196 = vmatpush1.xpose.msra.mxu0 0.0
    %1197 = vmatprep.subr.mxu0 0.0
    %1198 = vmatpush1.xpose.msra.mxu0 0.0
    %1199 = vmatprep.subr.mxu0 0.0
    %1200 = vmatpush1.xpose.msra.mxu0 0.0
    %1201 = vmatprep.subr.mxu0 0.0
    %1202 = vmatpush1.xpose.msra.mxu0 0.0
    %1203 = vmatprep.subr.mxu0 0.0
    %1204 = vmatpush1.xpose.msra.mxu0 0.0
    %1205 = vmatprep.subr.mxu0 0.0
    %1206 = vmatpush1.xpose.msra.mxu0 0.0
    %1207 = vmatprep.subr.mxu0 0.0
    %1208 = vmatpush1.xpose.msra.mxu0 0.0
    %1209 = vmatprep.subr.mxu0 0.0
    %1210 = vmatpush1.xpose.msra.mxu0 0.0
    %1211 = vmatprep.subr.mxu0 0.0
    %1212 = vmatpush1.xpose.msra.mxu0 0.0
    %1213 = vmatprep.subr.mxu0 0.0
    %1214 = vmatpush1.xpose.msra.mxu0 0.0
    %1215 = vmatprep.subr.mxu0 0.0
    %1216 = vmatpush1.xpose.msra.mxu0 0.0
    %1217 = vmatprep.subr.mxu0 0.0
    %1218 = vmatpush1.xpose.msra.mxu0 0.0
    %1219 = vmatprep.subr.mxu0 0.0
    %1220 = vmatpush1.xpose.msra.mxu0 0.0
    %1221 = vmatprep.subr.mxu0 0.0
    %1222 = vmatpush1.xpose.msra.mxu0 0.0
    %1223 = vmatprep.subr.mxu0 0.0
    %1224 = vmatpush1.xpose.msra.mxu0 0.0
    %1225 = vmatprep.subr.mxu0 0.0
    %1226 = vmatpush1.xpose.msra.mxu0 0.0
    %1227 = vmatprep.subr.mxu0 0.0
    %1228 = vmatpush1.xpose.msra.mxu0 0.0
    %1229 = vmatprep.subr.mxu0 0.0
    %1230 = vmatpush1.xpose.msra.mxu0 0.0
    %1231 = vmatprep.subr.mxu0 0.0
    %1232 = vmatpush1.xpose.msra.mxu0 0.0
    %1233 = vmatprep.subr.mxu0 0.0
    %1234 = vmatpush1.xpose.msra.mxu0 0.0
    %1235 = vmatprep.subr.mxu0 0.0
    %1236 = vmatpush1.xpose.msra.mxu0 0.0
    %1237 = vmatprep.subr.mxu0 0.0
    %1238 = vmatpush1.xpose.msra.mxu0 0.0
    %1239 = vmatprep.subr.mxu0 0.0
    %1240 = vmatpush1.xpose.msra.mxu0 0.0
    %1241 = vmatprep.subr.mxu0 0.0
    %1242 = vmatpush1.xpose.msra.mxu0 0.0
    %1243 = vmatprep.subr.mxu0 0.0
    %1244 = vmatpush1.xpose.msra.mxu0 0.0
    %1245 = vmatprep.mubr.f32.mxu0 0.0
    %1246 = vmatmul.mubr.f32.gmra.mrb[0].mxu0 %v1173
    %v1247 = vpop.f32.mrb[0].mxu0
    %v1248 = vadd.f32 %v1170, %v1247
    %v1249 = vpop.f32.mrb[0].mxu0
    %1250 = vdwg.mxu0
    %v1252 = vsel %vm1171, %v425, 0
    %v1255 = vsel %vm1171, %v509, 0
    %v1258 = vsel %vm1171, %v514, 0
    %1260 = vmatprep.subr.mxu0 0.0
    %1261 = vmatpush1.xpose.msra.mxu0 %v1255
    %1262 = vmatprep.subr.mxu0 0.0
    %1263 = vmatpush1.xpose.msra.mxu0 %v1258
    %1264 = vmatprep.subr.mxu0 0.0
    %1265 = vmatpush1.xpose.msra.mxu0 0.0
    %1266 = vmatprep.subr.mxu0 0.0
    %1267 = vmatpush1.xpose.msra.mxu0 0.0
    %1268 = vmatprep.subr.mxu0 0.0
    %1269 = vmatpush1.xpose.msra.mxu0 0.0
    %1270 = vmatprep.subr.mxu0 0.0
    %1271 = vmatpush1.xpose.msra.mxu0 0.0
    %1272 = vmatprep.subr.mxu0 0.0
    %1273 = vmatpush1.xpose.msra.mxu0 0.0
    %1274 = vmatprep.subr.mxu0 0.0
    %1275 = vmatpush1.xpose.msra.mxu0 0.0
    %1276 = vmatprep.subr.mxu0 0.0
    %1277 = vmatpush1.xpose.msra.mxu0 0.0
    %1278 = vmatprep.subr.mxu0 0.0
    %1279 = vmatpush1.xpose.msra.mxu0 0.0
    %1280 = vmatprep.subr.mxu0 0.0
    %1281 = vmatpush1.xpose.msra.mxu0 0.0
    %1282 = vmatprep.subr.mxu0 0.0
    %1283 = vmatpush1.xpose.msra.mxu0 0.0
    %1284 = vmatprep.subr.mxu0 0.0
    %1285 = vmatpush1.xpose.msra.mxu0 0.0
    %1286 = vmatprep.subr.mxu0 0.0
    %1287 = vmatpush1.xpose.msra.mxu0 0.0
    %1288 = vmatprep.subr.mxu0 0.0
    %1289 = vmatpush1.xpose.msra.mxu0 0.0
    %1290 = vmatprep.subr.mxu0 0.0
    %1291 = vmatpush1.xpose.msra.mxu0 0.0
    %1292 = vmatprep.subr.mxu0 0.0
    %1293 = vmatpush1.xpose.msra.mxu0 0.0
    %1294 = vmatprep.subr.mxu0 0.0
    %1295 = vmatpush1.xpose.msra.mxu0 0.0
    %1296 = vmatprep.subr.mxu0 0.0
    %1297 = vmatpush1.xpose.msra.mxu0 0.0
    %1298 = vmatprep.subr.mxu0 0.0
    %1299 = vmatpush1.xpose.msra.mxu0 0.0
    %1300 = vmatprep.subr.mxu0 0.0
    %1301 = vmatpush1.xpose.msra.mxu0 0.0
    %1302 = vmatprep.subr.mxu0 0.0
    %1303 = vmatpush1.xpose.msra.mxu0 0.0
    %1304 = vmatprep.subr.mxu0 0.0
    %1305 = vmatpush1.xpose.msra.mxu0 0.0
    %1306 = vmatprep.subr.mxu0 0.0
    %1307 = vmatpush1.xpose.msra.mxu0 0.0
    %1308 = vmatprep.subr.mxu0 0.0
    %1309 = vmatpush1.xpose.msra.mxu0 0.0
    %1310 = vmatprep.subr.mxu0 0.0
    %1311 = vmatpush1.xpose.msra.mxu0 0.0
    %1312 = vmatprep.subr.mxu0 0.0
    %1313 = vmatpush1.xpose.msra.mxu0 0.0
    %1314 = vmatprep.subr.mxu0 0.0
    %1315 = vmatpush1.xpose.msra.mxu0 0.0
    %1316 = vmatprep.subr.mxu0 0.0
    %1317 = vmatpush1.xpose.msra.mxu0 0.0
    %1318 = vmatprep.subr.mxu0 0.0
    %1319 = vmatpush1.xpose.msra.mxu0 0.0
    %1320 = vmatprep.subr.mxu0 0.0
    %1321 = vmatpush1.xpose.msra.mxu0 0.0
    %1322 = vmatprep.subr.mxu0 0.0
    %1323 = vmatpush1.xpose.msra.mxu0 0.0
    %1324 = vmatprep.mubr.f32.mxu0 0.0
    %1325 = vmatmul.mubr.f32.gmra.mrb[0].mxu0 %v1252
    %v1326 = vpop.f32.mrb[0].mxu0
    %v1327 = vadd.f32 %v1170, %v1326
    %v1328 = vpop.f32.mrb[0].mxu0
    %1329 = vdwg.mxu0
    %v1331 = vsel %vm1171, %v697, 0
    %v1334 = vsel %vm1171, %v781, 0
    %v1337 = vsel %vm1171, %v786, 0
    %1339 = vmatprep.subr.mxu0 0.0
    %1340 = vmatpush1.xpose.msra.mxu0 %v1334
    %1341 = vmatprep.subr.mxu0 0.0
    %1342 = vmatpush1.xpose.msra.mxu0 %v1337
    %1343 = vmatprep.subr.mxu0 0.0
    %1344 = vmatpush1.xpose.msra.mxu0 0.0
    %1345 = vmatprep.subr.mxu0 0.0
    %1346 = vmatpush1.xpose.msra.mxu0 0.0
    %1347 = vmatprep.subr.mxu0 0.0
    %1348 = vmatpush1.xpose.msra.mxu0 0.0
    %1349 = vmatprep.subr.mxu0 0.0
    %1350 = vmatpush1.xpose.msra.mxu0 0.0
    %1351 = vmatprep.subr.mxu0 0.0
    %1352 = vmatpush1.xpose.msra.mxu0 0.0
    %1353 = vmatprep.subr.mxu0 0.0
    %1354 = vmatpush1.xpose.msra.mxu0 0.0
    %1355 = vmatprep.subr.mxu0 0.0
    %1356 = vmatpush1.xpose.msra.mxu0 0.0
    %1357 = vmatprep.subr.mxu0 0.0
    %1358 = vmatpush1.xpose.msra.mxu0 0.0
    %1359 = vmatprep.subr.mxu0 0.0
    %1360 = vmatpush1.xpose.msra.mxu0 0.0
    %1361 = vmatprep.subr.mxu0 0.0
    %1362 = vmatpush1.xpose.msra.mxu0 0.0
    %1363 = vmatprep.subr.mxu0 0.0
    %1364 = vmatpush1.xpose.msra.mxu0 0.0
    %1365 = vmatprep.subr.mxu0 0.0
    %1366 = vmatpush1.xpose.msra.mxu0 0.0
    %1367 = vmatprep.subr.mxu0 0.0
    %1368 = vmatpush1.xpose.msra.mxu0 0.0
    %1369 = vmatprep.subr.mxu0 0.0
    %1370 = vmatpush1.xpose.msra.mxu0 0.0
    %1371 = vmatprep.subr.mxu0 0.0
    %1372 = vmatpush1.xpose.msra.mxu0 0.0
    %1373 = vmatprep.subr.mxu0 0.0
    %1374 = vmatpush1.xpose.msra.mxu0 0.0
    %1375 = vmatprep.subr.mxu0 0.0
    %1376 = vmatpush1.xpose.msra.mxu0 0.0
    %1377 = vmatprep.subr.mxu0 0.0
    %1378 = vmatpush1.xpose.msra.mxu0 0.0
    %1379 = vmatprep.subr.mxu0 0.0
    %1380 = vmatpush1.xpose.msra.mxu0 0.0
    %1381 = vmatprep.subr.mxu0 0.0
    %1382 = vmatpush1.xpose.msra.mxu0 0.0
    %1383 = vmatprep.subr.mxu0 0.0
    %1384 = vmatpush1.xpose.msra.mxu0 0.0
    %1385 = vmatprep.subr.mxu0 0.0
    %1386 = vmatpush1.xpose.msra.mxu0 0.0
    %1387 = vmatprep.subr.mxu0 0.0
    %1388 = vmatpush1.xpose.msra.mxu0 0.0
    %1389 = vmatprep.subr.mxu0 0.0
    %1390 = vmatpush1.xpose.msra.mxu0 0.0
    %1391 = vmatprep.subr.mxu0 0.0
    %1392 = vmatpush1.xpose.msra.mxu0 0.0
    %1393 = vmatprep.subr.mxu0 0.0
    %1394 = vmatpush1.xpose.msra.mxu0 0.0
    %1395 = vmatprep.subr.mxu0 0.0
    %1396 = vmatpush1.xpose.msra.mxu0 0.0
    %1397 = vmatprep.subr.mxu0 0.0
    %1398 = vmatpush1.xpose.msra.mxu0 0.0
    %1399 = vmatprep.subr.mxu0 0.0
    %1400 = vmatpush1.xpose.msra.mxu0 0.0
    %1401 = vmatprep.subr.mxu0 0.0
    %1402 = vmatpush1.xpose.msra.mxu0 0.0
    %1403 = vmatprep.mubr.f32.mxu0 0.0
    %1404 = vmatmul.mubr.f32.gmra.mrb[0].mxu0 %v1331
    %v1405 = vpop.f32.mrb[0].mxu0
    %v1406 = vadd.f32 %v1170, %v1405
    %v1407 = vpop.f32.mrb[0].mxu0
    %1408 = vdwg.mxu0
    %v1410 = vsel %vm1171, %v969, 0
    %v1413 = vsel %vm1171, %v1053, 0
    %v1416 = vsel %vm1171, %v1058, 0
    %1418 = vmatprep.subr.mxu0 0.0
    %1419 = vmatpush1.xpose.msra.mxu0 %v1413
    %1420 = vmatprep.subr.mxu0 0.0
    %1421 = vmatpush1.xpose.msra.mxu0 %v1416
    %1422 = vmatprep.subr.mxu0 0.0
    %1423 = vmatpush1.xpose.msra.mxu0 0.0
    %1424 = vmatprep.subr.mxu0 0.0
    %1425 = vmatpush1.xpose.msra.mxu0 0.0
    %1426 = vmatprep.subr.mxu0 0.0
    %1427 = vmatpush1.xpose.msra.mxu0 0.0
    %1428 = vmatprep.subr.mxu0 0.0
    %1429 = vmatpush1.xpose.msra.mxu0 0.0
    %1430 = vmatprep.subr.mxu0 0.0
    %1431 = vmatpush1.xpose.msra.mxu0 0.0
    %1432 = vmatprep.subr.mxu0 0.0
    %1433 = vmatpush1.xpose.msra.mxu0 0.0
    %1434 = vmatprep.subr.mxu0 0.0
    %1435 = vmatpush1.xpose.msra.mxu0 0.0
    %1436 = vmatprep.subr.mxu0 0.0
    %1437 = vmatpush1.xpose.msra.mxu0 0.0
    %1438 = vmatprep.subr.mxu0 0.0
    %1439 = vmatpush1.xpose.msra.mxu0 0.0
    %1440 = vmatprep.subr.mxu0 0.0
    %1441 = vmatpush1.xpose.msra.mxu0 0.0
    %1442 = vmatprep.subr.mxu0 0.0
    %1443 = vmatpush1.xpose.msra.mxu0 0.0
    %1444 = vmatprep.subr.mxu0 0.0
    %1445 = vmatpush1.xpose.msra.mxu0 0.0
    %1446 = vmatprep.subr.mxu0 0.0
    %1447 = vmatpush1.xpose.msra.mxu0 0.0
    %1448 = vmatprep.subr.mxu0 0.0
    %1449 = vmatpush1.xpose.msra.mxu0 0.0
    %1450 = vmatprep.subr.mxu0 0.0
    %1451 = vmatpush1.xpose.msra.mxu0 0.0
    %1452 = vmatprep.subr.mxu0 0.0
    %1453 = vmatpush1.xpose.msra.mxu0 0.0
    %1454 = vmatprep.subr.mxu0 0.0
    %1455 = vmatpush1.xpose.msra.mxu0 0.0
    %1456 = vmatprep.subr.mxu0 0.0
    %1457 = vmatpush1.xpose.msra.mxu0 0.0
    %1458 = vmatprep.subr.mxu0 0.0
    %1459 = vmatpush1.xpose.msra.mxu0 0.0
    %1460 = vmatprep.subr.mxu0 0.0
    %1461 = vmatpush1.xpose.msra.mxu0 0.0
    %1462 = vmatprep.subr.mxu0 0.0
    %1463 = vmatpush1.xpose.msra.mxu0 0.0
    %1464 = vmatprep.subr.mxu0 0.0
    %1465 = vmatpush1.xpose.msra.mxu0 0.0
    %1466 = vmatprep.subr.mxu0 0.0
    %1467 = vmatpush1.xpose.msra.mxu0 0.0
    %1468 = vmatprep.subr.mxu0 0.0
    %1469 = vmatpush1.xpose.msra.mxu0 0.0
    %1470 = vmatprep.subr.mxu0 0.0
    %1471 = vmatpush1.xpose.msra.mxu0 0.0
    %1472 = vmatprep.subr.mxu0 0.0
    %1473 = vmatpush1.xpose.msra.mxu0 0.0
    %1474 = vmatprep.subr.mxu0 0.0
    %1475 = vmatpush1.xpose.msra.mxu0 0.0
    %1476 = vmatprep.subr.mxu0 0.0
    %1477 = vmatpush1.xpose.msra.mxu0 0.0
    %1478 = vmatprep.subr.mxu0 0.0
    %1479 = vmatpush1.xpose.msra.mxu0 0.0
    %1480 = vmatprep.subr.mxu0 0.0
    %1481 = vmatpush1.xpose.msra.mxu0 0.0
    %1482 = vmatprep.mubr.f32.mxu0 0.0
    %1483 = vmatmul.mubr.f32.gmra.mrb[0].mxu0 %v1410
    %v1484 = vpop.f32.mrb[0].mxu0
    %v1485 = vadd.f32 %v1170, %v1484
    %v1486 = vpop.f32.mrb[0].mxu0
    %1487 = vdwg.mxu0
    %v1488 = vlaneseq
    %v1489 = vshrl.u32 %v1488, 7
    %v1490 = vsub.s32 1, %v1489
    %v1491 = vrot.slane %v1166, %v1490
    %v1493 = vsel %vm1171, %v134, 0
    %v1496 = vsel %vm1171, %v235, 0
    %v1499 = vsel %vm1171, %v240, 0
    %1501 = vmatprep.subr.mxu0 0.0
    %1502 = vmatpush1.xpose.msra.mxu0 %v1496
    %1503 = vmatprep.subr.mxu0 0.0
    %1504 = vmatpush1.xpose.msra.mxu0 %v1499
    %1505 = vmatprep.subr.mxu0 0.0
    %1506 = vmatpush1.xpose.msra.mxu0 0.0
    %1507 = vmatprep.subr.mxu0 0.0
    %1508 = vmatpush1.xpose.msra.mxu0 0.0
    %1509 = vmatprep.subr.mxu0 0.0
    %1510 = vmatpush1.xpose.msra.mxu0 0.0
    %1511 = vmatprep.subr.mxu0 0.0
    %1512 = vmatpush1.xpose.msra.mxu0 0.0
    %1513 = vmatprep.subr.mxu0 0.0
    %1514 = vmatpush1.xpose.msra.mxu0 0.0
    %1515 = vmatprep.subr.mxu0 0.0
    %1516 = vmatpush1.xpose.msra.mxu0 0.0
    %1517 = vmatprep.subr.mxu0 0.0
    %1518 = vmatpush1.xpose.msra.mxu0 0.0
    %1519 = vmatprep.subr.mxu0 0.0
    %1520 = vmatpush1.xpose.msra.mxu0 0.0
    %1521 = vmatprep.subr.mxu0 0.0
    %1522 = vmatpush1.xpose.msra.mxu0 0.0
    %1523 = vmatprep.subr.mxu0 0.0
    %1524 = vmatpush1.xpose.msra.mxu0 0.0
    %1525 = vmatprep.subr.mxu0 0.0
    %1526 = vmatpush1.xpose.msra.mxu0 0.0
    %1527 = vmatprep.subr.mxu0 0.0
    %1528 = vmatpush1.xpose.msra.mxu0 0.0
    %1529 = vmatprep.subr.mxu0 0.0
    %1530 = vmatpush1.xpose.msra.mxu0 0.0
    %1531 = vmatprep.subr.mxu0 0.0
    %1532 = vmatpush1.xpose.msra.mxu0 0.0
    %1533 = vmatprep.subr.mxu0 0.0
    %1534 = vmatpush1.xpose.msra.mxu0 0.0
    %1535 = vmatprep.subr.mxu0 0.0
    %1536 = vmatpush1.xpose.msra.mxu0 0.0
    %1537 = vmatprep.subr.mxu0 0.0
    %1538 = vmatpush1.xpose.msra.mxu0 0.0
    %1539 = vmatprep.subr.mxu0 0.0
    %1540 = vmatpush1.xpose.msra.mxu0 0.0
    %1541 = vmatprep.subr.mxu0 0.0
    %1542 = vmatpush1.xpose.msra.mxu0 0.0
    %1543 = vmatprep.subr.mxu0 0.0
    %1544 = vmatpush1.xpose.msra.mxu0 0.0
    %1545 = vmatprep.subr.mxu0 0.0
    %1546 = vmatpush1.xpose.msra.mxu0 0.0
    %1547 = vmatprep.subr.mxu0 0.0
    %1548 = vmatpush1.xpose.msra.mxu0 0.0
    %1549 = vmatprep.subr.mxu0 0.0
    %1550 = vmatpush1.xpose.msra.mxu0 0.0
    %1551 = vmatprep.subr.mxu0 0.0
    %1552 = vmatpush1.xpose.msra.mxu0 0.0
    %1553 = vmatprep.subr.mxu0 0.0
    %1554 = vmatpush1.xpose.msra.mxu0 0.0
    %1555 = vmatprep.subr.mxu0 0.0
    %1556 = vmatpush1.xpose.msra.mxu0 0.0
    %1557 = vmatprep.subr.mxu0 0.0
    %1558 = vmatpush1.xpose.msra.mxu0 0.0
    %1559 = vmatprep.subr.mxu0 0.0
    %1560 = vmatpush1.xpose.msra.mxu0 0.0
    %1561 = vmatprep.subr.mxu0 0.0
    %1562 = vmatpush1.xpose.msra.mxu0 0.0
    %1563 = vmatprep.subr.mxu0 0.0
    %1564 = vmatpush1.xpose.msra.mxu0 0.0
    %1565 = vmatprep.mubr.f32.mxu0 0.0
    %1566 = vmatmul.mubr.f32.gmra.mrb[0].mxu0 %v1493
    %v1567 = vpop.f32.mrb[0].mxu0
    %v1568 = vadd.f32 %v1491, %v1567
    %v1569 = vpop.f32.mrb[0].mxu0
    %1570 = vdwg.mxu0
    %v1572 = vsel %vm1171, %v430, 0
    %v1575 = vsel %vm1171, %v519, 0
    %v1578 = vsel %vm1171, %v524, 0
    %1580 = vmatprep.subr.mxu0 0.0
    %1581 = vmatpush1.xpose.msra.mxu0 %v1575
    %1582 = vmatprep.subr.mxu0 0.0
    %1583 = vmatpush1.xpose.msra.mxu0 %v1578
    %1584 = vmatprep.subr.mxu0 0.0
    %1585 = vmatpush1.xpose.msra.mxu0 0.0
    %1586 = vmatprep.subr.mxu0 0.0
    %1587 = vmatpush1.xpose.msra.mxu0 0.0
    %1588 = vmatprep.subr.mxu0 0.0
    %1589 = vmatpush1.xpose.msra.mxu0 0.0
    %1590 = vmatprep.subr.mxu0 0.0
    %1591 = vmatpush1.xpose.msra.mxu0 0.0
    %1592 = vmatprep.subr.mxu0 0.0
    %1593 = vmatpush1.xpose.msra.mxu0 0.0
    %1594 = vmatprep.subr.mxu0 0.0
    %1595 = vmatpush1.xpose.msra.mxu0 0.0
    %1596 = vmatprep.subr.mxu0 0.0
    %1597 = vmatpush1.xpose.msra.mxu0 0.0
    %1598 = vmatprep.subr.mxu0 0.0
    %1599 = vmatpush1.xpose.msra.mxu0 0.0
    %1600 = vmatprep.subr.mxu0 0.0
    %1601 = vmatpush1.xpose.msra.mxu0 0.0
    %1602 = vmatprep.subr.mxu0 0.0
    %1603 = vmatpush1.xpose.msra.mxu0 0.0
    %1604 = vmatprep.subr.mxu0 0.0
    %1605 = vmatpush1.xpose.msra.mxu0 0.0
    %1606 = vmatprep.subr.mxu0 0.0
    %1607 = vmatpush1.xpose.msra.mxu0 0.0
    %1608 = vmatprep.subr.mxu0 0.0
    %1609 = vmatpush1.xpose.msra.mxu0 0.0
    %1610 = vmatprep.subr.mxu0 0.0
    %1611 = vmatpush1.xpose.msra.mxu0 0.0
    %1612 = vmatprep.subr.mxu0 0.0
    %1613 = vmatpush1.xpose.msra.mxu0 0.0
    %1614 = vmatprep.subr.mxu0 0.0
    %1615 = vmatpush1.xpose.msra.mxu0 0.0
    %1616 = vmatprep.subr.mxu0 0.0
    %1617 = vmatpush1.xpose.msra.mxu0 0.0
    %1618 = vmatprep.subr.mxu0 0.0
    %1619 = vmatpush1.xpose.msra.mxu0 0.0
    %1620 = vmatprep.subr.mxu0 0.0
    %1621 = vmatpush1.xpose.msra.mxu0 0.0
    %1622 = vmatprep.subr.mxu0 0.0
    %1623 = vmatpush1.xpose.msra.mxu0 0.0
    %1624 = vmatprep.subr.mxu0 0.0
    %1625 = vmatpush1.xpose.msra.mxu0 0.0
    %1626 = vmatprep.subr.mxu0 0.0
    %1627 = vmatpush1.xpose.msra.mxu0 0.0
    %1628 = vmatprep.subr.mxu0 0.0
    %1629 = vmatpush1.xpose.msra.mxu0 0.0
    %1630 = vmatprep.subr.mxu0 0.0
    %1631 = vmatpush1.xpose.msra.mxu0 0.0
    %1632 = vmatprep.subr.mxu0 0.0
    %1633 = vmatpush1.xpose.msra.mxu0 0.0
    %1634 = vmatprep.subr.mxu0 0.0
    %1635 = vmatpush1.xpose.msra.mxu0 0.0
    %1636 = vmatprep.subr.mxu0 0.0
    %1637 = vmatpush1.xpose.msra.mxu0 0.0
    %1638 = vmatprep.subr.mxu0 0.0
    %1639 = vmatpush1.xpose.msra.mxu0 0.0
    %1640 = vmatprep.subr.mxu0 0.0
    %1641 = vmatpush1.xpose.msra.mxu0 0.0
    %1642 = vmatprep.subr.mxu0 0.0
    %1643 = vmatpush1.xpose.msra.mxu0 0.0
    %1644 = vmatprep.mubr.f32.mxu0 0.0
    %1645 = vmatmul.mubr.f32.gmra.mrb[0].mxu0 %v1572
    %v1646 = vpop.f32.mrb[0].mxu0
    %v1647 = vadd.f32 %v1491, %v1646
    %v1648 = vpop.f32.mrb[0].mxu0
    %1649 = vdwg.mxu0
    %v1651 = vsel %vm1171, %v702, 0
    %v1654 = vsel %vm1171, %v791, 0
    %v1657 = vsel %vm1171, %v796, 0
    %1659 = vmatprep.subr.mxu0 0.0
    %1660 = vmatpush1.xpose.msra.mxu0 %v1654
    %1661 = vmatprep.subr.mxu0 0.0
    %1662 = vmatpush1.xpose.msra.mxu0 %v1657
    %1663 = vmatprep.subr.mxu0 0.0
    %1664 = vmatpush1.xpose.msra.mxu0 0.0
    %1665 = vmatprep.subr.mxu0 0.0
    %1666 = vmatpush1.xpose.msra.mxu0 0.0
    %1667 = vmatprep.subr.mxu0 0.0
    %1668 = vmatpush1.xpose.msra.mxu0 0.0
    %1669 = vmatprep.subr.mxu0 0.0
    %1670 = vmatpush1.xpose.msra.mxu0 0.0
    %1671 = vmatprep.subr.mxu0 0.0
    %1672 = vmatpush1.xpose.msra.mxu0 0.0
    %1673 = vmatprep.subr.mxu0 0.0
    %1674 = vmatpush1.xpose.msra.mxu0 0.0
    %1675 = vmatprep.subr.mxu0 0.0
    %1676 = vmatpush1.xpose.msra.mxu0 0.0
    %1677 = vmatprep.subr.mxu0 0.0
    %1678 = vmatpush1.xpose.msra.mxu0 0.0
    %1679 = vmatprep.subr.mxu0 0.0
    %1680 = vmatpush1.xpose.msra.mxu0 0.0
    %1681 = vmatprep.subr.mxu0 0.0
    %1682 = vmatpush1.xpose.msra.mxu0 0.0
    %1683 = vmatprep.subr.mxu0 0.0
    %1684 = vmatpush1.xpose.msra.mxu0 0.0
    %1685 = vmatprep.subr.mxu0 0.0
    %1686 = vmatpush1.xpose.msra.mxu0 0.0
    %1687 = vmatprep.subr.mxu0 0.0
    %1688 = vmatpush1.xpose.msra.mxu0 0.0
    %1689 = vmatprep.subr.mxu0 0.0
    %1690 = vmatpush1.xpose.msra.mxu0 0.0
    %1691 = vmatprep.subr.mxu0 0.0
    %1692 = vmatpush1.xpose.msra.mxu0 0.0
    %1693 = vmatprep.subr.mxu0 0.0
    %1694 = vmatpush1.xpose.msra.mxu0 0.0
    %1695 = vmatprep.subr.mxu0 0.0
    %1696 = vmatpush1.xpose.msra.mxu0 0.0
    %1697 = vmatprep.subr.mxu0 0.0
    %1698 = vmatpush1.xpose.msra.mxu0 0.0
    %1699 = vmatprep.subr.mxu0 0.0
    %1700 = vmatpush1.xpose.msra.mxu0 0.0
    %1701 = vmatprep.subr.mxu0 0.0
    %1702 = vmatpush1.xpose.msra.mxu0 0.0
    %1703 = vmatprep.subr.mxu0 0.0
    %1704 = vmatpush1.xpose.msra.mxu0 0.0
    %1705 = vmatprep.subr.mxu0 0.0
    %1706 = vmatpush1.xpose.msra.mxu0 0.0
    %1707 = vmatprep.subr.mxu0 0.0
    %1708 = vmatpush1.xpose.msra.mxu0 0.0
    %1709 = vmatprep.subr.mxu0 0.0
    %1710 = vmatpush1.xpose.msra.mxu0 0.0
    %1711 = vmatprep.subr.mxu0 0.0
    %1712 = vmatpush1.xpose.msra.mxu0 0.0
    %1713 = vmatprep.subr.mxu0 0.0
    %1714 = vmatpush1.xpose.msra.mxu0 0.0
    %1715 = vmatprep.subr.mxu0 0.0
    %1716 = vmatpush1.xpose.msra.mxu0 0.0
    %1717 = vmatprep.subr.mxu0 0.0
    %1718 = vmatpush1.xpose.msra.mxu0 0.0
    %1719 = vmatprep.subr.mxu0 0.0
    %1720 = vmatpush1.xpose.msra.mxu0 0.0
    %1721 = vmatprep.subr.mxu0 0.0
    %1722 = vmatpush1.xpose.msra.mxu0 0.0
    %1723 = vmatprep.mubr.f32.mxu0 0.0
    %1724 = vmatmul.mubr.f32.gmra.mrb[0].mxu0 %v1651
    %v1725 = vpop.f32.mrb[0].mxu0
    %v1726 = vadd.f32 %v1491, %v1725
    %v1727 = vpop.f32.mrb[0].mxu0
    %1728 = vdwg.mxu0
    %v1730 = vsel %vm1171, %v974, 0
    %v1733 = vsel %vm1171, %v1063, 0
    %v1736 = vsel %vm1171, %v1068, 0
    %1738 = vmatprep.subr.mxu0 0.0
    %1739 = vmatpush1.xpose.msra.mxu0 %v1733
    %1740 = vmatprep.subr.mxu0 0.0
    %1741 = vmatpush1.xpose.msra.mxu0 %v1736
    %1742 = vmatprep.subr.mxu0 0.0
    %1743 = vmatpush1.xpose.msra.mxu0 0.0
    %1744 = vmatprep.subr.mxu0 0.0
    %1745 = vmatpush1.xpose.msra.mxu0 0.0
    %1746 = vmatprep.subr.mxu0 0.0
    %1747 = vmatpush1.xpose.msra.mxu0 0.0
    %1748 = vmatprep.subr.mxu0 0.0
    %1749 = vmatpush1.xpose.msra.mxu0 0.0
    %1750 = vmatprep.subr.mxu0 0.0
    %1751 = vmatpush1.xpose.msra.mxu0 0.0
    %1752 = vmatprep.subr.mxu0 0.0
    %1753 = vmatpush1.xpose.msra.mxu0 0.0
    %1754 = vmatprep.subr.mxu0 0.0
    %1755 = vmatpush1.xpose.msra.mxu0 0.0
    %1756 = vmatprep.subr.mxu0 0.0
    %1757 = vmatpush1.xpose.msra.mxu0 0.0
    %1758 = vmatprep.subr.mxu0 0.0
    %1759 = vmatpush1.xpose.msra.mxu0 0.0
    %1760 = vmatprep.subr.mxu0 0.0
    %1761 = vmatpush1.xpose.msra.mxu0 0.0
    %1762 = vmatprep.subr.mxu0 0.0
    %1763 = vmatpush1.xpose.msra.mxu0 0.0
    %1764 = vmatprep.subr.mxu0 0.0
    %1765 = vmatpush1.xpose.msra.mxu0 0.0
    %1766 = vmatprep.subr.mxu0 0.0
    %1767 = vmatpush1.xpose.msra.mxu0 0.0
    %1768 = vmatprep.subr.mxu0 0.0
    %1769 = vmatpush1.xpose.msra.mxu0 0.0
    %1770 = vmatprep.subr.mxu0 0.0
    %1771 = vmatpush1.xpose.msra.mxu0 0.0
    %1772 = vmatprep.subr.mxu0 0.0
    %1773 = vmatpush1.xpose.msra.mxu0 0.0
    %1774 = vmatprep.subr.mxu0 0.0
    %1775 = vmatpush1.xpose.msra.mxu0 0.0
    %1776 = vmatprep.subr.mxu0 0.0
    %1777 = vmatpush1.xpose.msra.mxu0 0.0
    %1778 = vmatprep.subr.mxu0 0.0
    %1779 = vmatpush1.xpose.msra.mxu0 0.0
    %1780 = vmatprep.subr.mxu0 0.0
    %1781 = vmatpush1.xpose.msra.mxu0 0.0
    %1782 = vmatprep.subr.mxu0 0.0
    %1783 = vmatpush1.xpose.msra.mxu0 0.0
    %1784 = vmatprep.subr.mxu0 0.0
    %1785 = vmatpush1.xpose.msra.mxu0 0.0
    %1786 = vmatprep.subr.mxu0 0.0
    %1787 = vmatpush1.xpose.msra.mxu0 0.0
    %1788 = vmatprep.subr.mxu0 0.0
    %1789 = vmatpush1.xpose.msra.mxu0 0.0
    %1790 = vmatprep.subr.mxu0 0.0
    %1791 = vmatpush1.xpose.msra.mxu0 0.0
    %1792 = vmatprep.subr.mxu0 0.0
    %1793 = vmatpush1.xpose.msra.mxu0 0.0
    %1794 = vmatprep.subr.mxu0 0.0
    %1795 = vmatpush1.xpose.msra.mxu0 0.0
    %1796 = vmatprep.subr.mxu0 0.0
    %1797 = vmatpush1.xpose.msra.mxu0 0.0
    %1798 = vmatprep.subr.mxu0 0.0
    %1799 = vmatpush1.xpose.msra.mxu0 0.0
    %1800 = vmatprep.subr.mxu0 0.0
    %1801 = vmatpush1.xpose.msra.mxu0 0.0
    %1802 = vmatprep.mubr.f32.mxu0 0.0
    %1803 = vmatmul.mubr.f32.gmra.mrb[0].mxu0 %v1730
    %v1804 = vpop.f32.mrb[0].mxu0
    %v1805 = vadd.f32 %v1491, %v1804
    %v1806 = vpop.f32.mrb[0].mxu0
    %1807 = vdwg.mxu0
    %vm1808 = vcmask 130048
    %v1809 = vsel %vm1808, %v1248, -inf
    %1810 = vmax.xlane.f32.xlu0 %v1809
    %v1811 = vpop.xlane.xlu0 %1810
    %v1812 = vsel %vm1808, %v1327, -inf
    %1813 = vmax.xlane.f32.xlu0 %v1812
    %v1814 = vpop.xlane.xlu0 %1813
    %v1815 = vsel %vm1808, %v1406, -inf
    %1816 = vmax.xlane.f32.xlu0 %v1815
    %v1817 = vpop.xlane.xlu0 %1816
    %v1818 = vsel %vm1808, %v1485, -inf
    %1819 = vmax.xlane.f32.xlu0 %v1818
    %v1820 = vpop.xlane.xlu0 %1819
    %v1821 = vsel %vm1808, %v1568, -inf
    %1822 = vmax.xlane.f32.xlu0 %v1821
    %v1823 = vpop.xlane.xlu0 %1822
    %v1824 = vsel %vm1808, %v1647, -inf
    %1825 = vmax.xlane.f32.xlu0 %v1824
    %v1826 = vpop.xlane.xlu0 %1825
    %v1827 = vsel %vm1808, %v1726, -inf
    %1828 = vmax.xlane.f32.xlu0 %v1827
    %v1829 = vpop.xlane.xlu0 %1828
    %v1830 = vsel %vm1808, %v1805, -inf
    %1831 = vmax.xlane.f32.xlu0 %v1830
    %v1832 = vpop.xlane.xlu0 %1831
    %v1833 = vsub.f32 %v1248, %v1811
    %v1834 = vsub.f32 %v1327, %v1814
    %v1835 = vsub.f32 %v1406, %v1817
    %v1836 = vsub.f32 %v1485, %v1820
    %v1837 = vsub.f32 %v1568, %v1823
    %v1838 = vsub.f32 %v1647, %v1826
    %v1839 = vsub.f32 %v1726, %v1829
    %v1840 = vsub.f32 %v1805, %v1832
    %v1841 = vmul.f32 %v1833, 1.442695
    %v1842 = vpow.pop %v1841
    %v1843 = vmul.f32 %v1834, 1.442695
    %v1844 = vpow.pop %v1843
    %v1845 = vmul.f32 %v1835, 1.442695
    %v1846 = vpow.pop %v1845
    %v1847 = vmul.f32 %v1836, 1.442695
    %v1848 = vpow.pop %v1847
    %v1849 = vmul.f32 %v1837, 1.442695
    %v1850 = vpow.pop %v1849
    %v1851 = vmul.f32 %v1838, 1.442695
    %v1852 = vpow.pop %v1851
    %v1853 = vmul.f32 %v1839, 1.442695
    %v1854 = vpow.pop %v1853
    %v1855 = vmul.f32 %v1840, 1.442695
    %v1856 = vpow.pop %v1855
    %v1857 = vsel %vm1808, %v1842, 0.0
    %1858 = vadd.xlane.f32.xlu0 %v1857
    %v1859 = vpop.xlane.xlu0 %1858
    %v1860 = vsel %vm1808, %v1844, 0.0
    %1861 = vadd.xlane.f32.xlu0 %v1860
    %v1862 = vpop.xlane.xlu0 %1861
    %v1863 = vsel %vm1808, %v1846, 0.0
    %1864 = vadd.xlane.f32.xlu0 %v1863
    %v1865 = vpop.xlane.xlu0 %1864
    %v1866 = vsel %vm1808, %v1848, 0.0
    %1867 = vadd.xlane.f32.xlu0 %v1866
    %v1868 = vpop.xlane.xlu0 %1867
    %v1869 = vsel %vm1808, %v1850, 0.0
    %1870 = vadd.xlane.f32.xlu0 %v1869
    %v1871 = vpop.xlane.xlu0 %1870
    %v1872 = vsel %vm1808, %v1852, 0.0
    %1873 = vadd.xlane.f32.xlu0 %v1872
    %v1874 = vpop.xlane.xlu0 %1873
    %v1875 = vsel %vm1808, %v1854, 0.0
    %1876 = vadd.xlane.f32.xlu0 %v1875
    %v1877 = vpop.xlane.xlu0 %1876
    %v1878 = vsel %vm1808, %v1856, 0.0
    %1879 = vadd.xlane.f32.xlu0 %v1878
    %v1880 = vpop.xlane.xlu0 %1879
    %v1881 = vrcp.pop %v1859
    %v1882 = vrcp.pop %v1862
    %v1883 = vrcp.pop %v1865
    %v1884 = vrcp.pop %v1868
    %v1885 = vrcp.pop %v1871
    %v1886 = vrcp.pop %v1874
    %v1887 = vrcp.pop %v1877
    %v1888 = vrcp.pop %v1880
    %v1889 = vmul.f32 %v1842, %v1881
    %v1890 = vmul.f32 %v1844, %v1882
    %v1891 = vmul.f32 %v1846, %v1883
    %v1892 = vmul.f32 %v1848, %v1884
    %v1893 = vmul.f32 %v1850, %v1885
    %v1894 = vmul.f32 %v1852, %v1886
    %v1895 = vmul.f32 %v1854, %v1887
    %v1896 = vmul.f32 %v1856, %v1888
    %v1897 = vld [vmem:[%s6] sm:$0xff]
    %v1898 = vld [vmem:[%s6 + $0x8] sm:$0xff]
    %v1899 = vld [vmem:[%s6 + $0x10] sm:$0xff]
    %v1900 = vld [vmem:[%s6 + $0x18] sm:$0xff]
    %v1902 = vsel %vm1808, %v1889, 0
    %1904 = vmatprep.subr.mxu0 0.0
    %1905 = vmatpush1.msra.mxu0 %v331
    %1906 = vmatprep.subr.mxu0 0.0
    %1907 = vmatpush1.msra.mxu0 %v336
    %1908 = vmatprep.subr.mxu0 0.0
    %1909 = vmatpush1.msra.mxu0 0.0
    %1910 = vmatprep.subr.mxu0 0.0
    %1911 = vmatpush1.msra.mxu0 0.0
    %1912 = vmatprep.subr.mxu0 0.0
    %1913 = vmatpush1.msra.mxu0 0.0
    %1914 = vmatprep.subr.mxu0 0.0
    %1915 = vmatpush1.msra.mxu0 0.0
    %1916 = vmatprep.subr.mxu0 0.0
    %1917 = vmatpush1.msra.mxu0 0.0
    %1918 = vmatprep.subr.mxu0 0.0
    %1919 = vmatpush1.msra.mxu0 0.0
    %1920 = vmatprep.subr.mxu0 0.0
    %1921 = vmatpush1.msra.mxu0 0.0
    %1922 = vmatprep.subr.mxu0 0.0
    %1923 = vmatpush1.msra.mxu0 0.0
    %1924 = vmatprep.subr.mxu0 0.0
    %1925 = vmatpush1.msra.mxu0 0.0
    %1926 = vmatprep.subr.mxu0 0.0
    %1927 = vmatpush1.msra.mxu0 0.0
    %1928 = vmatprep.subr.mxu0 0.0
    %1929 = vmatpush1.msra.mxu0 0.0
    %1930 = vmatprep.subr.mxu0 0.0
    %1931 = vmatpush1.msra.mxu0 0.0
    %1932 = vmatprep.subr.mxu0 0.0
    %1933 = vmatpush1.msra.mxu0 0.0
    %1934 = vmatprep.subr.mxu0 0.0
    %1935 = vmatpush1.msra.mxu0 0.0
    %1936 = vmatprep.subr.mxu0 0.0
    %1937 = vmatpush1.msra.mxu0 0.0
    %1938 = vmatprep.subr.mxu0 0.0
    %1939 = vmatpush1.msra.mxu0 0.0
    %1940 = vmatprep.subr.mxu0 0.0
    %1941 = vmatpush1.msra.mxu0 0.0
    %1942 = vmatprep.subr.mxu0 0.0
    %1943 = vmatpush1.msra.mxu0 0.0
    %1944 = vmatprep.subr.mxu0 0.0
    %1945 = vmatpush1.msra.mxu0 0.0
    %1946 = vmatprep.subr.mxu0 0.0
    %1947 = vmatpush1.msra.mxu0 0.0
    %1948 = vmatprep.subr.mxu0 0.0
    %1949 = vmatpush1.msra.mxu0 0.0
    %1950 = vmatprep.subr.mxu0 0.0
    %1951 = vmatpush1.msra.mxu0 0.0
    %1952 = vmatprep.subr.mxu0 0.0
    %1953 = vmatpush1.msra.mxu0 0.0
    %1954 = vmatprep.subr.mxu0 0.0
    %1955 = vmatpush1.msra.mxu0 0.0
    %1956 = vmatprep.subr.mxu0 0.0
    %1957 = vmatpush1.msra.mxu0 0.0
    %1958 = vmatprep.subr.mxu0 0.0
    %1959 = vmatpush1.msra.mxu0 0.0
    %1960 = vmatprep.subr.mxu0 0.0
    %1961 = vmatpush1.msra.mxu0 0.0
    %1962 = vmatprep.subr.mxu0 0.0
    %1963 = vmatpush1.msra.mxu0 0.0
    %1964 = vmatprep.subr.mxu0 0.0
    %1965 = vmatpush1.msra.mxu0 0.0
    %1966 = vmatprep.subr.mxu0 0.0
    %1967 = vmatpush1.msra.mxu0 0.0
    %1968 = vmatprep.mubr.f32.mxu0 0.0
    %1969 = vmatmul.mubr.f32.gmra.mrb[0].mxu0 %v1902
    %v1970 = vpop.f32.mrb[0].mxu0
    %v1971 = vadd.f32 0.0, %v1970
    %v1972 = vpop.f32.mrb[0].mxu0
    %1973 = vdwg.mxu0
    %v1975 = vsel %vm1808, %v1893, 0
    %1977 = vmatprep.subr.mxu0 0.0
    %1978 = vmatpush1.msra.mxu0 %v341
    %1979 = vmatprep.subr.mxu0 0.0
    %1980 = vmatpush1.msra.mxu0 %v346
    %1981 = vmatprep.subr.mxu0 0.0
    %1982 = vmatpush1.msra.mxu0 0.0
    %1983 = vmatprep.subr.mxu0 0.0
    %1984 = vmatpush1.msra.mxu0 0.0
    %1985 = vmatprep.subr.mxu0 0.0
    %1986 = vmatpush1.msra.mxu0 0.0
    %1987 = vmatprep.subr.mxu0 0.0
    %1988 = vmatpush1.msra.mxu0 0.0
    %1989 = vmatprep.subr.mxu0 0.0
    %1990 = vmatpush1.msra.mxu0 0.0
    %1991 = vmatprep.subr.mxu0 0.0
    %1992 = vmatpush1.msra.mxu0 0.0
    %1993 = vmatprep.subr.mxu0 0.0
    %1994 = vmatpush1.msra.mxu0 0.0
    %1995 = vmatprep.subr.mxu0 0.0
    %1996 = vmatpush1.msra.mxu0 0.0
    %1997 = vmatprep.subr.mxu0 0.0
    %1998 = vmatpush1.msra.mxu0 0.0
    %1999 = vmatprep.subr.mxu0 0.0
    %2000 = vmatpush1.msra.mxu0 0.0
    %2001 = vmatprep.subr.mxu0 0.0
    %2002 = vmatpush1.msra.mxu0 0.0
    %2003 = vmatprep.subr.mxu0 0.0
    %2004 = vmatpush1.msra.mxu0 0.0
    %2005 = vmatprep.subr.mxu0 0.0
    %2006 = vmatpush1.msra.mxu0 0.0
    %2007 = vmatprep.subr.mxu0 0.0
    %2008 = vmatpush1.msra.mxu0 0.0
    %2009 = vmatprep.subr.mxu0 0.0
    %2010 = vmatpush1.msra.mxu0 0.0
    %2011 = vmatprep.subr.mxu0 0.0
    %2012 = vmatpush1.msra.mxu0 0.0
    %2013 = vmatprep.subr.mxu0 0.0
    %2014 = vmatpush1.msra.mxu0 0.0
    %2015 = vmatprep.subr.mxu0 0.0
    %2016 = vmatpush1.msra.mxu0 0.0
    %2017 = vmatprep.subr.mxu0 0.0
    %2018 = vmatpush1.msra.mxu0 0.0
    %2019 = vmatprep.subr.mxu0 0.0
    %2020 = vmatpush1.msra.mxu0 0.0
    %2021 = vmatprep.subr.mxu0 0.0
    %2022 = vmatpush1.msra.mxu0 0.0
    %2023 = vmatprep.subr.mxu0 0.0
    %2024 = vmatpush1.msra.mxu0 0.0
    %2025 = vmatprep.subr.mxu0 0.0
    %2026 = vmatpush1.msra.mxu0 0.0
    %2027 = vmatprep.subr.mxu0 0.0
    %2028 = vmatpush1.msra.mxu0 0.0
    %2029 = vmatprep.subr.mxu0 0.0
    %2030 = vmatpush1.msra.mxu0 0.0
    %2031 = vmatprep.subr.mxu0 0.0
    %2032 = vmatpush1.msra.mxu0 0.0
    %2033 = vmatprep.subr.mxu0 0.0
    %2034 = vmatpush1.msra.mxu0 0.0
    %2035 = vmatprep.subr.mxu0 0.0
    %2036 = vmatpush1.msra.mxu0 0.0
    %2037 = vmatprep.subr.mxu0 0.0
    %2038 = vmatpush1.msra.mxu0 0.0
    %2039 = vmatprep.subr.mxu0 0.0
    %2040 = vmatpush1.msra.mxu0 0.0
    %2041 = vmatprep.mubr.f32.mxu0 0.0
    %2042 = vmatmul.mubr.f32.gmra.mrb[0].mxu0 %v1975
    %v2043 = vpop.f32.mrb[0].mxu0
    %v2044 = vadd.f32 0.0, %v2043
    %v2045 = vpop.f32.mrb[0].mxu0
    %2046 = vdwg.mxu0
    %v2048 = vsel %vm1808, %v1890, 0
    %2050 = vmatprep.subr.mxu0 0.0
    %2051 = vmatpush1.msra.mxu0 %v603
    %2052 = vmatprep.subr.mxu0 0.0
    %2053 = vmatpush1.msra.mxu0 %v608
    %2054 = vmatprep.subr.mxu0 0.0
    %2055 = vmatpush1.msra.mxu0 0.0
    %2056 = vmatprep.subr.mxu0 0.0
    %2057 = vmatpush1.msra.mxu0 0.0
    %2058 = vmatprep.subr.mxu0 0.0
    %2059 = vmatpush1.msra.mxu0 0.0
    %2060 = vmatprep.subr.mxu0 0.0
    %2061 = vmatpush1.msra.mxu0 0.0
    %2062 = vmatprep.subr.mxu0 0.0
    %2063 = vmatpush1.msra.mxu0 0.0
    %2064 = vmatprep.subr.mxu0 0.0
    %2065 = vmatpush1.msra.mxu0 0.0
    %2066 = vmatprep.subr.mxu0 0.0
    %2067 = vmatpush1.msra.mxu0 0.0
    %2068 = vmatprep.subr.mxu0 0.0
    %2069 = vmatpush1.msra.mxu0 0.0
    %2070 = vmatprep.subr.mxu0 0.0
    %2071 = vmatpush1.msra.mxu0 0.0
    %2072 = vmatprep.subr.mxu0 0.0
    %2073 = vmatpush1.msra.mxu0 0.0
    %2074 = vmatprep.subr.mxu0 0.0
    %2075 = vmatpush1.msra.mxu0 0.0
    %2076 = vmatprep.subr.mxu0 0.0
    %2077 = vmatpush1.msra.mxu0 0.0
    %2078 = vmatprep.subr.mxu0 0.0
    %2079 = vmatpush1.msra.mxu0 0.0
    %2080 = vmatprep.subr.mxu0 0.0
    %2081 = vmatpush1.msra.mxu0 0.0
    %2082 = vmatprep.subr.mxu0 0.0
    %2083 = vmatpush1.msra.mxu0 0.0
    %2084 = vmatprep.subr.mxu0 0.0
    %2085 = vmatpush1.msra.mxu0 0.0
    %2086 = vmatprep.subr.mxu0 0.0
    %2087 = vmatpush1.msra.mxu0 0.0
    %2088 = vmatprep.subr.mxu0 0.0
    %2089 = vmatpush1.msra.mxu0 0.0
    %2090 = vmatprep.subr.mxu0 0.0
    %2091 = vmatpush1.msra.mxu0 0.0
    %2092 = vmatprep.subr.mxu0 0.0
    %2093 = vmatpush1.msra.mxu0 0.0
    %2094 = vmatprep.subr.mxu0 0.0
    %2095 = vmatpush1.msra.mxu0 0.0
    %2096 = vmatprep.subr.mxu0 0.0
    %2097 = vmatpush1.msra.mxu0 0.0
    %2098 = vmatprep.subr.mxu0 0.0
    %2099 = vmatpush1.msra.mxu0 0.0
    %2100 = vmatprep.subr.mxu0 0.0
    %2101 = vmatpush1.msra.mxu0 0.0
    %2102 = vmatprep.subr.mxu0 0.0
    %2103 = vmatpush1.msra.mxu0 0.0
    %2104 = vmatprep.subr.mxu0 0.0
    %2105 = vmatpush1.msra.mxu0 0.0
    %2106 = vmatprep.subr.mxu0 0.0
    %2107 = vmatpush1.msra.mxu0 0.0
    %2108 = vmatprep.subr.mxu0 0.0
    %2109 = vmatpush1.msra.mxu0 0.0
    %2110 = vmatprep.subr.mxu0 0.0
    %2111 = vmatpush1.msra.mxu0 0.0
    %2112 = vmatprep.subr.mxu0 0.0
    %2113 = vmatpush1.msra.mxu0 0.0
    %2114 = vmatprep.mubr.f32.mxu0 0.0
    %2115 = vmatmul.mubr.f32.gmra.mrb[0].mxu0 %v2048
    %v2116 = vpop.f32.mrb[0].mxu0
    %v2117 = vadd.f32 0.0, %v2116
    %v2118 = vpop.f32.mrb[0].mxu0
    %2119 = vdwg.mxu0
    %v2121 = vsel %vm1808, %v1894, 0
    %2123 = vmatprep.subr.mxu0 0.0
    %2124 = vmatpush1.msra.mxu0 %v613
    %2125 = vmatprep.subr.mxu0 0.0
    %2126 = vmatpush1.msra.mxu0 %v618
    %2127 = vmatprep.subr.mxu0 0.0
    %2128 = vmatpush1.msra.mxu0 0.0
    %2129 = vmatprep.subr.mxu0 0.0
    %2130 = vmatpush1.msra.mxu0 0.0
    %2131 = vmatprep.subr.mxu0 0.0
    %2132 = vmatpush1.msra.mxu0 0.0
    %2133 = vmatprep.subr.mxu0 0.0
    %2134 = vmatpush1.msra.mxu0 0.0
    %2135 = vmatprep.subr.mxu0 0.0
    %2136 = vmatpush1.msra.mxu0 0.0
    %2137 = vmatprep.subr.mxu0 0.0
    %2138 = vmatpush1.msra.mxu0 0.0
    %2139 = vmatprep.subr.mxu0 0.0
    %2140 = vmatpush1.msra.mxu0 0.0
    %2141 = vmatprep.subr.mxu0 0.0
    %2142 = vmatpush1.msra.mxu0 0.0
    %2143 = vmatprep.subr.mxu0 0.0
    %2144 = vmatpush1.msra.mxu0 0.0
    %2145 = vmatprep.subr.mxu0 0.0
    %2146 = vmatpush1.msra.mxu0 0.0
    %2147 = vmatprep.subr.mxu0 0.0
    %2148 = vmatpush1.msra.mxu0 0.0
    %2149 = vmatprep.subr.mxu0 0.0
    %2150 = vmatpush1.msra.mxu0 0.0
    %2151 = vmatprep.subr.mxu0 0.0
    %2152 = vmatpush1.msra.mxu0 0.0
    %2153 = vmatprep.subr.mxu0 0.0
    %2154 = vmatpush1.msra.mxu0 0.0
    %2155 = vmatprep.subr.mxu0 0.0
    %2156 = vmatpush1.msra.mxu0 0.0
    %2157 = vmatprep.subr.mxu0 0.0
    %2158 = vmatpush1.msra.mxu0 0.0
    %2159 = vmatprep.subr.mxu0 0.0
    %2160 = vmatpush1.msra.mxu0 0.0
    %2161 = vmatprep.subr.mxu0 0.0
    %2162 = vmatpush1.msra.mxu0 0.0
    %2163 = vmatprep.subr.mxu0 0.0
    %2164 = vmatpush1.msra.mxu0 0.0
    %2165 = vmatprep.subr.mxu0 0.0
    %2166 = vmatpush1.msra.mxu0 0.0
    %2167 = vmatprep.subr.mxu0 0.0
    %2168 = vmatpush1.msra.mxu0 0.0
    %2169 = vmatprep.subr.mxu0 0.0
    %2170 = vmatpush1.msra.mxu0 0.0
    %2171 = vmatprep.subr.mxu0 0.0
    %2172 = vmatpush1.msra.mxu0 0.0
    %2173 = vmatprep.subr.mxu0 0.0
    %2174 = vmatpush1.msra.mxu0 0.0
    %2175 = vmatprep.subr.mxu0 0.0
    %2176 = vmatpush1.msra.mxu0 0.0
    %2177 = vmatprep.subr.mxu0 0.0
    %2178 = vmatpush1.msra.mxu0 0.0
    %2179 = vmatprep.subr.mxu0 0.0
    %2180 = vmatpush1.msra.mxu0 0.0
    %2181 = vmatprep.subr.mxu0 0.0
    %2182 = vmatpush1.msra.mxu0 0.0
    %2183 = vmatprep.subr.mxu0 0.0
    %2184 = vmatpush1.msra.mxu0 0.0
    %2185 = vmatprep.subr.mxu0 0.0
    %2186 = vmatpush1.msra.mxu0 0.0
    %2187 = vmatprep.mubr.f32.mxu0 0.0
    %2188 = vmatmul.mubr.f32.gmra.mrb[0].mxu0 %v2121
    %v2189 = vpop.f32.mrb[0].mxu0
    %v2190 = vadd.f32 0.0, %v2189
    %v2191 = vpop.f32.mrb[0].mxu0
    %2192 = vdwg.mxu0
    %v2194 = vsel %vm1171, %v2117, 0
    %v2197 = vsel %vm1171, %v2190, 0
    %2199 = vmatprep.subr.mxu0 0.0
    %2200 = vmatpush1.msra.mxu0 %v1898
    %2201 = vmatprep.subr.mxu0 0.0
    %2202 = vmatpush1.msra.mxu0 0.0
    %2203 = vmatprep.subr.mxu0 0.0
    %2204 = vmatpush1.msra.mxu0 0.0
    %2205 = vmatprep.subr.mxu0 0.0
    %2206 = vmatpush1.msra.mxu0 0.0
    %2207 = vmatprep.subr.mxu0 0.0
    %2208 = vmatpush1.msra.mxu0 0.0
    %2209 = vmatprep.subr.mxu0 0.0
    %2210 = vmatpush1.msra.mxu0 0.0
    %2211 = vmatprep.subr.mxu0 0.0
    %2212 = vmatpush1.msra.mxu0 0.0
    %2213 = vmatprep.subr.mxu0 0.0
    %2214 = vmatpush1.msra.mxu0 0.0
    %2215 = vmatprep.subr.mxu0 0.0
    %2216 = vmatpush1.msra.mxu0 0.0
    %2217 = vmatprep.subr.mxu0 0.0
    %2218 = vmatpush1.msra.mxu0 0.0
    %2219 = vmatprep.subr.mxu0 0.0
    %2220 = vmatpush1.msra.mxu0 0.0
    %2221 = vmatprep.subr.mxu0 0.0
    %2222 = vmatpush1.msra.mxu0 0.0
    %2223 = vmatprep.subr.mxu0 0.0
    %2224 = vmatpush1.msra.mxu0 0.0
    %2225 = vmatprep.subr.mxu0 0.0
    %2226 = vmatpush1.msra.mxu0 0.0
    %2227 = vmatprep.subr.mxu0 0.0
    %2228 = vmatpush1.msra.mxu0 0.0
    %2229 = vmatprep.subr.mxu0 0.0
    %2230 = vmatpush1.msra.mxu0 0.0
    %2231 = vmatprep.subr.mxu0 0.0
    %2232 = vmatpush1.msra.mxu0 0.0
    %2233 = vmatprep.subr.mxu0 0.0
    %2234 = vmatpush1.msra.mxu0 0.0
    %2235 = vmatprep.subr.mxu0 0.0
    %2236 = vmatpush1.msra.mxu0 0.0
    %2237 = vmatprep.subr.mxu0 0.0
    %2238 = vmatpush1.msra.mxu0 0.0
    %2239 = vmatprep.subr.mxu0 0.0
    %2240 = vmatpush1.msra.mxu0 0.0
    %2241 = vmatprep.subr.mxu0 0.0
    %2242 = vmatpush1.msra.mxu0 0.0
    %2243 = vmatprep.subr.mxu0 0.0
    %2244 = vmatpush1.msra.mxu0 0.0
    %2245 = vmatprep.subr.mxu0 0.0
    %2246 = vmatpush1.msra.mxu0 0.0
    %2247 = vmatprep.subr.mxu0 0.0
    %2248 = vmatpush1.msra.mxu0 0.0
    %2249 = vmatprep.subr.mxu0 0.0
    %2250 = vmatpush1.msra.mxu0 0.0
    %2251 = vmatprep.subr.mxu0 0.0
    %2252 = vmatpush1.msra.mxu0 0.0
    %2253 = vmatprep.subr.mxu0 0.0
    %2254 = vmatpush1.msra.mxu0 0.0
    %2255 = vmatprep.subr.mxu0 0.0
    %2256 = vmatpush1.msra.mxu0 0.0
    %2257 = vmatprep.subr.mxu0 0.0
    %2258 = vmatpush1.msra.mxu0 0.0
    %2259 = vmatprep.subr.mxu0 0.0
    %2260 = vmatpush1.msra.mxu0 0.0
    %2261 = vmatprep.subr.mxu0 0.0
    %2262 = vmatpush1.msra.mxu0 0.0
    %2263 = vmatprep.mubr.f32.mxu0 0.0
    %2264 = vmatmul.mubr.f32.gmra.mrb[0].mxu0 %v2194
    %v2265 = vpop.f32.mrb[0].mxu0
    %v2266 = vadd.f32 0.0, %v2265
    %v2267 = vpop.f32.mrb[0].mxu0
    %2268 = vmatprep.mubr.f32.mxu0 0.0
    %2269 = vmatmul.mubr.f32.gmra.mrb[0].mxu0 %v2197
    %v2270 = vpop.f32.mrb[0].mxu0
    %v2271 = vadd.f32 0.0, %v2270
    %v2272 = vpop.f32.mrb[0].mxu0
    %2273 = vdwg.mxu0
    %v2275 = vsel %vm1171, %v1971, 0
    %v2278 = vsel %vm1171, %v2044, 0
    %2280 = vmatprep.subr.mxu0 0.0
    %2281 = vmatpush1.msra.mxu0 %v1897
    %2282 = vmatprep.subr.mxu0 0.0
    %2283 = vmatpush1.msra.mxu0 0.0
    %2284 = vmatprep.subr.mxu0 0.0
    %2285 = vmatpush1.msra.mxu0 0.0
    %2286 = vmatprep.subr.mxu0 0.0
    %2287 = vmatpush1.msra.mxu0 0.0
    %2288 = vmatprep.subr.mxu0 0.0
    %2289 = vmatpush1.msra.mxu0 0.0
    %2290 = vmatprep.subr.mxu0 0.0
    %2291 = vmatpush1.msra.mxu0 0.0
    %2292 = vmatprep.subr.mxu0 0.0
    %2293 = vmatpush1.msra.mxu0 0.0
    %2294 = vmatprep.subr.mxu0 0.0
    %2295 = vmatpush1.msra.mxu0 0.0
    %2296 = vmatprep.subr.mxu0 0.0
    %2297 = vmatpush1.msra.mxu0 0.0
    %2298 = vmatprep.subr.mxu0 0.0
    %2299 = vmatpush1.msra.mxu0 0.0
    %2300 = vmatprep.subr.mxu0 0.0
    %2301 = vmatpush1.msra.mxu0 0.0
    %2302 = vmatprep.subr.mxu0 0.0
    %2303 = vmatpush1.msra.mxu0 0.0
    %2304 = vmatprep.subr.mxu0 0.0
    %2305 = vmatpush1.msra.mxu0 0.0
    %2306 = vmatprep.subr.mxu0 0.0
    %2307 = vmatpush1.msra.mxu0 0.0
    %2308 = vmatprep.subr.mxu0 0.0
    %2309 = vmatpush1.msra.mxu0 0.0
    %2310 = vmatprep.subr.mxu0 0.0
    %2311 = vmatpush1.msra.mxu0 0.0
    %2312 = vmatprep.subr.mxu0 0.0
    %2313 = vmatpush1.msra.mxu0 0.0
    %2314 = vmatprep.subr.mxu0 0.0
    %2315 = vmatpush1.msra.mxu0 0.0
    %2316 = vmatprep.subr.mxu0 0.0
    %2317 = vmatpush1.msra.mxu0 0.0
    %2318 = vmatprep.subr.mxu0 0.0
    %2319 = vmatpush1.msra.mxu0 0.0
    %2320 = vmatprep.subr.mxu0 0.0
    %2321 = vmatpush1.msra.mxu0 0.0
    %2322 = vmatprep.subr.mxu0 0.0
    %2323 = vmatpush1.msra.mxu0 0.0
    %2324 = vmatprep.subr.mxu0 0.0
    %2325 = vmatpush1.msra.mxu0 0.0
    %2326 = vmatprep.subr.mxu0 0.0
    %2327 = vmatpush1.msra.mxu0 0.0
    %2328 = vmatprep.subr.mxu0 0.0
    %2329 = vmatpush1.msra.mxu0 0.0
    %2330 = vmatprep.subr.mxu0 0.0
    %2331 = vmatpush1.msra.mxu0 0.0
    %2332 = vmatprep.subr.mxu0 0.0
    %2333 = vmatpush1.msra.mxu0 0.0
    %2334 = vmatprep.subr.mxu0 0.0
    %2335 = vmatpush1.msra.mxu0 0.0
    %2336 = vmatprep.subr.mxu0 0.0
    %2337 = vmatpush1.msra.mxu0 0.0
    %2338 = vmatprep.subr.mxu0 0.0
    %2339 = vmatpush1.msra.mxu0 0.0
    %2340 = vmatprep.subr.mxu0 0.0
    %2341 = vmatpush1.msra.mxu0 0.0
    %2342 = vmatprep.subr.mxu0 0.0
    %2343 = vmatpush1.msra.mxu0 0.0
    %2344 = vmatprep.mubr.f32.mxu0 0.0
    %2345 = vmatmul.mubr.f32.gmra.mrb[0].mxu0 %v2275
    %v2346 = vpop.f32.mrb[0].mxu0
    %v2347 = vadd.f32 %v2266, %v2346
    %v2348 = vpop.f32.mrb[0].mxu0
    %2349 = vmatprep.mubr.f32.mxu0 0.0
    %2350 = vmatmul.mubr.f32.gmra.mrb[0].mxu0 %v2278
    %v2351 = vpop.f32.mrb[0].mxu0
    %v2352 = vadd.f32 %v2271, %v2351
    %v2353 = vpop.f32.mrb[0].mxu0
    %2354 = vdwg.mxu0
    %v2356 = vsel %vm1808, %v1891, 0
    %2358 = vmatprep.subr.mxu0 0.0
    %2359 = vmatpush1.msra.mxu0 %v875
    %2360 = vmatprep.subr.mxu0 0.0
    %2361 = vmatpush1.msra.mxu0 %v880
    %2362 = vmatprep.subr.mxu0 0.0
    %2363 = vmatpush1.msra.mxu0 0.0
    %2364 = vmatprep.subr.mxu0 0.0
    %2365 = vmatpush1.msra.mxu0 0.0
    %2366 = vmatprep.subr.mxu0 0.0
    %2367 = vmatpush1.msra.mxu0 0.0
    %2368 = vmatprep.subr.mxu0 0.0
    %2369 = vmatpush1.msra.mxu0 0.0
    %2370 = vmatprep.subr.mxu0 0.0
    %2371 = vmatpush1.msra.mxu0 0.0
    %2372 = vmatprep.subr.mxu0 0.0
    %2373 = vmatpush1.msra.mxu0 0.0
    %2374 = vmatprep.subr.mxu0 0.0
    %2375 = vmatpush1.msra.mxu0 0.0
    %2376 = vmatprep.subr.mxu0 0.0
    %2377 = vmatpush1.msra.mxu0 0.0
    %2378 = vmatprep.subr.mxu0 0.0
    %2379 = vmatpush1.msra.mxu0 0.0
    %2380 = vmatprep.subr.mxu0 0.0
    %2381 = vmatpush1.msra.mxu0 0.0
    %2382 = vmatprep.subr.mxu0 0.0
    %2383 = vmatpush1.msra.mxu0 0.0
    %2384 = vmatprep.subr.mxu0 0.0
    %2385 = vmatpush1.msra.mxu0 0.0
    %2386 = vmatprep.subr.mxu0 0.0
    %2387 = vmatpush1.msra.mxu0 0.0
    %2388 = vmatprep.subr.mxu0 0.0
    %2389 = vmatpush1.msra.mxu0 0.0
    %2390 = vmatprep.subr.mxu0 0.0
    %2391 = vmatpush1.msra.mxu0 0.0
    %2392 = vmatprep.subr.mxu0 0.0
    %2393 = vmatpush1.msra.mxu0 0.0
    %2394 = vmatprep.subr.mxu0 0.0
    %2395 = vmatpush1.msra.mxu0 0.0
    %2396 = vmatprep.subr.mxu0 0.0
    %2397 = vmatpush1.msra.mxu0 0.0
    %2398 = vmatprep.subr.mxu0 0.0
    %2399 = vmatpush1.msra.mxu0 0.0
    %2400 = vmatprep.subr.mxu0 0.0
    %2401 = vmatpush1.msra.mxu0 0.0
    %2402 = vmatprep.subr.mxu0 0.0
    %2403 = vmatpush1.msra.mxu0 0.0
    %2404 = vmatprep.subr.mxu0 0.0
    %2405 = vmatpush1.msra.mxu0 0.0
    %2406 = vmatprep.subr.mxu0 0.0
    %2407 = vmatpush1.msra.mxu0 0.0
    %2408 = vmatprep.subr.mxu0 0.0
    %2409 = vmatpush1.msra.mxu0 0.0
    %2410 = vmatprep.subr.mxu0 0.0
    %2411 = vmatpush1.msra.mxu0 0.0
    %2412 = vmatprep.subr.mxu0 0.0
    %2413 = vmatpush1.msra.mxu0 0.0
    %2414 = vmatprep.subr.mxu0 0.0
    %2415 = vmatpush1.msra.mxu0 0.0
    %2416 = vmatprep.subr.mxu0 0.0
    %2417 = vmatpush1.msra.mxu0 0.0
    %2418 = vmatprep.subr.mxu0 0.0
    %2419 = vmatpush1.msra.mxu0 0.0
    %2420 = vmatprep.subr.mxu0 0.0
    %2421 = vmatpush1.msra.mxu0 0.0
    %2422 = vmatprep.mubr.f32.mxu0 0.0
    %2423 = vmatmul.mubr.f32.gmra.mrb[0].mxu0 %v2356
    %v2424 = vpop.f32.mrb[0].mxu0
    %v2425 = vadd.f32 0.0, %v2424
    %v2426 = vpop.f32.mrb[0].mxu0
    %2427 = vdwg.mxu0
    %v2429 = vsel %vm1808, %v1895, 0
    %2431 = vmatprep.subr.mxu0 0.0
    %2432 = vmatpush1.msra.mxu0 %v885
    %2433 = vmatprep.subr.mxu0 0.0
    %2434 = vmatpush1.msra.mxu0 %v890
    %2435 = vmatprep.subr.mxu0 0.0
    %2436 = vmatpush1.msra.mxu0 0.0
    %2437 = vmatprep.subr.mxu0 0.0
    %2438 = vmatpush1.msra.mxu0 0.0
    %2439 = vmatprep.subr.mxu0 0.0
    %2440 = vmatpush1.msra.mxu0 0.0
    %2441 = vmatprep.subr.mxu0 0.0
    %2442 = vmatpush1.msra.mxu0 0.0
    %2443 = vmatprep.subr.mxu0 0.0
    %2444 = vmatpush1.msra.mxu0 0.0
    %2445 = vmatprep.subr.mxu0 0.0
    %2446 = vmatpush1.msra.mxu0 0.0
    %2447 = vmatprep.subr.mxu0 0.0
    %2448 = vmatpush1.msra.mxu0 0.0
    %2449 = vmatprep.subr.mxu0 0.0
    %2450 = vmatpush1.msra.mxu0 0.0
    %2451 = vmatprep.subr.mxu0 0.0
    %2452 = vmatpush1.msra.mxu0 0.0
    %2453 = vmatprep.subr.mxu0 0.0
    %2454 = vmatpush1.msra.mxu0 0.0
    %2455 = vmatprep.subr.mxu0 0.0
    %2456 = vmatpush1.msra.mxu0 0.0
    %2457 = vmatprep.subr.mxu0 0.0
    %2458 = vmatpush1.msra.mxu0 0.0
    %2459 = vmatprep.subr.mxu0 0.0
    %2460 = vmatpush1.msra.mxu0 0.0
    %2461 = vmatprep.subr.mxu0 0.0
    %2462 = vmatpush1.msra.mxu0 0.0
    %2463 = vmatprep.subr.mxu0 0.0
    %2464 = vmatpush1.msra.mxu0 0.0
    %2465 = vmatprep.subr.mxu0 0.0
    %2466 = vmatpush1.msra.mxu0 0.0
    %2467 = vmatprep.subr.mxu0 0.0
    %2468 = vmatpush1.msra.mxu0 0.0
    %2469 = vmatprep.subr.mxu0 0.0
    %2470 = vmatpush1.msra.mxu0 0.0
    %2471 = vmatprep.subr.mxu0 0.0
    %2472 = vmatpush1.msra.mxu0 0.0
    %2473 = vmatprep.subr.mxu0 0.0
    %2474 = vmatpush1.msra.mxu0 0.0
    %2475 = vmatprep.subr.mxu0 0.0
    %2476 = vmatpush1.msra.mxu0 0.0
    %2477 = vmatprep.subr.mxu0 0.0
    %2478 = vmatpush1.msra.mxu0 0.0
    %2479 = vmatprep.subr.mxu0 0.0
    %2480 = vmatpush1.msra.mxu0 0.0
    %2481 = vmatprep.subr.mxu0 0.0
    %2482 = vmatpush1.msra.mxu0 0.0
    %2483 = vmatprep.subr.mxu0 0.0
    %2484 = vmatpush1.msra.mxu0 0.0
    %2485 = vmatprep.subr.mxu0 0.0
    %2486 = vmatpush1.msra.mxu0 0.0
    %2487 = vmatprep.subr.mxu0 0.0
    %2488 = vmatpush1.msra.mxu0 0.0
    %2489 = vmatprep.subr.mxu0 0.0
    %2490 = vmatpush1.msra.mxu0 0.0
    %2491 = vmatprep.subr.mxu0 0.0
    %2492 = vmatpush1.msra.mxu0 0.0
    %2493 = vmatprep.subr.mxu0 0.0
    %2494 = vmatpush1.msra.mxu0 0.0
    %2495 = vmatprep.mubr.f32.mxu0 0.0
    %2496 = vmatmul.mubr.f32.gmra.mrb[0].mxu0 %v2429
    %v2497 = vpop.f32.mrb[0].mxu0
    %v2498 = vadd.f32 0.0, %v2497
    %v2499 = vpop.f32.mrb[0].mxu0
    %2500 = vdwg.mxu0
    %v2502 = vsel %vm1171, %v2425, 0
    %v2505 = vsel %vm1171, %v2498, 0
    %2507 = vmatprep.subr.mxu0 0.0
    %2508 = vmatpush1.msra.mxu0 %v1899
    %2509 = vmatprep.subr.mxu0 0.0
    %2510 = vmatpush1.msra.mxu0 0.0
    %2511 = vmatprep.subr.mxu0 0.0
    %2512 = vmatpush1.msra.mxu0 0.0
    %2513 = vmatprep.subr.mxu0 0.0
    %2514 = vmatpush1.msra.mxu0 0.0
    %2515 = vmatprep.subr.mxu0 0.0
    %2516 = vmatpush1.msra.mxu0 0.0
    %2517 = vmatprep.subr.mxu0 0.0
    %2518 = vmatpush1.msra.mxu0 0.0
    %2519 = vmatprep.subr.mxu0 0.0
    %2520 = vmatpush1.msra.mxu0 0.0
    %2521 = vmatprep.subr.mxu0 0.0
    %2522 = vmatpush1.msra.mxu0 0.0
    %2523 = vmatprep.subr.mxu0 0.0
    %2524 = vmatpush1.msra.mxu0 0.0
    %2525 = vmatprep.subr.mxu0 0.0
    %2526 = vmatpush1.msra.mxu0 0.0
    %2527 = vmatprep.subr.mxu0 0.0
    %2528 = vmatpush1.msra.mxu0 0.0
    %2529 = vmatprep.subr.mxu0 0.0
    %2530 = vmatpush1.msra.mxu0 0.0
    %2531 = vmatprep.subr.mxu0 0.0
    %2532 = vmatpush1.msra.mxu0 0.0
    %2533 = vmatprep.subr.mxu0 0.0
    %2534 = vmatpush1.msra.mxu0 0.0
    %2535 = vmatprep.subr.mxu0 0.0
    %2536 = vmatpush1.msra.mxu0 0.0
    %2537 = vmatprep.subr.mxu0 0.0
    %2538 = vmatpush1.msra.mxu0 0.0
    %2539 = vmatprep.subr.mxu0 0.0
    %2540 = vmatpush1.msra.mxu0 0.0
    %2541 = vmatprep.subr.mxu0 0.0
    %2542 = vmatpush1.msra.mxu0 0.0
    %2543 = vmatprep.subr.mxu0 0.0
    %2544 = vmatpush1.msra.mxu0 0.0
    %2545 = vmatprep.subr.mxu0 0.0
    %2546 = vmatpush1.msra.mxu0 0.0
    %2547 = vmatprep.subr.mxu0 0.0
    %2548 = vmatpush1.msra.mxu0 0.0
    %2549 = vmatprep.subr.mxu0 0.0
    %2550 = vmatpush1.msra.mxu0 0.0
    %2551 = vmatprep.subr.mxu0 0.0
    %2552 = vmatpush1.msra.mxu0 0.0
    %2553 = vmatprep.subr.mxu0 0.0
    %2554 = vmatpush1.msra.mxu0 0.0
    %2555 = vmatprep.subr.mxu0 0.0
    %2556 = vmatpush1.msra.mxu0 0.0
    %2557 = vmatprep.subr.mxu0 0.0
    %2558 = vmatpush1.msra.mxu0 0.0
    %2559 = vmatprep.subr.mxu0 0.0
    %2560 = vmatpush1.msra.mxu0 0.0
    %2561 = vmatprep.subr.mxu0 0.0
    %2562 = vmatpush1.msra.mxu0 0.0
    %2563 = vmatprep.subr.mxu0 0.0
    %2564 = vmatpush1.msra.mxu0 0.0
    %2565 = vmatprep.subr.mxu0 0.0
    %2566 = vmatpush1.msra.mxu0 0.0
    %2567 = vmatprep.subr.mxu0 0.0
    %2568 = vmatpush1.msra.mxu0 0.0
    %2569 = vmatprep.subr.mxu0 0.0
    %2570 = vmatpush1.msra.mxu0 0.0
    %2571 = vmatprep.mubr.f32.mxu0 0.0
    %2572 = vmatmul.mubr.f32.gmra.mrb[0].mxu0 %v2502
    %v2573 = vpop.f32.mrb[0].mxu0
    %v2574 = vadd.f32 0.0, %v2573
    %v2575 = vpop.f32.mrb[0].mxu0
    %2576 = vmatprep.mubr.f32.mxu0 0.0
    %2577 = vmatmul.mubr.f32.gmra.mrb[0].mxu0 %v2505
    %v2578 = vpop.f32.mrb[0].mxu0
    %v2579 = vadd.f32 0.0, %v2578
    %v2580 = vpop.f32.mrb[0].mxu0
    %2581 = vdwg.mxu0
    %v2582 = vadd.f32 %v2347, %v2574
    %v2583 = vadd.f32 %v2352, %v2579
    %v2585 = vsel %vm1808, %v1892, 0
    %2587 = vmatprep.subr.mxu0 0.0
    %2588 = vmatpush1.msra.mxu0 %v1147
    %2589 = vmatprep.subr.mxu0 0.0
    %2590 = vmatpush1.msra.mxu0 %v1152
    %2591 = vmatprep.subr.mxu0 0.0
    %2592 = vmatpush1.msra.mxu0 0.0
    %2593 = vmatprep.subr.mxu0 0.0
    %2594 = vmatpush1.msra.mxu0 0.0
    %2595 = vmatprep.subr.mxu0 0.0
    %2596 = vmatpush1.msra.mxu0 0.0
    %2597 = vmatprep.subr.mxu0 0.0
    %2598 = vmatpush1.msra.mxu0 0.0
    %2599 = vmatprep.subr.mxu0 0.0
    %2600 = vmatpush1.msra.mxu0 0.0
    %2601 = vmatprep.subr.mxu0 0.0
    %2602 = vmatpush1.msra.mxu0 0.0
    %2603 = vmatprep.subr.mxu0 0.0
    %2604 = vmatpush1.msra.mxu0 0.0
    %2605 = vmatprep.subr.mxu0 0.0
    %2606 = vmatpush1.msra.mxu0 0.0
    %2607 = vmatprep.subr.mxu0 0.0
    %2608 = vmatpush1.msra.mxu0 0.0
    %2609 = vmatprep.subr.mxu0 0.0
    %2610 = vmatpush1.msra.mxu0 0.0
    %2611 = vmatprep.subr.mxu0 0.0
    %2612 = vmatpush1.msra.mxu0 0.0
    %2613 = vmatprep.subr.mxu0 0.0
    %2614 = vmatpush1.msra.mxu0 0.0
    %2615 = vmatprep.subr.mxu0 0.0
    %2616 = vmatpush1.msra.mxu0 0.0
    %2617 = vmatprep.subr.mxu0 0.0
    %2618 = vmatpush1.msra.mxu0 0.0
    %2619 = vmatprep.subr.mxu0 0.0
    %2620 = vmatpush1.msra.mxu0 0.0
    %2621 = vmatprep.subr.mxu0 0.0
    %2622 = vmatpush1.msra.mxu0 0.0
    %2623 = vmatprep.subr.mxu0 0.0
    %2624 = vmatpush1.msra.mxu0 0.0
    %2625 = vmatprep.subr.mxu0 0.0
    %2626 = vmatpush1.msra.mxu0 0.0
    %2627 = vmatprep.subr.mxu0 0.0
    %2628 = vmatpush1.msra.mxu0 0.0
    %2629 = vmatprep.subr.mxu0 0.0
    %2630 = vmatpush1.msra.mxu0 0.0
    %2631 = vmatprep.subr.mxu0 0.0
    %2632 = vmatpush1.msra.mxu0 0.0
    %2633 = vmatprep.subr.mxu0 0.0
    %2634 = vmatpush1.msra.mxu0 0.0
    %2635 = vmatprep.subr.mxu0 0.0
    %2636 = vmatpush1.msra.mxu0 0.0
    %2637 = vmatprep.subr.mxu0 0.0
    %2638 = vmatpush1.msra.mxu0 0.0
    %2639 = vmatprep.subr.mxu0 0.0
    %2640 = vmatpush1.msra.mxu0 0.0
    %2641 = vmatprep.subr.mxu0 0.0
    %2642 = vmatpush1.msra.mxu0 0.0
    %2643 = vmatprep.subr.mxu0 0.0
    %2644 = vmatpush1.msra.mxu0 0.0
    %2645 = vmatprep.subr.mxu0 0.0
    %2646 = vmatpush1.msra.mxu0 0.0
    %2647 = vmatprep.subr.mxu0 0.0
    %2648 = vmatpush1.msra.mxu0 0.0
    %2649 = vmatprep.subr.mxu0 0.0
    %2650 = vmatpush1.msra.mxu0 0.0
    %2651 = vmatprep.mubr.f32.mxu0 0.0
    %2652 = vmatmul.mubr.f32.gmra.mrb[0].mxu0 %v2585
    %v2653 = vpop.f32.mrb[0].mxu0
    %v2654 = vadd.f32 0.0, %v2653
    %v2655 = vpop.f32.mrb[0].mxu0
    %2656 = vdwg.mxu0
    %v2658 = vsel %vm1808, %v1896, 0
    %2660 = vmatprep.subr.mxu0 0.0
    %2661 = vmatpush1.msra.mxu0 %v1157
    %2662 = vmatprep.subr.mxu0 0.0
    %2663 = vmatpush1.msra.mxu0 %v1162
    %2664 = vmatprep.subr.mxu0 0.0
    %2665 = vmatpush1.msra.mxu0 0.0
    %2666 = vmatprep.subr.mxu0 0.0
    %2667 = vmatpush1.msra.mxu0 0.0
    %2668 = vmatprep.subr.mxu0 0.0
    %2669 = vmatpush1.msra.mxu0 0.0
    %2670 = vmatprep.subr.mxu0 0.0
    %2671 = vmatpush1.msra.mxu0 0.0
    %2672 = vmatprep.subr.mxu0 0.0
    %2673 = vmatpush1.msra.mxu0 0.0
    %2674 = vmatprep.subr.mxu0 0.0
    %2675 = vmatpush1.msra.mxu0 0.0
    %2676 = vmatprep.subr.mxu0 0.0
    %2677 = vmatpush1.msra.mxu0 0.0
    %2678 = vmatprep.subr.mxu0 0.0
    %2679 = vmatpush1.msra.mxu0 0.0
    %2680 = vmatprep.subr.mxu0 0.0
    %2681 = vmatpush1.msra.mxu0 0.0
    %2682 = vmatprep.subr.mxu0 0.0
    %2683 = vmatpush1.msra.mxu0 0.0
    %2684 = vmatprep.subr.mxu0 0.0
    %2685 = vmatpush1.msra.mxu0 0.0
    %2686 = vmatprep.subr.mxu0 0.0
    %2687 = vmatpush1.msra.mxu0 0.0
    %2688 = vmatprep.subr.mxu0 0.0
    %2689 = vmatpush1.msra.mxu0 0.0
    %2690 = vmatprep.subr.mxu0 0.0
    %2691 = vmatpush1.msra.mxu0 0.0
    %2692 = vmatprep.subr.mxu0 0.0
    %2693 = vmatpush1.msra.mxu0 0.0
    %2694 = vmatprep.subr.mxu0 0.0
    %2695 = vmatpush1.msra.mxu0 0.0
    %2696 = vmatprep.subr.mxu0 0.0
    %2697 = vmatpush1.msra.mxu0 0.0
    %2698 = vmatprep.subr.mxu0 0.0
    %2699 = vmatpush1.msra.mxu0 0.0
    %2700 = vmatprep.subr.mxu0 0.0
    %2701 = vmatpush1.msra.mxu0 0.0
    %2702 = vmatprep.subr.mxu0 0.0
    %2703 = vmatpush1.msra.mxu0 0.0
    %2704 = vmatprep.subr.mxu0 0.0
    %2705 = vmatpush1.msra.mxu0 0.0
    %2706 = vmatprep.subr.mxu0 0.0
    %2707 = vmatpush1.msra.mxu0 0.0
    %2708 = vmatprep.subr.mxu0 0.0
    %2709 = vmatpush1.msra.mxu0 0.0
    %2710 = vmatprep.subr.mxu0 0.0
    %2711 = vmatpush1.msra.mxu0 0.0
    %2712 = vmatprep.subr.mxu0 0.0
    %2713 = vmatpush1.msra.mxu0 0.0
    %2714 = vmatprep.subr.mxu0 0.0
    %2715 = vmatpush1.msra.mxu0 0.0
    %2716 = vmatprep.subr.mxu0 0.0
    %2717 = vmatpush1.msra.mxu0 0.0
    %2718 = vmatprep.subr.mxu0 0.0
    %2719 = vmatpush1.msra.mxu0 0.0
    %2720 = vmatprep.subr.mxu0 0.0
    %2721 = vmatpush1.msra.mxu0 0.0
    %2722 = vmatprep.subr.mxu0 0.0
    %2723 = vmatpush1.msra.mxu0 0.0
    %2724 = vmatprep.mubr.f32.mxu0 0.0
    %2725 = vmatmul.mubr.f32.gmra.mrb[0].mxu0 %v2658
    %v2726 = vpop.f32.mrb[0].mxu0
    %v2727 = vadd.f32 0.0, %v2726
    %v2728 = vpop.f32.mrb[0].mxu0
    %2729 = vdwg.mxu0
    %v2731 = vsel %vm1171, %v2654, 0
    %v2734 = vsel %vm1171, %v2727, 0
    %2736 = vmatprep.subr.mxu0 0.0
    %2737 = vmatpush1.msra.mxu0 %v1900
    %2738 = vmatprep.subr.mxu0 0.0
    %2739 = vmatpush1.msra.mxu0 0.0
    %2740 = vmatprep.subr.mxu0 0.0
    %2741 = vmatpush1.msra.mxu0 0.0
    %2742 = vmatprep.subr.mxu0 0.0
    %2743 = vmatpush1.msra.mxu0 0.0
    %2744 = vmatprep.subr.mxu0 0.0
    %2745 = vmatpush1.msra.mxu0 0.0
    %2746 = vmatprep.subr.mxu0 0.0
    %2747 = vmatpush1.msra.mxu0 0.0
    %2748 = vmatprep.subr.mxu0 0.0
    %2749 = vmatpush1.msra.mxu0 0.0
    %2750 = vmatprep.subr.mxu0 0.0
    %2751 = vmatpush1.msra.mxu0 0.0
    %2752 = vmatprep.subr.mxu0 0.0
    %2753 = vmatpush1.msra.mxu0 0.0
    %2754 = vmatprep.subr.mxu0 0.0
    %2755 = vmatpush1.msra.mxu0 0.0
    %2756 = vmatprep.subr.mxu0 0.0
    %2757 = vmatpush1.msra.mxu0 0.0
    %2758 = vmatprep.subr.mxu0 0.0
    %2759 = vmatpush1.msra.mxu0 0.0
    %2760 = vmatprep.subr.mxu0 0.0
    %2761 = vmatpush1.msra.mxu0 0.0
    %2762 = vmatprep.subr.mxu0 0.0
    %2763 = vmatpush1.msra.mxu0 0.0
    %2764 = vmatprep.subr.mxu0 0.0
    %2765 = vmatpush1.msra.mxu0 0.0
    %2766 = vmatprep.subr.mxu0 0.0
    %2767 = vmatpush1.msra.mxu0 0.0
    %2768 = vmatprep.subr.mxu0 0.0
    %2769 = vmatpush1.msra.mxu0 0.0
    %2770 = vmatprep.subr.mxu0 0.0
    %2771 = vmatpush1.msra.mxu0 0.0
    %2772 = vmatprep.subr.mxu0 0.0
    %2773 = vmatpush1.msra.mxu0 0.0
    %2774 = vmatprep.subr.mxu0 0.0
    %2775 = vmatpush1.msra.mxu0 0.0
    %2776 = vmatprep.subr.mxu0 0.0
    %2777 = vmatpush1.msra.mxu0 0.0
    %2778 = vmatprep.subr.mxu0 0.0
    %2779 = vmatpush1.msra.mxu0 0.0
    %2780 = vmatprep.subr.mxu0 0.0
    %2781 = vmatpush1.msra.mxu0 0.0
    %2782 = vmatprep.subr.mxu0 0.0
    %2783 = vmatpush1.msra.mxu0 0.0
    %2784 = vmatprep.subr.mxu0 0.0
    %2785 = vmatpush1.msra.mxu0 0.0
    %2786 = vmatprep.subr.mxu0 0.0
    %2787 = vmatpush1.msra.mxu0 0.0
    %2788 = vmatprep.subr.mxu0 0.0
    %2789 = vmatpush1.msra.mxu0 0.0
    %2790 = vmatprep.subr.mxu0 0.0
    %2791 = vmatpush1.msra.mxu0 0.0
    %2792 = vmatprep.subr.mxu0 0.0
    %2793 = vmatpush1.msra.mxu0 0.0
    %2794 = vmatprep.subr.mxu0 0.0
    %2795 = vmatpush1.msra.mxu0 0.0
    %2796 = vmatprep.subr.mxu0 0.0
    %2797 = vmatpush1.msra.mxu0 0.0
    %2798 = vmatprep.subr.mxu0 0.0
    %2799 = vmatpush1.msra.mxu0 0.0
    %2800 = vmatprep.mubr.f32.mxu0 0.0
    %2801 = vmatmul.mubr.f32.gmra.mrb[0].mxu0 %v2731
    %v2802 = vpop.f32.mrb[0].mxu0
    %v2803 = vadd.f32 0.0, %v2802
    %v2804 = vpop.f32.mrb[0].mxu0
    %2805 = vmatprep.mubr.f32.mxu0 0.0
    %2806 = vmatmul.mubr.f32.gmra.mrb[0].mxu0 %v2734
    %v2807 = vpop.f32.mrb[0].mxu0
    %v2808 = vadd.f32 0.0, %v2807
    %v2809 = vpop.f32.mrb[0].mxu0
    %2810 = vdwg.mxu0
    %v2811 = vadd.f32 %v2582, %v2803
    %v2812 = vadd.f32 %v2583, %v2808
    %v2813 = vlaneseq
    %v2814 = vshrl.u32 %v2813, 7
    %v2815 = vsub.s32 0, %v2814
    %v2816 = vrot.slane %v46, %v2815
    %v2817 = vadd.f32 %v2811, %v2816
    %v2818 = vadd.f32 %v2812, %v2816
    %v2819 = vadd.f32 %v30, %v2817
    %v2820 = vadd.f32 %v31, %v2818
    %v2821 = vsel %vm55, %v2819, 0.0
    %2822 = vadd.xlane.f32.xlu0 %v2821
    %v2823 = vpop.xlane.xlu0 %2822
    %v2824 = vsel %vm55, %v2820, 0.0
    %2825 = vadd.xlane.f32.xlu0 %v2824
    %v2826 = vpop.xlane.xlu0 %2825
    %v2827 = vrcp.pop 32.0
    %v2828 = vmul.f32 %v2823, %v2827
    %v2829 = vmul.f32 %v2826, %v2827
    %v2830 = vsub.f32 %v2819, %v2828
    %v2831 = vsub.f32 %v2820, %v2829
    %v2832 = vmul.f32 %v2830, %v2830
    %v2833 = vmul.f32 %v2831, %v2831
    %v2834 = vsel %vm55, %v2832, 0.0
    %2835 = vadd.xlane.f32.xlu0 %v2834
    %v2836 = vpop.xlane.xlu0 %2835
    %v2837 = vsel %vm55, %v2833, 0.0
    %2838 = vadd.xlane.f32.xlu0 %v2837
    %v2839 = vpop.xlane.xlu0 %2838
    %v2840 = vmul.f32 %v2836, %v2827
    %v2841 = vmul.f32 %v2839, %v2827
    %v2842 = vadd.f32 %v2840, 1e-05
    %v2843 = vadd.f32 %v2841, 1e-05
    %v2844 = vrsqrt.pop %v2842
    %v2845 = vrsqrt.pop %v2843
    %v2846 = vmul.f32 %v2830, %v2844
    %v2847 = vmul.f32 %v2831, %v2845
    %v2848 = vlaneseq
    %v2849 = vshrl.u32 %v2848, 7
    %v2850 = vsub.s32 1, %v2849
    %v2851 = vrot.slane %v46, %v2850
    %v2852 = vmul.f32 %v2846, %v2851
    %v2853 = vmul.f32 %v2847, %v2851
    %v2854 = vlaneseq
    %v2855 = vshrl.u32 %v2854, 7
    %v2856 = vsub.s32 2, %v2855
    %v2857 = vrot.slane %v46, %v2856
    %v2858 = vadd.f32 %v2852, %v2857
    %v2859 = vadd.f32 %v2853, %v2857
    %s2860 = scalar_lea.vmem %s6, 32
    %v2861 = vld [vmem:[%s2860] sm:$0xff]
    %v2862 = vld [vmem:[%s2860 + $0x8] sm:$0xff]
    %v2863 = vld [vmem:[%s2860 + $0x10] sm:$0xff]
    %v2864 = vld [vmem:[%s2860 + $0x18] sm:$0xff]
    %v2865 = vlaneseq
    %v2866 = vshrl.u32 %v2865, 7
    %v2867 = vsub.s32 3, %v2866
    %v2868 = vrot.slane %v46, %v2867
    %v2870 = vsel %vm55, %v2858, 0
    %v2873 = vsel %vm55, %v2859, 0
    %2875 = vmatprep.subr.mxu0 0.0
    %2876 = vmatpush1.msra.mxu0 %v2861
    %2877 = vmatprep.subr.mxu0 0.0
    %2878 = vmatpush1.msra.mxu0 %v2862
    %2879 = vmatprep.subr.mxu0 0.0
    %2880 = vmatpush1.msra.mxu0 %v2863
    %2881 = vmatprep.subr.mxu0 0.0
    %2882 = vmatpush1.msra.mxu0 %v2864
    %2883 = vmatprep.subr.mxu0 0.0
    %2884 = vmatpush1.msra.mxu0 0.0
    %2885 = vmatprep.subr.mxu0 0.0
    %2886 = vmatpush1.msra.mxu0 0.0
    %2887 = vmatprep.subr.mxu0 0.0
    %2888 = vmatpush1.msra.mxu0 0.0
    %2889 = vmatprep.subr.mxu0 0.0
    %2890 = vmatpush1.msra.mxu0 0.0
    %2891 = vmatprep.subr.mxu0 0.0
    %2892 = vmatpush1.msra.mxu0 0.0
    %2893 = vmatprep.subr.mxu0 0.0
    %2894 = vmatpush1.msra.mxu0 0.0
    %2895 = vmatprep.subr.mxu0 0.0
    %2896 = vmatpush1.msra.mxu0 0.0
    %2897 = vmatprep.subr.mxu0 0.0
    %2898 = vmatpush1.msra.mxu0 0.0
    %2899 = vmatprep.subr.mxu0 0.0
    %2900 = vmatpush1.msra.mxu0 0.0
    %2901 = vmatprep.subr.mxu0 0.0
    %2902 = vmatpush1.msra.mxu0 0.0
    %2903 = vmatprep.subr.mxu0 0.0
    %2904 = vmatpush1.msra.mxu0 0.0
    %2905 = vmatprep.subr.mxu0 0.0
    %2906 = vmatpush1.msra.mxu0 0.0
    %2907 = vmatprep.subr.mxu0 0.0
    %2908 = vmatpush1.msra.mxu0 0.0
    %2909 = vmatprep.subr.mxu0 0.0
    %2910 = vmatpush1.msra.mxu0 0.0
    %2911 = vmatprep.subr.mxu0 0.0
    %2912 = vmatpush1.msra.mxu0 0.0
    %2913 = vmatprep.subr.mxu0 0.0
    %2914 = vmatpush1.msra.mxu0 0.0
    %2915 = vmatprep.subr.mxu0 0.0
    %2916 = vmatpush1.msra.mxu0 0.0
    %2917 = vmatprep.subr.mxu0 0.0
    %2918 = vmatpush1.msra.mxu0 0.0
    %2919 = vmatprep.subr.mxu0 0.0
    %2920 = vmatpush1.msra.mxu0 0.0
    %2921 = vmatprep.subr.mxu0 0.0
    %2922 = vmatpush1.msra.mxu0 0.0
    %2923 = vmatprep.subr.mxu0 0.0
    %2924 = vmatpush1.msra.mxu0 0.0
    %2925 = vmatprep.subr.mxu0 0.0
    %2926 = vmatpush1.msra.mxu0 0.0
    %2927 = vmatprep.subr.mxu0 0.0
    %2928 = vmatpush1.msra.mxu0 0.0
    %2929 = vmatprep.subr.mxu0 0.0
    %2930 = vmatpush1.msra.mxu0 0.0
    %2931 = vmatprep.subr.mxu0 0.0
    %2932 = vmatpush1.msra.mxu0 0.0
    %2933 = vmatprep.subr.mxu0 0.0
    %2934 = vmatpush1.msra.mxu0 0.0
    %2935 = vmatprep.subr.mxu0 0.0
    %2936 = vmatpush1.msra.mxu0 0.0
    %2937 = vmatprep.subr.mxu0 0.0
    %2938 = vmatpush1.msra.mxu0 0.0
    %2939 = vmatprep.mubr.f32.mxu0 0.0
    %2940 = vmatmul.mubr.f32.gmra.mrb[0].mxu0 %v2870
    %v2941 = vpop.f32.mrb[0].mxu0
    %v2942 = vadd.f32 %v2868, %v2941
    %v2943 = vpop.f32.mrb[0].mxu0
    %2944 = vmatprep.mubr.f32.mxu0 0.0
    %2945 = vmatmul.mubr.f32.gmra.mrb[0].mxu0 %v2873
    %v2946 = vpop.f32.mrb[0].mxu0
    %v2947 = vadd.f32 %v2868, %v2946
    %v2948 = vpop.f32.mrb[0].mxu0
    %2949 = vdwg.mxu0
    %v2950 = vadd.f32 %v2858, %v2942
    %v2951 = vadd.f32 %v2859, %v2947
    %v2952 = vsel %vm55, %v2950, 0.0
    %2953 = vadd.xlane.f32.xlu0 %v2952
    %v2954 = vpop.xlane.xlu0 %2953
    %v2955 = vsel %vm55, %v2951, 0.0
    %2956 = vadd.xlane.f32.xlu0 %v2955
    %v2957 = vpop.xlane.xlu0 %2956
    %v2958 = vmul.f32 %v2954, %v2827
    %v2959 = vmul.f32 %v2957, %v2827
    %v2960 = vsub.f32 %v2950, %v2958
    %v2961 = vsub.f32 %v2951, %v2959
    %v2962 = vmul.f32 %v2960, %v2960
    %v2963 = vmul.f32 %v2961, %v2961
    %v2964 = vsel %vm55, %v2962, 0.0
    %2965 = vadd.xlane.f32.xlu0 %v2964
    %v2966 = vpop.xlane.xlu0 %2965
    %v2967 = vsel %vm55, %v2963, 0.0
    %2968 = vadd.xlane.f32.xlu0 %v2967
    %v2969 = vpop.xlane.xlu0 %2968
    %v2970 = vmul.f32 %v2966, %v2827
    %v2971 = vmul.f32 %v2969, %v2827
    %v2972 = vadd.f32 %v2970, 1e-05
    %v2973 = vadd.f32 %v2971, 1e-05
    %v2974 = vrsqrt.pop %v2972
    %v2975 = vrsqrt.pop %v2973
    %v2976 = vmul.f32 %v2960, %v2974
    %v2977 = vmul.f32 %v2961, %v2975
    %v2978 = vlaneseq
    %v2979 = vshrl.u32 %v2978, 7
    %v2980 = vsub.s32 4, %v2979
    %v2981 = vrot.slane %v46, %v2980
    %v2982 = vmul.f32 %v2976, %v2981
    %v2983 = vmul.f32 %v2977, %v2981
    %v2984 = vlaneseq
    %v2985 = vshrl.u32 %v2984, 7
    %v2986 = vsub.s32 5, %v2985
    %v2987 = vrot.slane %v46, %v2986
    %v2988 = vadd.f32 %v2982, %v2987
    %v2989 = vadd.f32 %v2983, %v2987
    %2990 = vst.msk [vmem:[#allocation2] sm:$0xff] %vm55, %v2988
    %2991 = vst.msk [vmem:[#allocation2 + $0x8] sm:$0xff] %vm55, %v2989
    // Predicated region
    $region34: #{domain_attention.1} parent=1 // pred_check
      _
    $region35: #{domain_attention.1} parent=1 // pred_check_branch
      %2993 = sbr.rel (0) target = $region37
    $region36: #{domain_attention.1} parent=1 // pred_region
      %s2995 = ssub.s32 256, 256
      %2996 = vsyncadd [#allocation3], %s2995
      %s2997 = sshll.u32 [#allocation2], 4
      %s2998 = int_to_ptr.vmem [resolvable:$true] %s2997
      %3003 = dma.vmem_to_hbm [thread:$0]  %s2998, 256, %s8, [#allocation3], 128, 128, 8
    $region37: #{domain_attention.1} parent=1 // pred_fallthru
      _
    // Predicated region
    $region38: #{domain_attention.1} parent=1 // pred_check
      _
    $region39: #{domain_attention.1} parent=1 // pred_check_branch
      %3005 = sbr.rel (0) target = $region41
    $region40: #{domain_attention.1} parent=1 // pred_region
      %3006 = dma.done [#allocation3], 256
    $region41: #{domain_attention.1} parent=1 // pred_fallthru
      _
    %3007 = vsyncpa [#allocation3], 1

</llo_original>
